<compile_context>
chip_gen: v7x
topology: tpu7x:2x2x1
jax: 0.10.0
libtpu: 0.0.40
codegen_flags: <defaults>
</compile_context>

<pallas_src>
import functools
import math

import jax
import jax.numpy as jnp
from jax import lax
from jax.experimental import pallas as pl
from jax.experimental.pallas import tpu as pltpu

# bf16 operands give ~2x MXU throughput (more on v5e) and halve weight bytes,
# but loosen numerics beyond the 1e-4 reference check for the recurrent state.
MATMUL_DTYPE = jnp.float32


# ---------------------------------------------------------------------------
# Helpers
# ---------------------------------------------------------------------------

def _round_up(x, m):
    return ((x + m - 1) // m) * m


def _largest_divisor_leq(n, cap):
    for d in range(min(n, cap), 0, -1):
        if n % d == 0:
            return d
    return 1


def _pick_block(n, unit, cap):
    """Largest multiple of `unit` that divides n and is <= cap; fallback n."""
    best = None
    d = unit
    while d <= min(n, cap):
        if n % d == 0:
            best = d
        d += unit
    return best if best is not None else n


def _vmem_capacity_bytes():
    """Generation-aware VMEM capacity query with a conservative fallback."""
    try:
        info = pltpu.get_tpu_info()
        for name in ("vmem_capacity_bytes", "vmem_bytes", "vmem_size_bytes"):
            v = getattr(info, name, None)
            if v:
                return int(v)
    except Exception:
        pass
    return 64 * 1024 * 1024  # v7x per-core VMEM — safe lower bound


def _pad_params(wx, bx, wh, bh, d_in, H, Dp, Hp):
    """Pad per-gate so each gate block lands on a 128-lane boundary.

    Padded gate weight columns / biases are zero, so padded lanes of h/c stay
    exactly 0 through the recurrence and through the layer chain.
    """
    wx4 = jnp.pad(wx.reshape(d_in, 4, H), ((0, Dp - d_in), (0, 0), (0, Hp - H)))
    wh4 = jnp.pad(wh.reshape(H, 4, H), ((0, Hp - H), (0, 0), (0, Hp - H)))
    b4 = jnp.pad((bx + bh).reshape(4, H), ((0, 0), (0, Hp - H)))
    return (wx4.reshape(Dp, 4 * Hp),
            wh4.reshape(Hp, 4 * Hp),
            b4.reshape(1, 4 * Hp))


# ---------------------------------------------------------------------------
# Fused multi-layer LSTM kernel (time-chunked, softmax fused into last layer)
# ---------------------------------------------------------------------------

def _fused_lstm_kernel(*refs, num_layers, hidden_p, t_chunk, h_valid, unroll):
    L = num_layers
    Hp = hidden_p
    G = 4 * Hp
    n_in = 3 + 3 * L

    x_ref = refs[0]
    w_refs = refs[1:1 + 3 * L]                 # (wx, wh, b) per layer
    h0_ref = refs[1 + 3 * L]
    c0_ref = refs[2 + 3 * L]
    y_ref, hn_ref, cn_ref = refs[n_in:n_in + 3]
    xproj_sc, act_sc, h_sc, c_sc = refs[n_in + 3:]

    t_idx = pl.program_id(1)

    # Initialize all layers' recurrent carries at the first time chunk of each
    # batch block (t is the inner, "arbitrary" grid axis).
    @pl.when(t_idx == 0)
    def _():
        h_sc[...] = h0_ref[...]
        c_sc[...] = c0_ref[...]

    Tc, Bb, _ = x_ref.shape

    # Lane mask for the real hidden size (hoisted out of all loops).
    lane = lax.broadcasted_iota(jnp.int32, (Bb, Hp), 1)
    valid = lane < h_valid

    for l in range(L):
        wx_ref = w_refs[3 * l]
        wh_ref = w_refs[3 * l + 1]
        b_ref = w_refs[3 * l + 2]
        is_last = l == L - 1

        # Hoisted input projection + fused biases: one big MXU matmul per
        # chunk. For layers > 0 the input is the previous layer's output
        # already sitting in VMEM (no HBM round trip).
        if l == 0:
            inp2d = x_ref[...].reshape(Tc * Bb, x_ref.shape[-1])
        else:
            inp2d = act_sc[...].reshape(Tc * Bb, Hp)
        xproj_sc[...] = (
            jnp.dot(inp2d.astype(MATMUL_DTYPE),
                    wx_ref[...].astype(MATMUL_DTYPE),
                    preferred_element_type=jnp.float32)
            + b_ref[...]
        ).reshape(Tc, Bb, G)

        wh = wh_ref[...].astype(MATMUL_DTYPE)

        def step(t, carry, wh=wh, is_last=is_last):
            h, c = carry
            # The only truly serial work: (Bb, Hp) @ (Hp, 4Hp) + x-projection.
            gates = xproj_sc[t] + jnp.dot(h.astype(MATMUL_DTYPE), wh,
                                          preferred_element_type=jnp.float32)
            i = jax.nn.sigmoid(gates[:, 0 * Hp:1 * Hp])
            f = jax.nn.sigmoid(gates[:, 1 * Hp:2 * Hp])
            g = jnp.tanh(gates[:, 2 * Hp:3 * Hp])
            o = jax.nn.sigmoid(gates[:, 3 * Hp:4 * Hp])
            c_new = f * c + i * g
            h_new = o * jnp.tanh(c_new)
            if is_last:
                # Fused softmax over the real H lanes.
                logits = jnp.where(valid, h_new, -1e30)
                m = jnp.max(logits, axis=-1, keepdims=True)
                e = jnp.exp(logits - m)
                s = jnp.sum(e, axis=-1, keepdims=True)
                r = pl.reciprocal(s, approx=True)   # EUP slot
                r = r * (2.0 - s * r)               # 1 Newton step -> f32 accuracy
                y_ref[t] = (e * r).astype(y_ref.dtype)
            else:
                # Safe to overwrite: this layer's xproj is already computed.
                act_sc[t] = h_new
            return (h_new, c_new)

        h_n, c_n = lax.fori_loop(0, t_chunk, step, (h_sc[l], c_sc[l]),
                                 unroll=unroll)
        h_sc[l] = h_n
        c_sc[l] = c_n

    @pl.when(t_idx == pl.num_programs(1) - 1)
    def _():
        hn_ref[...] = h_sc[...].astype(hn_ref.dtype)
        cn_ref[...] = c_sc[...].astype(cn_ref.dtype)


# ---------------------------------------------------------------------------
# Full DummyRNN forward: one pallas_call for the whole LSTM stack + softmax
# ---------------------------------------------------------------------------

def dummy_rnn_forward(x, params, hidden_size, h=None):
    """Equivalent of DummyRNN.forward: returns (softmax(y), (h_n, c_n))."""
    T, B, D = x.shape
    L = len(params)
    H = hidden_size
    Bp = _round_up(B, 8)
    Hp = _round_up(H, 128)
    Dp = _round_up(D, 128)
    G = 4 * Hp

    if h is None:
        h0 = jnp.zeros((L, B, H), jnp.float32)
        c0 = jnp.zeros((L, B, H), jnp.float32)
    else:
        h0, c0 = h
    h0p = jnp.pad(h0, ((0, 0), (0, Bp - B), (0, Hp - H)))
    c0p = jnp.pad(c0, ((0, 0), (0, Bp - B), (0, Hp - H)))
    x_p = jnp.pad(x, ((0, 0), (0, Bp - B), (0, Dp - D)))

    # Pad all layer weights (gate-blocked).
    w_args, w_specs = [], []
    w_bytes = 0
    d_in = D
    for _l in range(L):
        wx, bx, wh, bh = params[_l]
        dp_in = _round_up(d_in, 128)
        wxp, whp, bp = _pad_params(wx, bx, wh, bh, d_in, H, dp_in, Hp)
        w_args += [wxp, whp, bp]
        w_specs += [
            pl.BlockSpec((dp_in, G), lambda b, t: (0, 0)),   # wx_l
            pl.BlockSpec((Hp, G), lambda b, t: (0, 0)),      # wh_l
            pl.BlockSpec((1, G), lambda b, t: (0, 0)),       # bias_l
        ]
        w_bytes += 4 * (wxp.size + whp.size + bp.size)
        d_in = H

    # ---- Generation-aware VMEM budget and tile selection --------------------
    vmem_cap = _vmem_capacity_bytes()
    vmem_limit = min(int(vmem_cap * 0.78), 100 * 1024 * 1024)
    budget = int(vmem_limit * 0.9)

    def _est(tc, bb):
        fb = 4
        io = 2 * tc * bb * (Dp + Hp) * fb               # x in + y out (double-buffered)
        states = 2 * 4 * L * bb * Hp * fb               # h0/c0 in + hn/cn out
        scratch = (tc * bb * G + tc * bb * Hp + 2 * L * bb * Hp) * fb
        return io + 2 * w_bytes + states + scratch      # weights double-buffered

    # Batch block: tall M for the serial h@wh, but keep >= 2 blocks on the
    # "parallel" axis when Bp permits (v7x: 2 TensorCores; v6e megacore).
    if Bp >= 16:
        b_block = _pick_block(Bp, 8, min(256, Bp // 2))
    else:
        b_block = Bp

    t_chunk = _largest_divisor_leq(T, 128)
    while t_chunk > 1 and _est(t_chunk, b_block) > budget:
        t_chunk = _largest_divisor_leq(T, t_chunk - 1)
    while b_block > 8 and _est(t_chunk, b_block) > budget:
        b_block = _pick_block(Bp, 8, b_block - 8)

    # Unroll the serial recurrence more when per-step vreg pressure is low.
    if b_block <= 32:
        unroll = t_chunk if t_chunk <= 8 else 4
    elif b_block <= 64:
        unroll = 2
    else:
        unroll = 1

    grid = (Bp // b_block, T // t_chunk)

    kernel = functools.partial(
        _fused_lstm_kernel, num_layers=L, hidden_p=Hp, t_chunk=t_chunk,
        h_valid=H, unroll=unroll)

    in_specs = (
        [pl.BlockSpec((t_chunk, b_block, Dp), lambda b, t: (t, b, 0))]   # x
        + w_specs
        + [pl.BlockSpec((L, b_block, Hp), lambda b, t: (0, b, 0)),       # h0
           pl.BlockSpec((L, b_block, Hp), lambda b, t: (0, b, 0))]       # c0
    )
    out_specs = (
        pl.BlockSpec((t_chunk, b_block, Hp), lambda b, t: (t, b, 0)),    # y
        pl.BlockSpec((L, b_block, Hp), lambda b, t: (0, b, 0)),          # h_n
        pl.BlockSpec((L, b_block, Hp), lambda b, t: (0, b, 0)),          # c_n
    )

    y_p, hn_p, cn_p = pl.pallas_call(
        kernel,
        out_shape=(jax.ShapeDtypeStruct((T, Bp, Hp), jnp.float32),
                   jax.ShapeDtypeStruct((L, Bp, Hp), jnp.float32),
                   jax.ShapeDtypeStruct((L, Bp, Hp), jnp.float32)),
        grid_spec=pltpu.PrefetchScalarGridSpec(
            num_scalar_prefetch=0,
            grid=grid,
            in_specs=in_specs,
            out_specs=out_specs,
            scratch_shapes=[
                pltpu.VMEM((t_chunk, b_block, G), jnp.float32),    # hoisted x-proj
                pltpu.VMEM((t_chunk, b_block, Hp), jnp.float32),   # inter-layer act
                pltpu.VMEM((L, b_block, Hp), jnp.float32),         # h carry / layer
                pltpu.VMEM((L, b_block, Hp), jnp.float32),         # c carry / layer
            ]),
        compiler_params=pltpu.CompilerParams(
            dimension_semantics=("parallel", "arbitrary"),
            vmem_limit_bytes=vmem_limit),
    )(x_p, *w_args, h0p, c0p)

    y = y_p[:, :B, :H]
    return y, (hn_p[:, :B, :H], cn_p[:, :B, :H])


# ---------------------------------------------------------------------------
# Deterministic parameter init (uniform(-1/sqrt(H), 1/sqrt(H)), distiller-style)
# ---------------------------------------------------------------------------

def init_params(key, input_size, hidden_size, num_layers):
    params = []
    bound = 1.0 / math.sqrt(hidden_size)
    d_in = input_size
    for _ in range(num_layers):
        key, k1, k2, k3, k4 = jax.random.split(key, 5)
        wx = jax.random.uniform(k1, (d_in, 4 * hidden_size), jnp.float32, -bound, bound)
        bx = jax.random.uniform(k2, (1, 4 * hidden_size), jnp.float32, -bound, bound)
        wh = jax.random.uniform(k3, (hidden_size, 4 * hidden_size), jnp.float32, -bound, bound)
        bh = jax.random.uniform(k4, (1, 4 * hidden_size), jnp.float32, -bound, bound)
        params.append((wx, bx, wh, bh))
        d_in = hidden_size
    return params


# ---------------------------------------------------------------------------
# Pure-JAX reference (for sanity check)
# ---------------------------------------------------------------------------

def reference_forward(x, params, hidden_size):
    T, B, _ = x.shape
    num_layers = len(params)
    h_finals, c_finals = [], []
    layer_in = x
    for l in range(num_layers):
        wx, bx, wh, bh = params[l]
        h = jnp.zeros((B, hidden_size), jnp.float32)
        c = jnp.zeros((B, hidden_size), jnp.float32)
        ys = []
        for t in range(T):
            gates = layer_in[t] @ wx + bx + h @ wh + bh
            i, f, g, o = jnp.split(gates, 4, axis=-1)
            i, f, o = jax.nn.sigmoid(i), jax.nn.sigmoid(f), jax.nn.sigmoid(o)
            g = jnp.tanh(g)
            c = f * c + i * g
            h = o * jnp.tanh(c)
            ys.append(h)
        layer_in = jnp.stack(ys, axis=0)
        h_finals.append(h)
        c_finals.append(c)
    y = jax.nn.softmax(layer_in, axis=-1)
    return y, (jnp.stack(h_finals), jnp.stack(c_finals))


# ---------------------------------------------------------------------------

if __name__ == "__main__":
    INPUT_SIZE = 16
    HIDDEN_SIZE = 32
    NUM_LAYERS = 2
    SEQ_LEN = 8
    BATCH = 2

    key = jax.random.PRNGKey(0)
    key, kx, kp = jax.random.split(key, 3)
    x = jax.random.normal(kx, (SEQ_LEN, BATCH, INPUT_SIZE), jnp.float32)
    params = init_params(kp, INPUT_SIZE, HIDDEN_SIZE, NUM_LAYERS)

    y, (h_n, c_n) = dummy_rnn_forward(x, params, HIDDEN_SIZE)
    jax.block_until_ready((y, h_n, c_n))

    # Sanity check vs. pure-JAX reference.
    y_ref, (h_ref, c_ref) = reference_forward(x, params, HIDDEN_SIZE)
    assert jnp.allclose(y, y_ref, atol=1e-4, rtol=1e-4)
    assert jnp.allclose(h_n, h_ref, atol=1e-4, rtol=1e-4)
    assert jnp.allclose(c_n, c_ref, atol=1e-4, rtol=1e-4)

    print("KERNEL_OK")
</pallas_src>

<mosaic_0001>
module attributes {stable_mosaic.version = 11 : i64} {
  func.func @_fused_lstm_kernel(%arg0: i32, %arg1: i32, %arg2: memref<8x8x128xf32, #tpu.memory_space<vmem>>, %arg3: memref<128x512xf32, #tpu.memory_space<vmem>>, %arg4: memref<128x512xf32, #tpu.memory_space<vmem>>, %arg5: memref<1x512xf32, #tpu.memory_space<vmem>>, %arg6: memref<128x512xf32, #tpu.memory_space<vmem>>, %arg7: memref<128x512xf32, #tpu.memory_space<vmem>>, %arg8: memref<1x512xf32, #tpu.memory_space<vmem>>, %arg9: memref<2x8x128xf32, #tpu.memory_space<vmem>>, %arg10: memref<2x8x128xf32, #tpu.memory_space<vmem>>, %arg11: memref<8x8x128xf32, #tpu.memory_space<vmem>>, %arg12: memref<2x8x128xf32, #tpu.memory_space<vmem>>, %arg13: memref<2x8x128xf32, #tpu.memory_space<vmem>>, %arg14: memref<8x8x512xf32, #tpu.memory_space<vmem>>, %arg15: memref<8x8x128xf32, #tpu.memory_space<vmem>>, %arg16: memref<2x8x128xf32, #tpu.memory_space<vmem>>, %arg17: memref<2x8x128xf32, #tpu.memory_space<vmem>>) attributes {dimension_semantics = [#tpu.dimension_semantics<parallel>, #tpu.dimension_semantics<arbitrary>], iteration_bounds = array<i64: 1, 1>, scalar_prefetch = 0 : i64, scratch_operands = 4 : i64, tpu.core_type = #tpu.core_type<tc>, window_params = [{transform_indices = @transform_0, window_bounds = array<i64: 8, 8, 128>}, {pipeline_mode = #tpu.pipeline_mode<synchronous>, transform_indices = @transform_1, window_bounds = array<i64: 128, 512>}, {pipeline_mode = #tpu.pipeline_mode<synchronous>, transform_indices = @transform_2, window_bounds = array<i64: 128, 512>}, {pipeline_mode = #tpu.pipeline_mode<synchronous>, transform_indices = @transform_3, window_bounds = array<i64: 1, 512>}, {pipeline_mode = #tpu.pipeline_mode<synchronous>, transform_indices = @transform_4, window_bounds = array<i64: 128, 512>}, {pipeline_mode = #tpu.pipeline_mode<synchronous>, transform_indices = @transform_5, window_bounds = array<i64: 128, 512>}, {pipeline_mode = #tpu.pipeline_mode<synchronous>, transform_indices = @transform_6, window_bounds = array<i64: 1, 512>}, {transform_indices = @transform_7, window_bounds = array<i64: 2, 8, 128>}, {transform_indices = @transform_8, window_bounds = array<i64: 2, 8, 128>}, {transform_indices = @transform_9, window_bounds = array<i64: 8, 8, 128>}, {transform_indices = @transform_10, window_bounds = array<i64: 2, 8, 128>}, {transform_indices = @transform_11, window_bounds = array<i64: 2, 8, 128>}]} {
    %c0_i32 = arith.constant 0 : i32
    %0 = arith.cmpi eq, %arg1, %c0_i32 : i32
    %1 = arith.extui %0 : i1 to i32
    %c0_i32_0 = arith.constant 0 : i32
    %2 = arith.cmpi ne, %1, %c0_i32_0 : i32
    scf.if %2 {
      %c0_220 = arith.constant 0 : index
      %c0_221 = arith.constant 0 : index
      %c0_222 = arith.constant 0 : index
      %721 = vector.load %arg9[%c0_220, %c0_221, %c0_222] : memref<2x8x128xf32, #tpu.memory_space<vmem>>, vector<2x8x128xf32>
      %c0_223 = arith.constant 0 : index
      %c0_224 = arith.constant 0 : index
      %c0_225 = arith.constant 0 : index
      %722 = vector.load %arg16[%c0_223, %c0_224, %c0_225] : memref<2x8x128xf32, #tpu.memory_space<vmem>>, vector<2x8x128xf32>
      tpu.vector_store %arg16[%c0_223, %c0_224, %c0_225], %721 {strides = array<i32>} : memref<2x8x128xf32, #tpu.memory_space<vmem>>, vector<2x8x128xf32>,
      %c0_226 = arith.constant 0 : index
      %c0_227 = arith.constant 0 : index
      %c0_228 = arith.constant 0 : index
      %723 = vector.load %arg10[%c0_226, %c0_227, %c0_228] : memref<2x8x128xf32, #tpu.memory_space<vmem>>, vector<2x8x128xf32>
      %c0_229 = arith.constant 0 : index
      %c0_230 = arith.constant 0 : index
      %c0_231 = arith.constant 0 : index
      %724 = vector.load %arg17[%c0_229, %c0_230, %c0_231] : memref<2x8x128xf32, #tpu.memory_space<vmem>>, vector<2x8x128xf32>
      tpu.vector_store %arg17[%c0_229, %c0_230, %c0_231], %723 {strides = array<i32>} : memref<2x8x128xf32, #tpu.memory_space<vmem>>, vector<2x8x128xf32>,
    } else {
    }
    %3 = tpu.iota {dimensions = array<i32: 1>} : vector<8x128xi32>
    %c32_i32 = arith.constant 32 : i32
    %4 = vector.broadcast %c32_i32 : i32 to vector<8x128xi32>
    %5 = arith.cmpi slt, %3, %4 : vector<8x128xi32>
    %c0 = arith.constant 0 : index
    %c0_1 = arith.constant 0 : index
    %c0_2 = arith.constant 0 : index
    %6 = vector.load %arg2[%c0, %c0_1, %c0_2] : memref<8x8x128xf32, #tpu.memory_space<vmem>>, vector<8x8x128xf32>
    %7 = vector.shape_cast %6 : vector<8x8x128xf32> to vector<64x128xf32>
    %c0_3 = arith.constant 0 : index
    %c0_4 = arith.constant 0 : index
    %8 = vector.load %arg3[%c0_3, %c0_4] : memref<128x512xf32, #tpu.memory_space<vmem>>, vector<128x512xf32>
    %cst = arith.constant dense<0.000000e+00> : vector<64x512xf32>
    %9 = tpu.matmul %7, %8, %cst {dimension_numbers = #tpu.dot_dimension_numbers<[1], [0], [0], [1], [0, 0, 1, 1], [], []>} : vector<64x128xf32>, vector<128x512xf32>, vector<64x512xf32> -> vector<64x512xf32>
    %c0_5 = arith.constant 0 : index
    %c0_6 = arith.constant 0 : index
    %10 = vector.load %arg5[%c0_5, %c0_6] : memref<1x512xf32, #tpu.memory_space<vmem>>, vector<1x512xf32>
    %11 = vector.broadcast %10 : vector<1x512xf32> to vector<64x512xf32>
    %12 = arith.addf %9, %11 : vector<64x512xf32>
    %13 = vector.shape_cast %12 : vector<64x512xf32> to vector<8x8x512xf32>
    %c0_7 = arith.constant 0 : index
    %c0_8 = arith.constant 0 : index
    %c0_9 = arith.constant 0 : index
    %14 = vector.load %arg14[%c0_7, %c0_8, %c0_9] : memref<8x8x512xf32, #tpu.memory_space<vmem>>, vector<8x8x512xf32>
    tpu.vector_store %arg14[%c0_7, %c0_8, %c0_9], %13 {strides = array<i32>} : memref<8x8x512xf32, #tpu.memory_space<vmem>>, vector<8x8x512xf32>,
    %c0_10 = arith.constant 0 : index
    %c0_11 = arith.constant 0 : index
    %15 = vector.load %arg4[%c0_10, %c0_11] : memref<128x512xf32, #tpu.memory_space<vmem>>, vector<128x512xf32>
    %c0_12 = arith.constant 0 : index
    %c0_13 = arith.constant 0 : index
    %c0_14 = arith.constant 0 : index
    %16 = vector.load %arg16[%c0_12, %c0_13, %c0_14] : memref<2x8x128xf32, #tpu.memory_space<vmem>>, vector<1x8x128xf32>
    %17 = vector.shape_cast %16 : vector<1x8x128xf32> to vector<8x128xf32>
    %c0_15 = arith.constant 0 : index
    %c0_16 = arith.constant 0 : index
    %c0_17 = arith.constant 0 : index
    %18 = vector.load %arg17[%c0_15, %c0_16, %c0_17] : memref<2x8x128xf32, #tpu.memory_space<vmem>>, vector<1x8x128xf32>
    %19 = vector.shape_cast %18 : vector<1x8x128xf32> to vector<8x128xf32>
    %c0_i32_18 = arith.constant 0 : i32
    %20 = arith.index_cast %c0_i32_18 : i32 to index
    %c0_19 = arith.constant 0 : index
    %c0_20 = arith.constant 0 : index
    %21 = vector.load %arg14[%20, %c0_19, %c0_20] : memref<8x8x512xf32, #tpu.memory_space<vmem>>, vector<1x8x512xf32>
    %22 = vector.shape_cast %21 : vector<1x8x512xf32> to vector<8x512xf32>
    %cst_21 = arith.constant dense<0.000000e+00> : vector<8x512xf32>
    %23 = tpu.matmul %17, %15, %cst_21 {dimension_numbers = #tpu.dot_dimension_numbers<[1], [0], [0], [1], [0, 0, 1, 1], [], []>} : vector<8x128xf32>, vector<128x512xf32>, vector<8x512xf32> -> vector<8x512xf32>
    %24 = arith.addf %22, %23 : vector<8x512xf32>
    %25 = vector.extract_strided_slice %24 {offsets = [0, 0], sizes = [8, 128], strides = [1, 1]} : vector<8x512xf32> to vector<8x128xf32>
    %26 = arith.negf %25 : vector<8x128xf32>
    %27 = math.exp %26 : vector<8x128xf32>
    %cst_22 = arith.constant 1.000000e+00 : f32
    %28 = vector.broadcast %cst_22 : f32 to vector<8x128xf32>
    %29 = arith.addf %28, %27 : vector<8x128xf32>
    %30 = arith.divf %28, %29 : vector<8x128xf32>
    %31 = vector.extract_strided_slice %24 {offsets = [0, 128], sizes = [8, 128], strides = [1, 1]} : vector<8x512xf32> to vector<8x128xf32>
    %32 = arith.negf %31 : vector<8x128xf32>
    %33 = math.exp %32 : vector<8x128xf32>
    %cst_23 = arith.constant 1.000000e+00 : f32
    %34 = vector.broadcast %cst_23 : f32 to vector<8x128xf32>
    %35 = arith.addf %34, %33 : vector<8x128xf32>
    %36 = arith.divf %34, %35 : vector<8x128xf32>
    %37 = vector.extract_strided_slice %24 {offsets = [0, 256], sizes = [8, 128], strides = [1, 1]} : vector<8x512xf32> to vector<8x128xf32>
    %38 = math.tanh %37 : vector<8x128xf32>
    %39 = vector.extract_strided_slice %24 {offsets = [0, 384], sizes = [8, 128], strides = [1, 1]} : vector<8x512xf32> to vector<8x128xf32>
    %40 = arith.negf %39 : vector<8x128xf32>
    %41 = math.exp %40 : vector<8x128xf32>
    %cst_24 = arith.constant 1.000000e+00 : f32
    %42 = vector.broadcast %cst_24 : f32 to vector<8x128xf32>
    %43 = arith.addf %42, %41 : vector<8x128xf32>
    %44 = arith.divf %42, %43 : vector<8x128xf32>
    %45 = arith.mulf %36, %19 : vector<8x128xf32>
    %46 = arith.mulf %30, %38 : vector<8x128xf32>
    %47 = arith.addf %45, %46 : vector<8x128xf32>
    %48 = math.tanh %47 : vector<8x128xf32>
    %49 = arith.mulf %44, %48 : vector<8x128xf32>
    %50 = arith.index_cast %c0_i32_18 : i32 to index
    %c0_25 = arith.constant 0 : index
    %c0_26 = arith.constant 0 : index
    %51 = vector.load %arg15[%50, %c0_25, %c0_26] : memref<8x8x128xf32, #tpu.memory_space<vmem>>, vector<1x8x128xf32>
    %52 = vector.shape_cast %51 : vector<1x8x128xf32> to vector<8x128xf32>
    %53 = vector.shape_cast %49 : vector<8x128xf32> to vector<1x8x128xf32>
    tpu.vector_store %arg15[%50, %c0_25, %c0_26], %53 {strides = array<i32>} : memref<8x8x128xf32, #tpu.memory_space<vmem>>, vector<1x8x128xf32>,
    %c1_i32 = arith.constant 1 : i32
    %54 = arith.index_cast %c1_i32 : i32 to index
    %c0_27 = arith.constant 0 : index
    %c0_28 = arith.constant 0 : index
    %55 = vector.load %arg14[%54, %c0_27, %c0_28] : memref<8x8x512xf32, #tpu.memory_space<vmem>>, vector<1x8x512xf32>
    %56 = vector.shape_cast %55 : vector<1x8x512xf32> to vector<8x512xf32>
    %cst_29 = arith.constant dense<0.000000e+00> : vector<8x512xf32>
    %57 = tpu.matmul %49, %15, %cst_29 {dimension_numbers = #tpu.dot_dimension_numbers<[1], [0], [0], [1], [0, 0, 1, 1], [], []>} : vector<8x128xf32>, vector<128x512xf32>, vector<8x512xf32> -> vector<8x512xf32>
    %58 = arith.addf %56, %57 : vector<8x512xf32>
    %59 = vector.extract_strided_slice %58 {offsets = [0, 0], sizes = [8, 128], strides = [1, 1]} : vector<8x512xf32> to vector<8x128xf32>
    %60 = arith.negf %59 : vector<8x128xf32>
    %61 = math.exp %60 : vector<8x128xf32>
    %cst_30 = arith.constant 1.000000e+00 : f32
    %62 = vector.broadcast %cst_30 : f32 to vector<8x128xf32>
    %63 = arith.addf %62, %61 : vector<8x128xf32>
    %64 = arith.divf %62, %63 : vector<8x128xf32>
    %65 = vector.extract_strided_slice %58 {offsets = [0, 128], sizes = [8, 128], strides = [1, 1]} : vector<8x512xf32> to vector<8x128xf32>
    %66 = arith.negf %65 : vector<8x128xf32>
    %67 = math.exp %66 : vector<8x128xf32>
    %cst_31 = arith.constant 1.000000e+00 : f32
    %68 = vector.broadcast %cst_31 : f32 to vector<8x128xf32>
    %69 = arith.addf %68, %67 : vector<8x128xf32>
    %70 = arith.divf %68, %69 : vector<8x128xf32>
    %71 = vector.extract_strided_slice %58 {offsets = [0, 256], sizes = [8, 128], strides = [1, 1]} : vector<8x512xf32> to vector<8x128xf32>
    %72 = math.tanh %71 : vector<8x128xf32>
    %73 = vector.extract_strided_slice %58 {offsets = [0, 384], sizes = [8, 128], strides = [1, 1]} : vector<8x512xf32> to vector<8x128xf32>
    %74 = arith.negf %73 : vector<8x128xf32>
    %75 = math.exp %74 : vector<8x128xf32>
    %cst_32 = arith.constant 1.000000e+00 : f32
    %76 = vector.broadcast %cst_32 : f32 to vector<8x128xf32>
    %77 = arith.addf %76, %75 : vector<8x128xf32>
    %78 = arith.divf %76, %77 : vector<8x128xf32>
    %79 = arith.mulf %70, %47 : vector<8x128xf32>
    %80 = arith.mulf %64, %72 : vector<8x128xf32>
    %81 = arith.addf %79, %80 : vector<8x128xf32>
    %82 = math.tanh %81 : vector<8x128xf32>
    %83 = arith.mulf %78, %82 : vector<8x128xf32>
    %84 = arith.index_cast %c1_i32 : i32 to index
    %c0_33 = arith.constant 0 : index
    %c0_34 = arith.constant 0 : index
    %85 = vector.load %arg15[%84, %c0_33, %c0_34] : memref<8x8x128xf32, #tpu.memory_space<vmem>>, vector<1x8x128xf32>
    %86 = vector.shape_cast %85 : vector<1x8x128xf32> to vector<8x128xf32>
    %87 = vector.shape_cast %83 : vector<8x128xf32> to vector<1x8x128xf32>
    tpu.vector_store %arg15[%84, %c0_33, %c0_34], %87 {strides = array<i32>} : memref<8x8x128xf32, #tpu.memory_space<vmem>>, vector<1x8x128xf32>,
    %c2_i32 = arith.constant 2 : i32
    %88 = arith.index_cast %c2_i32 : i32 to index
    %c0_35 = arith.constant 0 : index
    %c0_36 = arith.constant 0 : index
    %89 = vector.load %arg14[%88, %c0_35, %c0_36] : memref<8x8x512xf32, #tpu.memory_space<vmem>>, vector<1x8x512xf32>
    %90 = vector.shape_cast %89 : vector<1x8x512xf32> to vector<8x512xf32>
    %cst_37 = arith.constant dense<0.000000e+00> : vector<8x512xf32>
    %91 = tpu.matmul %83, %15, %cst_37 {dimension_numbers = #tpu.dot_dimension_numbers<[1], [0], [0], [1], [0, 0, 1, 1], [], []>} : vector<8x128xf32>, vector<128x512xf32>, vector<8x512xf32> -> vector<8x512xf32>
    %92 = arith.addf %90, %91 : vector<8x512xf32>
    %93 = vector.extract_strided_slice %92 {offsets = [0, 0], sizes = [8, 128], strides = [1, 1]} : vector<8x512xf32> to vector<8x128xf32>
    %94 = arith.negf %93 : vector<8x128xf32>
    %95 = math.exp %94 : vector<8x128xf32>
    %cst_38 = arith.constant 1.000000e+00 : f32
    %96 = vector.broadcast %cst_38 : f32 to vector<8x128xf32>
    %97 = arith.addf %96, %95 : vector<8x128xf32>
    %98 = arith.divf %96, %97 : vector<8x128xf32>
    %99 = vector.extract_strided_slice %92 {offsets = [0, 128], sizes = [8, 128], strides = [1, 1]} : vector<8x512xf32> to vector<8x128xf32>
    %100 = arith.negf %99 : vector<8x128xf32>
    %101 = math.exp %100 : vector<8x128xf32>
    %cst_39 = arith.constant 1.000000e+00 : f32
    %102 = vector.broadcast %cst_39 : f32 to vector<8x128xf32>
    %103 = arith.addf %102, %101 : vector<8x128xf32>
    %104 = arith.divf %102, %103 : vector<8x128xf32>
    %105 = vector.extract_strided_slice %92 {offsets = [0, 256], sizes = [8, 128], strides = [1, 1]} : vector<8x512xf32> to vector<8x128xf32>
    %106 = math.tanh %105 : vector<8x128xf32>
    %107 = vector.extract_strided_slice %92 {offsets = [0, 384], sizes = [8, 128], strides = [1, 1]} : vector<8x512xf32> to vector<8x128xf32>
    %108 = arith.negf %107 : vector<8x128xf32>
    %109 = math.exp %108 : vector<8x128xf32>
    %cst_40 = arith.constant 1.000000e+00 : f32
    %110 = vector.broadcast %cst_40 : f32 to vector<8x128xf32>
    %111 = arith.addf %110, %109 : vector<8x128xf32>
    %112 = arith.divf %110, %111 : vector<8x128xf32>
    %113 = arith.mulf %104, %81 : vector<8x128xf32>
    %114 = arith.mulf %98, %106 : vector<8x128xf32>
    %115 = arith.addf %113, %114 : vector<8x128xf32>
    %116 = math.tanh %115 : vector<8x128xf32>
    %117 = arith.mulf %112, %116 : vector<8x128xf32>
    %118 = arith.index_cast %c2_i32 : i32 to index
    %c0_41 = arith.constant 0 : index
    %c0_42 = arith.constant 0 : index
    %119 = vector.load %arg15[%118, %c0_41, %c0_42] : memref<8x8x128xf32, #tpu.memory_space<vmem>>, vector<1x8x128xf32>
    %120 = vector.shape_cast %119 : vector<1x8x128xf32> to vector<8x128xf32>
    %121 = vector.shape_cast %117 : vector<8x128xf32> to vector<1x8x128xf32>
    tpu.vector_store %arg15[%118, %c0_41, %c0_42], %121 {strides = array<i32>} : memref<8x8x128xf32, #tpu.memory_space<vmem>>, vector<1x8x128xf32>,
    %c3_i32 = arith.constant 3 : i32
    %122 = arith.index_cast %c3_i32 : i32 to index
    %c0_43 = arith.constant 0 : index
    %c0_44 = arith.constant 0 : index
    %123 = vector.load %arg14[%122, %c0_43, %c0_44] : memref<8x8x512xf32, #tpu.memory_space<vmem>>, vector<1x8x512xf32>
    %124 = vector.shape_cast %123 : vector<1x8x512xf32> to vector<8x512xf32>
    %cst_45 = arith.constant dense<0.000000e+00> : vector<8x512xf32>
    %125 = tpu.matmul %117, %15, %cst_45 {dimension_numbers = #tpu.dot_dimension_numbers<[1], [0], [0], [1], [0, 0, 1, 1], [], []>} : vector<8x128xf32>, vector<128x512xf32>, vector<8x512xf32> -> vector<8x512xf32>
    %126 = arith.addf %124, %125 : vector<8x512xf32>
    %127 = vector.extract_strided_slice %126 {offsets = [0, 0], sizes = [8, 128], strides = [1, 1]} : vector<8x512xf32> to vector<8x128xf32>
    %128 = arith.negf %127 : vector<8x128xf32>
    %129 = math.exp %128 : vector<8x128xf32>
    %cst_46 = arith.constant 1.000000e+00 : f32
    %130 = vector.broadcast %cst_46 : f32 to vector<8x128xf32>
    %131 = arith.addf %130, %129 : vector<8x128xf32>
    %132 = arith.divf %130, %131 : vector<8x128xf32>
    %133 = vector.extract_strided_slice %126 {offsets = [0, 128], sizes = [8, 128], strides = [1, 1]} : vector<8x512xf32> to vector<8x128xf32>
    %134 = arith.negf %133 : vector<8x128xf32>
    %135 = math.exp %134 : vector<8x128xf32>
    %cst_47 = arith.constant 1.000000e+00 : f32
    %136 = vector.broadcast %cst_47 : f32 to vector<8x128xf32>
    %137 = arith.addf %136, %135 : vector<8x128xf32>
    %138 = arith.divf %136, %137 : vector<8x128xf32>
    %139 = vector.extract_strided_slice %126 {offsets = [0, 256], sizes = [8, 128], strides = [1, 1]} : vector<8x512xf32> to vector<8x128xf32>
    %140 = math.tanh %139 : vector<8x128xf32>
    %141 = vector.extract_strided_slice %126 {offsets = [0, 384], sizes = [8, 128], strides = [1, 1]} : vector<8x512xf32> to vector<8x128xf32>
    %142 = arith.negf %141 : vector<8x128xf32>
    %143 = math.exp %142 : vector<8x128xf32>
    %cst_48 = arith.constant 1.000000e+00 : f32
    %144 = vector.broadcast %cst_48 : f32 to vector<8x128xf32>
    %145 = arith.addf %144, %143 : vector<8x128xf32>
    %146 = arith.divf %144, %145 : vector<8x128xf32>
    %147 = arith.mulf %138, %115 : vector<8x128xf32>
    %148 = arith.mulf %132, %140 : vector<8x128xf32>
    %149 = arith.addf %147, %148 : vector<8x128xf32>
    %150 = math.tanh %149 : vector<8x128xf32>
    %151 = arith.mulf %146, %150 : vector<8x128xf32>
    %152 = arith.index_cast %c3_i32 : i32 to index
    %c0_49 = arith.constant 0 : index
    %c0_50 = arith.constant 0 : index
    %153 = vector.load %arg15[%152, %c0_49, %c0_50] : memref<8x8x128xf32, #tpu.memory_space<vmem>>, vector<1x8x128xf32>
    %154 = vector.shape_cast %153 : vector<1x8x128xf32> to vector<8x128xf32>
    %155 = vector.shape_cast %151 : vector<8x128xf32> to vector<1x8x128xf32>
    tpu.vector_store %arg15[%152, %c0_49, %c0_50], %155 {strides = array<i32>} : memref<8x8x128xf32, #tpu.memory_space<vmem>>, vector<1x8x128xf32>,
    %c4_i32 = arith.constant 4 : i32
    %156 = arith.index_cast %c4_i32 : i32 to index
    %c0_51 = arith.constant 0 : index
    %c0_52 = arith.constant 0 : index
    %157 = vector.load %arg14[%156, %c0_51, %c0_52] : memref<8x8x512xf32, #tpu.memory_space<vmem>>, vector<1x8x512xf32>
    %158 = vector.shape_cast %157 : vector<1x8x512xf32> to vector<8x512xf32>
    %cst_53 = arith.constant dense<0.000000e+00> : vector<8x512xf32>
    %159 = tpu.matmul %151, %15, %cst_53 {dimension_numbers = #tpu.dot_dimension_numbers<[1], [0], [0], [1], [0, 0, 1, 1], [], []>} : vector<8x128xf32>, vector<128x512xf32>, vector<8x512xf32> -> vector<8x512xf32>
    %160 = arith.addf %158, %159 : vector<8x512xf32>
    %161 = vector.extract_strided_slice %160 {offsets = [0, 0], sizes = [8, 128], strides = [1, 1]} : vector<8x512xf32> to vector<8x128xf32>
    %162 = arith.negf %161 : vector<8x128xf32>
    %163 = math.exp %162 : vector<8x128xf32>
    %cst_54 = arith.constant 1.000000e+00 : f32
    %164 = vector.broadcast %cst_54 : f32 to vector<8x128xf32>
    %165 = arith.addf %164, %163 : vector<8x128xf32>
    %166 = arith.divf %164, %165 : vector<8x128xf32>
    %167 = vector.extract_strided_slice %160 {offsets = [0, 128], sizes = [8, 128], strides = [1, 1]} : vector<8x512xf32> to vector<8x128xf32>
    %168 = arith.negf %167 : vector<8x128xf32>
    %169 = math.exp %168 : vector<8x128xf32>
    %cst_55 = arith.constant 1.000000e+00 : f32
    %170 = vector.broadcast %cst_55 : f32 to vector<8x128xf32>
    %171 = arith.addf %170, %169 : vector<8x128xf32>
    %172 = arith.divf %170, %171 : vector<8x128xf32>
    %173 = vector.extract_strided_slice %160 {offsets = [0, 256], sizes = [8, 128], strides = [1, 1]} : vector<8x512xf32> to vector<8x128xf32>
    %174 = math.tanh %173 : vector<8x128xf32>
    %175 = vector.extract_strided_slice %160 {offsets = [0, 384], sizes = [8, 128], strides = [1, 1]} : vector<8x512xf32> to vector<8x128xf32>
    %176 = arith.negf %175 : vector<8x128xf32>
    %177 = math.exp %176 : vector<8x128xf32>
    %cst_56 = arith.constant 1.000000e+00 : f32
    %178 = vector.broadcast %cst_56 : f32 to vector<8x128xf32>
    %179 = arith.addf %178, %177 : vector<8x128xf32>
    %180 = arith.divf %178, %179 : vector<8x128xf32>
    %181 = arith.mulf %172, %149 : vector<8x128xf32>
    %182 = arith.mulf %166, %174 : vector<8x128xf32>
    %183 = arith.addf %181, %182 : vector<8x128xf32>
    %184 = math.tanh %183 : vector<8x128xf32>
    %185 = arith.mulf %180, %184 : vector<8x128xf32>
    %186 = arith.index_cast %c4_i32 : i32 to index
    %c0_57 = arith.constant 0 : index
    %c0_58 = arith.constant 0 : index
    %187 = vector.load %arg15[%186, %c0_57, %c0_58] : memref<8x8x128xf32, #tpu.memory_space<vmem>>, vector<1x8x128xf32>
    %188 = vector.shape_cast %187 : vector<1x8x128xf32> to vector<8x128xf32>
    %189 = vector.shape_cast %185 : vector<8x128xf32> to vector<1x8x128xf32>
    tpu.vector_store %arg15[%186, %c0_57, %c0_58], %189 {strides = array<i32>} : memref<8x8x128xf32, #tpu.memory_space<vmem>>, vector<1x8x128xf32>,
    %c5_i32 = arith.constant 5 : i32
    %190 = arith.index_cast %c5_i32 : i32 to index
    %c0_59 = arith.constant 0 : index
    %c0_60 = arith.constant 0 : index
    %191 = vector.load %arg14[%190, %c0_59, %c0_60] : memref<8x8x512xf32, #tpu.memory_space<vmem>>, vector<1x8x512xf32>
    %192 = vector.shape_cast %191 : vector<1x8x512xf32> to vector<8x512xf32>
    %cst_61 = arith.constant dense<0.000000e+00> : vector<8x512xf32>
    %193 = tpu.matmul %185, %15, %cst_61 {dimension_numbers = #tpu.dot_dimension_numbers<[1], [0], [0], [1], [0, 0, 1, 1], [], []>} : vector<8x128xf32>, vector<128x512xf32>, vector<8x512xf32> -> vector<8x512xf32>
    %194 = arith.addf %192, %193 : vector<8x512xf32>
    %195 = vector.extract_strided_slice %194 {offsets = [0, 0], sizes = [8, 128], strides = [1, 1]} : vector<8x512xf32> to vector<8x128xf32>
    %196 = arith.negf %195 : vector<8x128xf32>
    %197 = math.exp %196 : vector<8x128xf32>
    %cst_62 = arith.constant 1.000000e+00 : f32
    %198 = vector.broadcast %cst_62 : f32 to vector<8x128xf32>
    %199 = arith.addf %198, %197 : vector<8x128xf32>
    %200 = arith.divf %198, %199 : vector<8x128xf32>
    %201 = vector.extract_strided_slice %194 {offsets = [0, 128], sizes = [8, 128], strides = [1, 1]} : vector<8x512xf32> to vector<8x128xf32>
    %202 = arith.negf %201 : vector<8x128xf32>
    %203 = math.exp %202 : vector<8x128xf32>
    %cst_63 = arith.constant 1.000000e+00 : f32
    %204 = vector.broadcast %cst_63 : f32 to vector<8x128xf32>
    %205 = arith.addf %204, %203 : vector<8x128xf32>
    %206 = arith.divf %204, %205 : vector<8x128xf32>
    %207 = vector.extract_strided_slice %194 {offsets = [0, 256], sizes = [8, 128], strides = [1, 1]} : vector<8x512xf32> to vector<8x128xf32>
    %208 = math.tanh %207 : vector<8x128xf32>
    %209 = vector.extract_strided_slice %194 {offsets = [0, 384], sizes = [8, 128], strides = [1, 1]} : vector<8x512xf32> to vector<8x128xf32>
    %210 = arith.negf %209 : vector<8x128xf32>
    %211 = math.exp %210 : vector<8x128xf32>
    %cst_64 = arith.constant 1.000000e+00 : f32
    %212 = vector.broadcast %cst_64 : f32 to vector<8x128xf32>
    %213 = arith.addf %212, %211 : vector<8x128xf32>
    %214 = arith.divf %212, %213 : vector<8x128xf32>
    %215 = arith.mulf %206, %183 : vector<8x128xf32>
    %216 = arith.mulf %200, %208 : vector<8x128xf32>
    %217 = arith.addf %215, %216 : vector<8x128xf32>
    %218 = math.tanh %217 : vector<8x128xf32>
    %219 = arith.mulf %214, %218 : vector<8x128xf32>
    %220 = arith.index_cast %c5_i32 : i32 to index
    %c0_65 = arith.constant 0 : index
    %c0_66 = arith.constant 0 : index
    %221 = vector.load %arg15[%220, %c0_65, %c0_66] : memref<8x8x128xf32, #tpu.memory_space<vmem>>, vector<1x8x128xf32>
    %222 = vector.shape_cast %221 : vector<1x8x128xf32> to vector<8x128xf32>
    %223 = vector.shape_cast %219 : vector<8x128xf32> to vector<1x8x128xf32>
    tpu.vector_store %arg15[%220, %c0_65, %c0_66], %223 {strides = array<i32>} : memref<8x8x128xf32, #tpu.memory_space<vmem>>, vector<1x8x128xf32>,
    %c6_i32 = arith.constant 6 : i32
    %224 = arith.index_cast %c6_i32 : i32 to index
    %c0_67 = arith.constant 0 : index
    %c0_68 = arith.constant 0 : index
    %225 = vector.load %arg14[%224, %c0_67, %c0_68] : memref<8x8x512xf32, #tpu.memory_space<vmem>>, vector<1x8x512xf32>
    %226 = vector.shape_cast %225 : vector<1x8x512xf32> to vector<8x512xf32>
    %cst_69 = arith.constant dense<0.000000e+00> : vector<8x512xf32>
    %227 = tpu.matmul %219, %15, %cst_69 {dimension_numbers = #tpu.dot_dimension_numbers<[1], [0], [0], [1], [0, 0, 1, 1], [], []>} : vector<8x128xf32>, vector<128x512xf32>, vector<8x512xf32> -> vector<8x512xf32>
    %228 = arith.addf %226, %227 : vector<8x512xf32>
    %229 = vector.extract_strided_slice %228 {offsets = [0, 0], sizes = [8, 128], strides = [1, 1]} : vector<8x512xf32> to vector<8x128xf32>
    %230 = arith.negf %229 : vector<8x128xf32>
    %231 = math.exp %230 : vector<8x128xf32>
    %cst_70 = arith.constant 1.000000e+00 : f32
    %232 = vector.broadcast %cst_70 : f32 to vector<8x128xf32>
    %233 = arith.addf %232, %231 : vector<8x128xf32>
    %234 = arith.divf %232, %233 : vector<8x128xf32>
    %235 = vector.extract_strided_slice %228 {offsets = [0, 128], sizes = [8, 128], strides = [1, 1]} : vector<8x512xf32> to vector<8x128xf32>
    %236 = arith.negf %235 : vector<8x128xf32>
    %237 = math.exp %236 : vector<8x128xf32>
    %cst_71 = arith.constant 1.000000e+00 : f32
    %238 = vector.broadcast %cst_71 : f32 to vector<8x128xf32>
    %239 = arith.addf %238, %237 : vector<8x128xf32>
    %240 = arith.divf %238, %239 : vector<8x128xf32>
    %241 = vector.extract_strided_slice %228 {offsets = [0, 256], sizes = [8, 128], strides = [1, 1]} : vector<8x512xf32> to vector<8x128xf32>
    %242 = math.tanh %241 : vector<8x128xf32>
    %243 = vector.extract_strided_slice %228 {offsets = [0, 384], sizes = [8, 128], strides = [1, 1]} : vector<8x512xf32> to vector<8x128xf32>
    %244 = arith.negf %243 : vector<8x128xf32>
    %245 = math.exp %244 : vector<8x128xf32>
    %cst_72 = arith.constant 1.000000e+00 : f32
    %246 = vector.broadcast %cst_72 : f32 to vector<8x128xf32>
    %247 = arith.addf %246, %245 : vector<8x128xf32>
    %248 = arith.divf %246, %247 : vector<8x128xf32>
    %249 = arith.mulf %240, %217 : vector<8x128xf32>
    %250 = arith.mulf %234, %242 : vector<8x128xf32>
    %251 = arith.addf %249, %250 : vector<8x128xf32>
    %252 = math.tanh %251 : vector<8x128xf32>
    %253 = arith.mulf %248, %252 : vector<8x128xf32>
    %254 = arith.index_cast %c6_i32 : i32 to index
    %c0_73 = arith.constant 0 : index
    %c0_74 = arith.constant 0 : index
    %255 = vector.load %arg15[%254, %c0_73, %c0_74] : memref<8x8x128xf32, #tpu.memory_space<vmem>>, vector<1x8x128xf32>
    %256 = vector.shape_cast %255 : vector<1x8x128xf32> to vector<8x128xf32>
    %257 = vector.shape_cast %253 : vector<8x128xf32> to vector<1x8x128xf32>
    tpu.vector_store %arg15[%254, %c0_73, %c0_74], %257 {strides = array<i32>} : memref<8x8x128xf32, #tpu.memory_space<vmem>>, vector<1x8x128xf32>,
    %c7_i32 = arith.constant 7 : i32
    %258 = arith.index_cast %c7_i32 : i32 to index
    %c0_75 = arith.constant 0 : index
    %c0_76 = arith.constant 0 : index
    %259 = vector.load %arg14[%258, %c0_75, %c0_76] : memref<8x8x512xf32, #tpu.memory_space<vmem>>, vector<1x8x512xf32>
    %260 = vector.shape_cast %259 : vector<1x8x512xf32> to vector<8x512xf32>
    %cst_77 = arith.constant dense<0.000000e+00> : vector<8x512xf32>
    %261 = tpu.matmul %253, %15, %cst_77 {dimension_numbers = #tpu.dot_dimension_numbers<[1], [0], [0], [1], [0, 0, 1, 1], [], []>} : vector<8x128xf32>, vector<128x512xf32>, vector<8x512xf32> -> vector<8x512xf32>
    %262 = arith.addf %260, %261 : vector<8x512xf32>
    %263 = vector.extract_strided_slice %262 {offsets = [0, 0], sizes = [8, 128], strides = [1, 1]} : vector<8x512xf32> to vector<8x128xf32>
    %264 = arith.negf %263 : vector<8x128xf32>
    %265 = math.exp %264 : vector<8x128xf32>
    %cst_78 = arith.constant 1.000000e+00 : f32
    %266 = vector.broadcast %cst_78 : f32 to vector<8x128xf32>
    %267 = arith.addf %266, %265 : vector<8x128xf32>
    %268 = arith.divf %266, %267 : vector<8x128xf32>
    %269 = vector.extract_strided_slice %262 {offsets = [0, 128], sizes = [8, 128], strides = [1, 1]} : vector<8x512xf32> to vector<8x128xf32>
    %270 = arith.negf %269 : vector<8x128xf32>
    %271 = math.exp %270 : vector<8x128xf32>
    %cst_79 = arith.constant 1.000000e+00 : f32
    %272 = vector.broadcast %cst_79 : f32 to vector<8x128xf32>
    %273 = arith.addf %272, %271 : vector<8x128xf32>
    %274 = arith.divf %272, %273 : vector<8x128xf32>
    %275 = vector.extract_strided_slice %262 {offsets = [0, 256], sizes = [8, 128], strides = [1, 1]} : vector<8x512xf32> to vector<8x128xf32>
    %276 = math.tanh %275 : vector<8x128xf32>
    %277 = vector.extract_strided_slice %262 {offsets = [0, 384], sizes = [8, 128], strides = [1, 1]} : vector<8x512xf32> to vector<8x128xf32>
    %278 = arith.negf %277 : vector<8x128xf32>
    %279 = math.exp %278 : vector<8x128xf32>
    %cst_80 = arith.constant 1.000000e+00 : f32
    %280 = vector.broadcast %cst_80 : f32 to vector<8x128xf32>
    %281 = arith.addf %280, %279 : vector<8x128xf32>
    %282 = arith.divf %280, %281 : vector<8x128xf32>
    %283 = arith.mulf %274, %251 : vector<8x128xf32>
    %284 = arith.mulf %268, %276 : vector<8x128xf32>
    %285 = arith.addf %283, %284 : vector<8x128xf32>
    %286 = math.tanh %285 : vector<8x128xf32>
    %287 = arith.mulf %282, %286 : vector<8x128xf32>
    %288 = arith.index_cast %c7_i32 : i32 to index
    %c0_81 = arith.constant 0 : index
    %c0_82 = arith.constant 0 : index
    %289 = vector.load %arg15[%288, %c0_81, %c0_82] : memref<8x8x128xf32, #tpu.memory_space<vmem>>, vector<1x8x128xf32>
    %290 = vector.shape_cast %289 : vector<1x8x128xf32> to vector<8x128xf32>
    %291 = vector.shape_cast %287 : vector<8x128xf32> to vector<1x8x128xf32>
    tpu.vector_store %arg15[%288, %c0_81, %c0_82], %291 {strides = array<i32>} : memref<8x8x128xf32, #tpu.memory_space<vmem>>, vector<1x8x128xf32>,
    %c8_i32 = arith.constant 8 : i32
    %c0_83 = arith.constant 0 : index
    %c0_84 = arith.constant 0 : index
    %c0_85 = arith.constant 0 : index
    %292 = vector.load %arg16[%c0_83, %c0_84, %c0_85] : memref<2x8x128xf32, #tpu.memory_space<vmem>>, vector<1x8x128xf32>
    %293 = vector.shape_cast %292 : vector<1x8x128xf32> to vector<8x128xf32>
    %294 = vector.shape_cast %287 : vector<8x128xf32> to vector<1x8x128xf32>
    tpu.vector_store %arg16[%c0_83, %c0_84, %c0_85], %294 {strides = array<i32>} : memref<2x8x128xf32, #tpu.memory_space<vmem>>, vector<1x8x128xf32>,
    %c0_86 = arith.constant 0 : index
    %c0_87 = arith.constant 0 : index
    %c0_88 = arith.constant 0 : index
    %295 = vector.load %arg17[%c0_86, %c0_87, %c0_88] : memref<2x8x128xf32, #tpu.memory_space<vmem>>, vector<1x8x128xf32>
    %296 = vector.shape_cast %295 : vector<1x8x128xf32> to vector<8x128xf32>
    %297 = vector.shape_cast %285 : vector<8x128xf32> to vector<1x8x128xf32>
    tpu.vector_store %arg17[%c0_86, %c0_87, %c0_88], %297 {strides = array<i32>} : memref<2x8x128xf32, #tpu.memory_space<vmem>>, vector<1x8x128xf32>,
    %c0_89 = arith.constant 0 : index
    %c0_90 = arith.constant 0 : index
    %c0_91 = arith.constant 0 : index
    %298 = vector.load %arg15[%c0_89, %c0_90, %c0_91] : memref<8x8x128xf32, #tpu.memory_space<vmem>>, vector<8x8x128xf32>
    %299 = vector.shape_cast %298 : vector<8x8x128xf32> to vector<64x128xf32>
    %c0_92 = arith.constant 0 : index
    %c0_93 = arith.constant 0 : index
    %300 = vector.load %arg6[%c0_92, %c0_93] : memref<128x512xf32, #tpu.memory_space<vmem>>, vector<128x512xf32>
    %cst_94 = arith.constant dense<0.000000e+00> : vector<64x512xf32>
    %301 = tpu.matmul %299, %300, %cst_94 {dimension_numbers = #tpu.dot_dimension_numbers<[1], [0], [0], [1], [0, 0, 1, 1], [], []>} : vector<64x128xf32>, vector<128x512xf32>, vector<64x512xf32> -> vector<64x512xf32>
    %c0_95 = arith.constant 0 : index
    %c0_96 = arith.constant 0 : index
    %302 = vector.load %arg8[%c0_95, %c0_96] : memref<1x512xf32, #tpu.memory_space<vmem>>, vector<1x512xf32>
    %303 = vector.broadcast %302 : vector<1x512xf32> to vector<64x512xf32>
    %304 = arith.addf %301, %303 : vector<64x512xf32>
    %305 = vector.shape_cast %304 : vector<64x512xf32> to vector<8x8x512xf32>
    %c0_97 = arith.constant 0 : index
    %c0_98 = arith.constant 0 : index
    %c0_99 = arith.constant 0 : index
    %306 = vector.load %arg14[%c0_97, %c0_98, %c0_99] : memref<8x8x512xf32, #tpu.memory_space<vmem>>, vector<8x8x512xf32>
    tpu.vector_store %arg14[%c0_97, %c0_98, %c0_99], %305 {strides = array<i32>} : memref<8x8x512xf32, #tpu.memory_space<vmem>>, vector<8x8x512xf32>,
    %c0_100 = arith.constant 0 : index
    %c0_101 = arith.constant 0 : index
    %307 = vector.load %arg7[%c0_100, %c0_101] : memref<128x512xf32, #tpu.memory_space<vmem>>, vector<128x512xf32>
    %c1 = arith.constant 1 : index
    %c0_102 = arith.constant 0 : index
    %c0_103 = arith.constant 0 : index
    %308 = vector.load %arg16[%c1, %c0_102, %c0_103] : memref<2x8x128xf32, #tpu.memory_space<vmem>>, vector<1x8x128xf32>
    %309 = vector.shape_cast %308 : vector<1x8x128xf32> to vector<8x128xf32>
    %c1_104 = arith.constant 1 : index
    %c0_105 = arith.constant 0 : index
    %c0_106 = arith.constant 0 : index
    %310 = vector.load %arg17[%c1_104, %c0_105, %c0_106] : memref<2x8x128xf32, #tpu.memory_space<vmem>>, vector<1x8x128xf32>
    %311 = vector.shape_cast %310 : vector<1x8x128xf32> to vector<8x128xf32>
    %c0_i32_107 = arith.constant 0 : i32
    %312 = arith.index_cast %c0_i32_107 : i32 to index
    %c0_108 = arith.constant 0 : index
    %c0_109 = arith.constant 0 : index
    %313 = vector.load %arg14[%312, %c0_108, %c0_109] : memref<8x8x512xf32, #tpu.memory_space<vmem>>, vector<1x8x512xf32>
    %314 = vector.shape_cast %313 : vector<1x8x512xf32> to vector<8x512xf32>
    %cst_110 = arith.constant dense<0.000000e+00> : vector<8x512xf32>
    %315 = tpu.matmul %309, %307, %cst_110 {dimension_numbers = #tpu.dot_dimension_numbers<[1], [0], [0], [1], [0, 0, 1, 1], [], []>} : vector<8x128xf32>, vector<128x512xf32>, vector<8x512xf32> -> vector<8x512xf32>
    %316 = arith.addf %314, %315 : vector<8x512xf32>
    %317 = vector.extract_strided_slice %316 {offsets = [0, 0], sizes = [8, 128], strides = [1, 1]} : vector<8x512xf32> to vector<8x128xf32>
    %318 = arith.negf %317 : vector<8x128xf32>
    %319 = math.exp %318 : vector<8x128xf32>
    %cst_111 = arith.constant 1.000000e+00 : f32
    %320 = vector.broadcast %cst_111 : f32 to vector<8x128xf32>
    %321 = arith.addf %320, %319 : vector<8x128xf32>
    %322 = arith.divf %320, %321 : vector<8x128xf32>
    %323 = vector.extract_strided_slice %316 {offsets = [0, 128], sizes = [8, 128], strides = [1, 1]} : vector<8x512xf32> to vector<8x128xf32>
    %324 = arith.negf %323 : vector<8x128xf32>
    %325 = math.exp %324 : vector<8x128xf32>
    %cst_112 = arith.constant 1.000000e+00 : f32
    %326 = vector.broadcast %cst_112 : f32 to vector<8x128xf32>
    %327 = arith.addf %326, %325 : vector<8x128xf32>
    %328 = arith.divf %326, %327 : vector<8x128xf32>
    %329 = vector.extract_strided_slice %316 {offsets = [0, 256], sizes = [8, 128], strides = [1, 1]} : vector<8x512xf32> to vector<8x128xf32>
    %330 = math.tanh %329 : vector<8x128xf32>
    %331 = vector.extract_strided_slice %316 {offsets = [0, 384], sizes = [8, 128], strides = [1, 1]} : vector<8x512xf32> to vector<8x128xf32>
    %332 = arith.negf %331 : vector<8x128xf32>
    %333 = math.exp %332 : vector<8x128xf32>
    %cst_113 = arith.constant 1.000000e+00 : f32
    %334 = vector.broadcast %cst_113 : f32 to vector<8x128xf32>
    %335 = arith.addf %334, %333 : vector<8x128xf32>
    %336 = arith.divf %334, %335 : vector<8x128xf32>
    %337 = arith.mulf %328, %311 : vector<8x128xf32>
    %338 = arith.mulf %322, %330 : vector<8x128xf32>
    %339 = arith.addf %337, %338 : vector<8x128xf32>
    %340 = math.tanh %339 : vector<8x128xf32>
    %341 = arith.mulf %336, %340 : vector<8x128xf32>
    %cst_114 = arith.constant -1.000000e+30 : f32
    %342 = vector.broadcast %cst_114 : f32 to vector<8x128xf32>
    %343 = arith.select %5, %341, %342 : vector<8x128xi1>, vector<8x128xf32>
    %cst_115 = arith.constant dense<0xFF800000> : vector<8xf32>
    %344 = vector.multi_reduction <maximumf>, %343, %cst_115 [1] : vector<8x128xf32> to vector<8xf32>
    %345 = vector.shape_cast %344 : vector<8xf32> to vector<8x1xf32>
    %346 = vector.broadcast %345 : vector<8x1xf32> to vector<8x128xf32>
    %347 = arith.subf %343, %346 : vector<8x128xf32>
    %348 = math.exp %347 : vector<8x128xf32>
    %cst_116 = arith.constant dense<0.000000e+00> : vector<8xf32>
    %349 = vector.multi_reduction <add>, %348, %cst_116 [1] : vector<8x128xf32> to vector<8xf32>
    %350 = vector.shape_cast %349 : vector<8xf32> to vector<8x1xf32>
    %351 = tpu.reciprocal %350 {approx = true} : vector<8x1xf32> -> vector<8x1xf32>
    %352 = arith.mulf %350, %351 : vector<8x1xf32>
    %cst_117 = arith.constant 2.000000e+00 : f32
    %353 = vector.broadcast %cst_117 : f32 to vector<8x1xf32>
    %354 = arith.subf %353, %352 : vector<8x1xf32>
    %355 = arith.mulf %351, %354 : vector<8x1xf32>
    %356 = vector.broadcast %355 : vector<8x1xf32> to vector<8x128xf32>
    %357 = arith.mulf %348, %356 : vector<8x128xf32>
    %358 = arith.index_cast %c0_i32_107 : i32 to index
    %c0_118 = arith.constant 0 : index
    %c0_119 = arith.constant 0 : index
    %359 = vector.load %arg11[%358, %c0_118, %c0_119] : memref<8x8x128xf32, #tpu.memory_space<vmem>>, vector<1x8x128xf32>
    %360 = vector.shape_cast %359 : vector<1x8x128xf32> to vector<8x128xf32>
    %361 = vector.shape_cast %357 : vector<8x128xf32> to vector<1x8x128xf32>
    tpu.vector_store %arg11[%358, %c0_118, %c0_119], %361 {strides = array<i32>} : memref<8x8x128xf32, #tpu.memory_space<vmem>>, vector<1x8x128xf32>,
    %c1_i32_120 = arith.constant 1 : i32
    %362 = arith.index_cast %c1_i32_120 : i32 to index
    %c0_121 = arith.constant 0 : index
    %c0_122 = arith.constant 0 : index
    %363 = vector.load %arg14[%362, %c0_121, %c0_122] : memref<8x8x512xf32, #tpu.memory_space<vmem>>, vector<1x8x512xf32>
    %364 = vector.shape_cast %363 : vector<1x8x512xf32> to vector<8x512xf32>
    %cst_123 = arith.constant dense<0.000000e+00> : vector<8x512xf32>
    %365 = tpu.matmul %341, %307, %cst_123 {dimension_numbers = #tpu.dot_dimension_numbers<[1], [0], [0], [1], [0, 0, 1, 1], [], []>} : vector<8x128xf32>, vector<128x512xf32>, vector<8x512xf32> -> vector<8x512xf32>
    %366 = arith.addf %364, %365 : vector<8x512xf32>
    %367 = vector.extract_strided_slice %366 {offsets = [0, 0], sizes = [8, 128], strides = [1, 1]} : vector<8x512xf32> to vector<8x128xf32>
    %368 = arith.negf %367 : vector<8x128xf32>
    %369 = math.exp %368 : vector<8x128xf32>
    %cst_124 = arith.constant 1.000000e+00 : f32
    %370 = vector.broadcast %cst_124 : f32 to vector<8x128xf32>
    %371 = arith.addf %370, %369 : vector<8x128xf32>
    %372 = arith.divf %370, %371 : vector<8x128xf32>
    %373 = vector.extract_strided_slice %366 {offsets = [0, 128], sizes = [8, 128], strides = [1, 1]} : vector<8x512xf32> to vector<8x128xf32>
    %374 = arith.negf %373 : vector<8x128xf32>
    %375 = math.exp %374 : vector<8x128xf32>
    %cst_125 = arith.constant 1.000000e+00 : f32
    %376 = vector.broadcast %cst_125 : f32 to vector<8x128xf32>
    %377 = arith.addf %376, %375 : vector<8x128xf32>
    %378 = arith.divf %376, %377 : vector<8x128xf32>
    %379 = vector.extract_strided_slice %366 {offsets = [0, 256], sizes = [8, 128], strides = [1, 1]} : vector<8x512xf32> to vector<8x128xf32>
    %380 = math.tanh %379 : vector<8x128xf32>
    %381 = vector.extract_strided_slice %366 {offsets = [0, 384], sizes = [8, 128], strides = [1, 1]} : vector<8x512xf32> to vector<8x128xf32>
    %382 = arith.negf %381 : vector<8x128xf32>
    %383 = math.exp %382 : vector<8x128xf32>
    %cst_126 = arith.constant 1.000000e+00 : f32
    %384 = vector.broadcast %cst_126 : f32 to vector<8x128xf32>
    %385 = arith.addf %384, %383 : vector<8x128xf32>
    %386 = arith.divf %384, %385 : vector<8x128xf32>
    %387 = arith.mulf %378, %339 : vector<8x128xf32>
    %388 = arith.mulf %372, %380 : vector<8x128xf32>
    %389 = arith.addf %387, %388 : vector<8x128xf32>
    %390 = math.tanh %389 : vector<8x128xf32>
    %391 = arith.mulf %386, %390 : vector<8x128xf32>
    %cst_127 = arith.constant -1.000000e+30 : f32
    %392 = vector.broadcast %cst_127 : f32 to vector<8x128xf32>
    %393 = arith.select %5, %391, %392 : vector<8x128xi1>, vector<8x128xf32>
    %cst_128 = arith.constant dense<0xFF800000> : vector<8xf32>
    %394 = vector.multi_reduction <maximumf>, %393, %cst_128 [1] : vector<8x128xf32> to vector<8xf32>
    %395 = vector.shape_cast %394 : vector<8xf32> to vector<8x1xf32>
    %396 = vector.broadcast %395 : vector<8x1xf32> to vector<8x128xf32>
    %397 = arith.subf %393, %396 : vector<8x128xf32>
    %398 = math.exp %397 : vector<8x128xf32>
    %cst_129 = arith.constant dense<0.000000e+00> : vector<8xf32>
    %399 = vector.multi_reduction <add>, %398, %cst_129 [1] : vector<8x128xf32> to vector<8xf32>
    %400 = vector.shape_cast %399 : vector<8xf32> to vector<8x1xf32>
    %401 = tpu.reciprocal %400 {approx = true} : vector<8x1xf32> -> vector<8x1xf32>
    %402 = arith.mulf %400, %401 : vector<8x1xf32>
    %cst_130 = arith.constant 2.000000e+00 : f32
    %403 = vector.broadcast %cst_130 : f32 to vector<8x1xf32>
    %404 = arith.subf %403, %402 : vector<8x1xf32>
    %405 = arith.mulf %401, %404 : vector<8x1xf32>
    %406 = vector.broadcast %405 : vector<8x1xf32> to vector<8x128xf32>
    %407 = arith.mulf %398, %406 : vector<8x128xf32>
    %408 = arith.index_cast %c1_i32_120 : i32 to index
    %c0_131 = arith.constant 0 : index
    %c0_132 = arith.constant 0 : index
    %409 = vector.load %arg11[%408, %c0_131, %c0_132] : memref<8x8x128xf32, #tpu.memory_space<vmem>>, vector<1x8x128xf32>
    %410 = vector.shape_cast %409 : vector<1x8x128xf32> to vector<8x128xf32>
    %411 = vector.shape_cast %407 : vector<8x128xf32> to vector<1x8x128xf32>
    tpu.vector_store %arg11[%408, %c0_131, %c0_132], %411 {strides = array<i32>} : memref<8x8x128xf32, #tpu.memory_space<vmem>>, vector<1x8x128xf32>,
    %c2_i32_133 = arith.constant 2 : i32
    %412 = arith.index_cast %c2_i32_133 : i32 to index
    %c0_134 = arith.constant 0 : index
    %c0_135 = arith.constant 0 : index
    %413 = vector.load %arg14[%412, %c0_134, %c0_135] : memref<8x8x512xf32, #tpu.memory_space<vmem>>, vector<1x8x512xf32>
    %414 = vector.shape_cast %413 : vector<1x8x512xf32> to vector<8x512xf32>
    %cst_136 = arith.constant dense<0.000000e+00> : vector<8x512xf32>
    %415 = tpu.matmul %391, %307, %cst_136 {dimension_numbers = #tpu.dot_dimension_numbers<[1], [0], [0], [1], [0, 0, 1, 1], [], []>} : vector<8x128xf32>, vector<128x512xf32>, vector<8x512xf32> -> vector<8x512xf32>
    %416 = arith.addf %414, %415 : vector<8x512xf32>
    %417 = vector.extract_strided_slice %416 {offsets = [0, 0], sizes = [8, 128], strides = [1, 1]} : vector<8x512xf32> to vector<8x128xf32>
    %418 = arith.negf %417 : vector<8x128xf32>
    %419 = math.exp %418 : vector<8x128xf32>
    %cst_137 = arith.constant 1.000000e+00 : f32
    %420 = vector.broadcast %cst_137 : f32 to vector<8x128xf32>
    %421 = arith.addf %420, %419 : vector<8x128xf32>
    %422 = arith.divf %420, %421 : vector<8x128xf32>
    %423 = vector.extract_strided_slice %416 {offsets = [0, 128], sizes = [8, 128], strides = [1, 1]} : vector<8x512xf32> to vector<8x128xf32>
    %424 = arith.negf %423 : vector<8x128xf32>
    %425 = math.exp %424 : vector<8x128xf32>
    %cst_138 = arith.constant 1.000000e+00 : f32
    %426 = vector.broadcast %cst_138 : f32 to vector<8x128xf32>
    %427 = arith.addf %426, %425 : vector<8x128xf32>
    %428 = arith.divf %426, %427 : vector<8x128xf32>
    %429 = vector.extract_strided_slice %416 {offsets = [0, 256], sizes = [8, 128], strides = [1, 1]} : vector<8x512xf32> to vector<8x128xf32>
    %430 = math.tanh %429 : vector<8x128xf32>
    %431 = vector.extract_strided_slice %416 {offsets = [0, 384], sizes = [8, 128], strides = [1, 1]} : vector<8x512xf32> to vector<8x128xf32>
    %432 = arith.negf %431 : vector<8x128xf32>
    %433 = math.exp %432 : vector<8x128xf32>
    %cst_139 = arith.constant 1.000000e+00 : f32
    %434 = vector.broadcast %cst_139 : f32 to vector<8x128xf32>
    %435 = arith.addf %434, %433 : vector<8x128xf32>
    %436 = arith.divf %434, %435 : vector<8x128xf32>
    %437 = arith.mulf %428, %389 : vector<8x128xf32>
    %438 = arith.mulf %422, %430 : vector<8x128xf32>
    %439 = arith.addf %437, %438 : vector<8x128xf32>
    %440 = math.tanh %439 : vector<8x128xf32>
    %441 = arith.mulf %436, %440 : vector<8x128xf32>
    %cst_140 = arith.constant -1.000000e+30 : f32
    %442 = vector.broadcast %cst_140 : f32 to vector<8x128xf32>
    %443 = arith.select %5, %441, %442 : vector<8x128xi1>, vector<8x128xf32>
    %cst_141 = arith.constant dense<0xFF800000> : vector<8xf32>
    %444 = vector.multi_reduction <maximumf>, %443, %cst_141 [1] : vector<8x128xf32> to vector<8xf32>
    %445 = vector.shape_cast %444 : vector<8xf32> to vector<8x1xf32>
    %446 = vector.broadcast %445 : vector<8x1xf32> to vector<8x128xf32>
    %447 = arith.subf %443, %446 : vector<8x128xf32>
    %448 = math.exp %447 : vector<8x128xf32>
    %cst_142 = arith.constant dense<0.000000e+00> : vector<8xf32>
    %449 = vector.multi_reduction <add>, %448, %cst_142 [1] : vector<8x128xf32> to vector<8xf32>
    %450 = vector.shape_cast %449 : vector<8xf32> to vector<8x1xf32>
    %451 = tpu.reciprocal %450 {approx = true} : vector<8x1xf32> -> vector<8x1xf32>
    %452 = arith.mulf %450, %451 : vector<8x1xf32>
    %cst_143 = arith.constant 2.000000e+00 : f32
    %453 = vector.broadcast %cst_143 : f32 to vector<8x1xf32>
    %454 = arith.subf %453, %452 : vector<8x1xf32>
    %455 = arith.mulf %451, %454 : vector<8x1xf32>
    %456 = vector.broadcast %455 : vector<8x1xf32> to vector<8x128xf32>
    %457 = arith.mulf %448, %456 : vector<8x128xf32>
    %458 = arith.index_cast %c2_i32_133 : i32 to index
    %c0_144 = arith.constant 0 : index
    %c0_145 = arith.constant 0 : index
    %459 = vector.load %arg11[%458, %c0_144, %c0_145] : memref<8x8x128xf32, #tpu.memory_space<vmem>>, vector<1x8x128xf32>
    %460 = vector.shape_cast %459 : vector<1x8x128xf32> to vector<8x128xf32>
    %461 = vector.shape_cast %457 : vector<8x128xf32> to vector<1x8x128xf32>
    tpu.vector_store %arg11[%458, %c0_144, %c0_145], %461 {strides = array<i32>} : memref<8x8x128xf32, #tpu.memory_space<vmem>>, vector<1x8x128xf32>,
    %c3_i32_146 = arith.constant 3 : i32
    %462 = arith.index_cast %c3_i32_146 : i32 to index
    %c0_147 = arith.constant 0 : index
    %c0_148 = arith.constant 0 : index
    %463 = vector.load %arg14[%462, %c0_147, %c0_148] : memref<8x8x512xf32, #tpu.memory_space<vmem>>, vector<1x8x512xf32>
    %464 = vector.shape_cast %463 : vector<1x8x512xf32> to vector<8x512xf32>
    %cst_149 = arith.constant dense<0.000000e+00> : vector<8x512xf32>
    %465 = tpu.matmul %441, %307, %cst_149 {dimension_numbers = #tpu.dot_dimension_numbers<[1], [0], [0], [1], [0, 0, 1, 1], [], []>} : vector<8x128xf32>, vector<128x512xf32>, vector<8x512xf32> -> vector<8x512xf32>
    %466 = arith.addf %464, %465 : vector<8x512xf32>
    %467 = vector.extract_strided_slice %466 {offsets = [0, 0], sizes = [8, 128], strides = [1, 1]} : vector<8x512xf32> to vector<8x128xf32>
    %468 = arith.negf %467 : vector<8x128xf32>
    %469 = math.exp %468 : vector<8x128xf32>
    %cst_150 = arith.constant 1.000000e+00 : f32
    %470 = vector.broadcast %cst_150 : f32 to vector<8x128xf32>
    %471 = arith.addf %470, %469 : vector<8x128xf32>
    %472 = arith.divf %470, %471 : vector<8x128xf32>
    %473 = vector.extract_strided_slice %466 {offsets = [0, 128], sizes = [8, 128], strides = [1, 1]} : vector<8x512xf32> to vector<8x128xf32>
    %474 = arith.negf %473 : vector<8x128xf32>
    %475 = math.exp %474 : vector<8x128xf32>
    %cst_151 = arith.constant 1.000000e+00 : f32
    %476 = vector.broadcast %cst_151 : f32 to vector<8x128xf32>
    %477 = arith.addf %476, %475 : vector<8x128xf32>
    %478 = arith.divf %476, %477 : vector<8x128xf32>
    %479 = vector.extract_strided_slice %466 {offsets = [0, 256], sizes = [8, 128], strides = [1, 1]} : vector<8x512xf32> to vector<8x128xf32>
    %480 = math.tanh %479 : vector<8x128xf32>
    %481 = vector.extract_strided_slice %466 {offsets = [0, 384], sizes = [8, 128], strides = [1, 1]} : vector<8x512xf32> to vector<8x128xf32>
    %482 = arith.negf %481 : vector<8x128xf32>
    %483 = math.exp %482 : vector<8x128xf32>
    %cst_152 = arith.constant 1.000000e+00 : f32
    %484 = vector.broadcast %cst_152 : f32 to vector<8x128xf32>
    %485 = arith.addf %484, %483 : vector<8x128xf32>
    %486 = arith.divf %484, %485 : vector<8x128xf32>
    %487 = arith.mulf %478, %439 : vector<8x128xf32>
    %488 = arith.mulf %472, %480 : vector<8x128xf32>
    %489 = arith.addf %487, %488 : vector<8x128xf32>
    %490 = math.tanh %489 : vector<8x128xf32>
    %491 = arith.mulf %486, %490 : vector<8x128xf32>
    %cst_153 = arith.constant -1.000000e+30 : f32
    %492 = vector.broadcast %cst_153 : f32 to vector<8x128xf32>
    %493 = arith.select %5, %491, %492 : vector<8x128xi1>, vector<8x128xf32>
    %cst_154 = arith.constant dense<0xFF800000> : vector<8xf32>
    %494 = vector.multi_reduction <maximumf>, %493, %cst_154 [1] : vector<8x128xf32> to vector<8xf32>
    %495 = vector.shape_cast %494 : vector<8xf32> to vector<8x1xf32>
    %496 = vector.broadcast %495 : vector<8x1xf32> to vector<8x128xf32>
    %497 = arith.subf %493, %496 : vector<8x128xf32>
    %498 = math.exp %497 : vector<8x128xf32>
    %cst_155 = arith.constant dense<0.000000e+00> : vector<8xf32>
    %499 = vector.multi_reduction <add>, %498, %cst_155 [1] : vector<8x128xf32> to vector<8xf32>
    %500 = vector.shape_cast %499 : vector<8xf32> to vector<8x1xf32>
    %501 = tpu.reciprocal %500 {approx = true} : vector<8x1xf32> -> vector<8x1xf32>
    %502 = arith.mulf %500, %501 : vector<8x1xf32>
    %cst_156 = arith.constant 2.000000e+00 : f32
    %503 = vector.broadcast %cst_156 : f32 to vector<8x1xf32>
    %504 = arith.subf %503, %502 : vector<8x1xf32>
    %505 = arith.mulf %501, %504 : vector<8x1xf32>
    %506 = vector.broadcast %505 : vector<8x1xf32> to vector<8x128xf32>
    %507 = arith.mulf %498, %506 : vector<8x128xf32>
    %508 = arith.index_cast %c3_i32_146 : i32 to index
    %c0_157 = arith.constant 0 : index
    %c0_158 = arith.constant 0 : index
    %509 = vector.load %arg11[%508, %c0_157, %c0_158] : memref<8x8x128xf32, #tpu.memory_space<vmem>>, vector<1x8x128xf32>
    %510 = vector.shape_cast %509 : vector<1x8x128xf32> to vector<8x128xf32>
    %511 = vector.shape_cast %507 : vector<8x128xf32> to vector<1x8x128xf32>
    tpu.vector_store %arg11[%508, %c0_157, %c0_158], %511 {strides = array<i32>} : memref<8x8x128xf32, #tpu.memory_space<vmem>>, vector<1x8x128xf32>,
    %c4_i32_159 = arith.constant 4 : i32
    %512 = arith.index_cast %c4_i32_159 : i32 to index
    %c0_160 = arith.constant 0 : index
    %c0_161 = arith.constant 0 : index
    %513 = vector.load %arg14[%512, %c0_160, %c0_161] : memref<8x8x512xf32, #tpu.memory_space<vmem>>, vector<1x8x512xf32>
    %514 = vector.shape_cast %513 : vector<1x8x512xf32> to vector<8x512xf32>
    %cst_162 = arith.constant dense<0.000000e+00> : vector<8x512xf32>
    %515 = tpu.matmul %491, %307, %cst_162 {dimension_numbers = #tpu.dot_dimension_numbers<[1], [0], [0], [1], [0, 0, 1, 1], [], []>} : vector<8x128xf32>, vector<128x512xf32>, vector<8x512xf32> -> vector<8x512xf32>
    %516 = arith.addf %514, %515 : vector<8x512xf32>
    %517 = vector.extract_strided_slice %516 {offsets = [0, 0], sizes = [8, 128], strides = [1, 1]} : vector<8x512xf32> to vector<8x128xf32>
    %518 = arith.negf %517 : vector<8x128xf32>
    %519 = math.exp %518 : vector<8x128xf32>
    %cst_163 = arith.constant 1.000000e+00 : f32
    %520 = vector.broadcast %cst_163 : f32 to vector<8x128xf32>
    %521 = arith.addf %520, %519 : vector<8x128xf32>
    %522 = arith.divf %520, %521 : vector<8x128xf32>
    %523 = vector.extract_strided_slice %516 {offsets = [0, 128], sizes = [8, 128], strides = [1, 1]} : vector<8x512xf32> to vector<8x128xf32>
    %524 = arith.negf %523 : vector<8x128xf32>
    %525 = math.exp %524 : vector<8x128xf32>
    %cst_164 = arith.constant 1.000000e+00 : f32
    %526 = vector.broadcast %cst_164 : f32 to vector<8x128xf32>
    %527 = arith.addf %526, %525 : vector<8x128xf32>
    %528 = arith.divf %526, %527 : vector<8x128xf32>
    %529 = vector.extract_strided_slice %516 {offsets = [0, 256], sizes = [8, 128], strides = [1, 1]} : vector<8x512xf32> to vector<8x128xf32>
    %530 = math.tanh %529 : vector<8x128xf32>
    %531 = vector.extract_strided_slice %516 {offsets = [0, 384], sizes = [8, 128], strides = [1, 1]} : vector<8x512xf32> to vector<8x128xf32>
    %532 = arith.negf %531 : vector<8x128xf32>
    %533 = math.exp %532 : vector<8x128xf32>
    %cst_165 = arith.constant 1.000000e+00 : f32
    %534 = vector.broadcast %cst_165 : f32 to vector<8x128xf32>
    %535 = arith.addf %534, %533 : vector<8x128xf32>
    %536 = arith.divf %534, %535 : vector<8x128xf32>
    %537 = arith.mulf %528, %489 : vector<8x128xf32>
    %538 = arith.mulf %522, %530 : vector<8x128xf32>
    %539 = arith.addf %537, %538 : vector<8x128xf32>
    %540 = math.tanh %539 : vector<8x128xf32>
    %541 = arith.mulf %536, %540 : vector<8x128xf32>
    %cst_166 = arith.constant -1.000000e+30 : f32
    %542 = vector.broadcast %cst_166 : f32 to vector<8x128xf32>
    %543 = arith.select %5, %541, %542 : vector<8x128xi1>, vector<8x128xf32>
    %cst_167 = arith.constant dense<0xFF800000> : vector<8xf32>
    %544 = vector.multi_reduction <maximumf>, %543, %cst_167 [1] : vector<8x128xf32> to vector<8xf32>
    %545 = vector.shape_cast %544 : vector<8xf32> to vector<8x1xf32>
    %546 = vector.broadcast %545 : vector<8x1xf32> to vector<8x128xf32>
    %547 = arith.subf %543, %546 : vector<8x128xf32>
    %548 = math.exp %547 : vector<8x128xf32>
    %cst_168 = arith.constant dense<0.000000e+00> : vector<8xf32>
    %549 = vector.multi_reduction <add>, %548, %cst_168 [1] : vector<8x128xf32> to vector<8xf32>
    %550 = vector.shape_cast %549 : vector<8xf32> to vector<8x1xf32>
    %551 = tpu.reciprocal %550 {approx = true} : vector<8x1xf32> -> vector<8x1xf32>
    %552 = arith.mulf %550, %551 : vector<8x1xf32>
    %cst_169 = arith.constant 2.000000e+00 : f32
    %553 = vector.broadcast %cst_169 : f32 to vector<8x1xf32>
    %554 = arith.subf %553, %552 : vector<8x1xf32>
    %555 = arith.mulf %551, %554 : vector<8x1xf32>
    %556 = vector.broadcast %555 : vector<8x1xf32> to vector<8x128xf32>
    %557 = arith.mulf %548, %556 : vector<8x128xf32>
    %558 = arith.index_cast %c4_i32_159 : i32 to index
    %c0_170 = arith.constant 0 : index
    %c0_171 = arith.constant 0 : index
    %559 = vector.load %arg11[%558, %c0_170, %c0_171] : memref<8x8x128xf32, #tpu.memory_space<vmem>>, vector<1x8x128xf32>
    %560 = vector.shape_cast %559 : vector<1x8x128xf32> to vector<8x128xf32>
    %561 = vector.shape_cast %557 : vector<8x128xf32> to vector<1x8x128xf32>
    tpu.vector_store %arg11[%558, %c0_170, %c0_171], %561 {strides = array<i32>} : memref<8x8x128xf32, #tpu.memory_space<vmem>>, vector<1x8x128xf32>,
    %c5_i32_172 = arith.constant 5 : i32
    %562 = arith.index_cast %c5_i32_172 : i32 to index
    %c0_173 = arith.constant 0 : index
    %c0_174 = arith.constant 0 : index
    %563 = vector.load %arg14[%562, %c0_173, %c0_174] : memref<8x8x512xf32, #tpu.memory_space<vmem>>, vector<1x8x512xf32>
    %564 = vector.shape_cast %563 : vector<1x8x512xf32> to vector<8x512xf32>
    %cst_175 = arith.constant dense<0.000000e+00> : vector<8x512xf32>
    %565 = tpu.matmul %541, %307, %cst_175 {dimension_numbers = #tpu.dot_dimension_numbers<[1], [0], [0], [1], [0, 0, 1, 1], [], []>} : vector<8x128xf32>, vector<128x512xf32>, vector<8x512xf32> -> vector<8x512xf32>
    %566 = arith.addf %564, %565 : vector<8x512xf32>
    %567 = vector.extract_strided_slice %566 {offsets = [0, 0], sizes = [8, 128], strides = [1, 1]} : vector<8x512xf32> to vector<8x128xf32>
    %568 = arith.negf %567 : vector<8x128xf32>
    %569 = math.exp %568 : vector<8x128xf32>
    %cst_176 = arith.constant 1.000000e+00 : f32
    %570 = vector.broadcast %cst_176 : f32 to vector<8x128xf32>
    %571 = arith.addf %570, %569 : vector<8x128xf32>
    %572 = arith.divf %570, %571 : vector<8x128xf32>
    %573 = vector.extract_strided_slice %566 {offsets = [0, 128], sizes = [8, 128], strides = [1, 1]} : vector<8x512xf32> to vector<8x128xf32>
    %574 = arith.negf %573 : vector<8x128xf32>
    %575 = math.exp %574 : vector<8x128xf32>
    %cst_177 = arith.constant 1.000000e+00 : f32
    %576 = vector.broadcast %cst_177 : f32 to vector<8x128xf32>
    %577 = arith.addf %576, %575 : vector<8x128xf32>
    %578 = arith.divf %576, %577 : vector<8x128xf32>
    %579 = vector.extract_strided_slice %566 {offsets = [0, 256], sizes = [8, 128], strides = [1, 1]} : vector<8x512xf32> to vector<8x128xf32>
    %580 = math.tanh %579 : vector<8x128xf32>
    %581 = vector.extract_strided_slice %566 {offsets = [0, 384], sizes = [8, 128], strides = [1, 1]} : vector<8x512xf32> to vector<8x128xf32>
    %582 = arith.negf %581 : vector<8x128xf32>
    %583 = math.exp %582 : vector<8x128xf32>
    %cst_178 = arith.constant 1.000000e+00 : f32
    %584 = vector.broadcast %cst_178 : f32 to vector<8x128xf32>
    %585 = arith.addf %584, %583 : vector<8x128xf32>
    %586 = arith.divf %584, %585 : vector<8x128xf32>
    %587 = arith.mulf %578, %539 : vector<8x128xf32>
    %588 = arith.mulf %572, %580 : vector<8x128xf32>
    %589 = arith.addf %587, %588 : vector<8x128xf32>
    %590 = math.tanh %589 : vector<8x128xf32>
    %591 = arith.mulf %586, %590 : vector<8x128xf32>
    %cst_179 = arith.constant -1.000000e+30 : f32
    %592 = vector.broadcast %cst_179 : f32 to vector<8x128xf32>
    %593 = arith.select %5, %591, %592 : vector<8x128xi1>, vector<8x128xf32>
    %cst_180 = arith.constant dense<0xFF800000> : vector<8xf32>
    %594 = vector.multi_reduction <maximumf>, %593, %cst_180 [1] : vector<8x128xf32> to vector<8xf32>
    %595 = vector.shape_cast %594 : vector<8xf32> to vector<8x1xf32>
    %596 = vector.broadcast %595 : vector<8x1xf32> to vector<8x128xf32>
    %597 = arith.subf %593, %596 : vector<8x128xf32>
    %598 = math.exp %597 : vector<8x128xf32>
    %cst_181 = arith.constant dense<0.000000e+00> : vector<8xf32>
    %599 = vector.multi_reduction <add>, %598, %cst_181 [1] : vector<8x128xf32> to vector<8xf32>
    %600 = vector.shape_cast %599 : vector<8xf32> to vector<8x1xf32>
    %601 = tpu.reciprocal %600 {approx = true} : vector<8x1xf32> -> vector<8x1xf32>
    %602 = arith.mulf %600, %601 : vector<8x1xf32>
    %cst_182 = arith.constant 2.000000e+00 : f32
    %603 = vector.broadcast %cst_182 : f32 to vector<8x1xf32>
    %604 = arith.subf %603, %602 : vector<8x1xf32>
    %605 = arith.mulf %601, %604 : vector<8x1xf32>
    %606 = vector.broadcast %605 : vector<8x1xf32> to vector<8x128xf32>
    %607 = arith.mulf %598, %606 : vector<8x128xf32>
    %608 = arith.index_cast %c5_i32_172 : i32 to index
    %c0_183 = arith.constant 0 : index
    %c0_184 = arith.constant 0 : index
    %609 = vector.load %arg11[%608, %c0_183, %c0_184] : memref<8x8x128xf32, #tpu.memory_space<vmem>>, vector<1x8x128xf32>
    %610 = vector.shape_cast %609 : vector<1x8x128xf32> to vector<8x128xf32>
    %611 = vector.shape_cast %607 : vector<8x128xf32> to vector<1x8x128xf32>
    tpu.vector_store %arg11[%608, %c0_183, %c0_184], %611 {strides = array<i32>} : memref<8x8x128xf32, #tpu.memory_space<vmem>>, vector<1x8x128xf32>,
    %c6_i32_185 = arith.constant 6 : i32
    %612 = arith.index_cast %c6_i32_185 : i32 to index
    %c0_186 = arith.constant 0 : index
    %c0_187 = arith.constant 0 : index
    %613 = vector.load %arg14[%612, %c0_186, %c0_187] : memref<8x8x512xf32, #tpu.memory_space<vmem>>, vector<1x8x512xf32>
    %614 = vector.shape_cast %613 : vector<1x8x512xf32> to vector<8x512xf32>
    %cst_188 = arith.constant dense<0.000000e+00> : vector<8x512xf32>
    %615 = tpu.matmul %591, %307, %cst_188 {dimension_numbers = #tpu.dot_dimension_numbers<[1], [0], [0], [1], [0, 0, 1, 1], [], []>} : vector<8x128xf32>, vector<128x512xf32>, vector<8x512xf32> -> vector<8x512xf32>
    %616 = arith.addf %614, %615 : vector<8x512xf32>
    %617 = vector.extract_strided_slice %616 {offsets = [0, 0], sizes = [8, 128], strides = [1, 1]} : vector<8x512xf32> to vector<8x128xf32>
    %618 = arith.negf %617 : vector<8x128xf32>
    %619 = math.exp %618 : vector<8x128xf32>
    %cst_189 = arith.constant 1.000000e+00 : f32
    %620 = vector.broadcast %cst_189 : f32 to vector<8x128xf32>
    %621 = arith.addf %620, %619 : vector<8x128xf32>
    %622 = arith.divf %620, %621 : vector<8x128xf32>
    %623 = vector.extract_strided_slice %616 {offsets = [0, 128], sizes = [8, 128], strides = [1, 1]} : vector<8x512xf32> to vector<8x128xf32>
    %624 = arith.negf %623 : vector<8x128xf32>
    %625 = math.exp %624 : vector<8x128xf32>
    %cst_190 = arith.constant 1.000000e+00 : f32
    %626 = vector.broadcast %cst_190 : f32 to vector<8x128xf32>
    %627 = arith.addf %626, %625 : vector<8x128xf32>
    %628 = arith.divf %626, %627 : vector<8x128xf32>
    %629 = vector.extract_strided_slice %616 {offsets = [0, 256], sizes = [8, 128], strides = [1, 1]} : vector<8x512xf32> to vector<8x128xf32>
    %630 = math.tanh %629 : vector<8x128xf32>
    %631 = vector.extract_strided_slice %616 {offsets = [0, 384], sizes = [8, 128], strides = [1, 1]} : vector<8x512xf32> to vector<8x128xf32>
    %632 = arith.negf %631 : vector<8x128xf32>
    %633 = math.exp %632 : vector<8x128xf32>
    %cst_191 = arith.constant 1.000000e+00 : f32
    %634 = vector.broadcast %cst_191 : f32 to vector<8x128xf32>
    %635 = arith.addf %634, %633 : vector<8x128xf32>
    %636 = arith.divf %634, %635 : vector<8x128xf32>
    %637 = arith.mulf %628, %589 : vector<8x128xf32>
    %638 = arith.mulf %622, %630 : vector<8x128xf32>
    %639 = arith.addf %637, %638 : vector<8x128xf32>
    %640 = math.tanh %639 : vector<8x128xf32>
    %641 = arith.mulf %636, %640 : vector<8x128xf32>
    %cst_192 = arith.constant -1.000000e+30 : f32
    %642 = vector.broadcast %cst_192 : f32 to vector<8x128xf32>
    %643 = arith.select %5, %641, %642 : vector<8x128xi1>, vector<8x128xf32>
    %cst_193 = arith.constant dense<0xFF800000> : vector<8xf32>
    %644 = vector.multi_reduction <maximumf>, %643, %cst_193 [1] : vector<8x128xf32> to vector<8xf32>
    %645 = vector.shape_cast %644 : vector<8xf32> to vector<8x1xf32>
    %646 = vector.broadcast %645 : vector<8x1xf32> to vector<8x128xf32>
    %647 = arith.subf %643, %646 : vector<8x128xf32>
    %648 = math.exp %647 : vector<8x128xf32>
    %cst_194 = arith.constant dense<0.000000e+00> : vector<8xf32>
    %649 = vector.multi_reduction <add>, %648, %cst_194 [1] : vector<8x128xf32> to vector<8xf32>
    %650 = vector.shape_cast %649 : vector<8xf32> to vector<8x1xf32>
    %651 = tpu.reciprocal %650 {approx = true} : vector<8x1xf32> -> vector<8x1xf32>
    %652 = arith.mulf %650, %651 : vector<8x1xf32>
    %cst_195 = arith.constant 2.000000e+00 : f32
    %653 = vector.broadcast %cst_195 : f32 to vector<8x1xf32>
    %654 = arith.subf %653, %652 : vector<8x1xf32>
    %655 = arith.mulf %651, %654 : vector<8x1xf32>
    %656 = vector.broadcast %655 : vector<8x1xf32> to vector<8x128xf32>
    %657 = arith.mulf %648, %656 : vector<8x128xf32>
    %658 = arith.index_cast %c6_i32_185 : i32 to index
    %c0_196 = arith.constant 0 : index
    %c0_197 = arith.constant 0 : index
    %659 = vector.load %arg11[%658, %c0_196, %c0_197] : memref<8x8x128xf32, #tpu.memory_space<vmem>>, vector<1x8x128xf32>
    %660 = vector.shape_cast %659 : vector<1x8x128xf32> to vector<8x128xf32>
    %661 = vector.shape_cast %657 : vector<8x128xf32> to vector<1x8x128xf32>
    tpu.vector_store %arg11[%658, %c0_196, %c0_197], %661 {strides = array<i32>} : memref<8x8x128xf32, #tpu.memory_space<vmem>>, vector<1x8x128xf32>,
    %c7_i32_198 = arith.constant 7 : i32
    %662 = arith.index_cast %c7_i32_198 : i32 to index
    %c0_199 = arith.constant 0 : index
    %c0_200 = arith.constant 0 : index
    %663 = vector.load %arg14[%662, %c0_199, %c0_200] : memref<8x8x512xf32, #tpu.memory_space<vmem>>, vector<1x8x512xf32>
    %664 = vector.shape_cast %663 : vector<1x8x512xf32> to vector<8x512xf32>
    %cst_201 = arith.constant dense<0.000000e+00> : vector<8x512xf32>
    %665 = tpu.matmul %641, %307, %cst_201 {dimension_numbers = #tpu.dot_dimension_numbers<[1], [0], [0], [1], [0, 0, 1, 1], [], []>} : vector<8x128xf32>, vector<128x512xf32>, vector<8x512xf32> -> vector<8x512xf32>
    %666 = arith.addf %664, %665 : vector<8x512xf32>
    %667 = vector.extract_strided_slice %666 {offsets = [0, 0], sizes = [8, 128], strides = [1, 1]} : vector<8x512xf32> to vector<8x128xf32>
    %668 = arith.negf %667 : vector<8x128xf32>
    %669 = math.exp %668 : vector<8x128xf32>
    %cst_202 = arith.constant 1.000000e+00 : f32
    %670 = vector.broadcast %cst_202 : f32 to vector<8x128xf32>
    %671 = arith.addf %670, %669 : vector<8x128xf32>
    %672 = arith.divf %670, %671 : vector<8x128xf32>
    %673 = vector.extract_strided_slice %666 {offsets = [0, 128], sizes = [8, 128], strides = [1, 1]} : vector<8x512xf32> to vector<8x128xf32>
    %674 = arith.negf %673 : vector<8x128xf32>
    %675 = math.exp %674 : vector<8x128xf32>
    %cst_203 = arith.constant 1.000000e+00 : f32
    %676 = vector.broadcast %cst_203 : f32 to vector<8x128xf32>
    %677 = arith.addf %676, %675 : vector<8x128xf32>
    %678 = arith.divf %676, %677 : vector<8x128xf32>
    %679 = vector.extract_strided_slice %666 {offsets = [0, 256], sizes = [8, 128], strides = [1, 1]} : vector<8x512xf32> to vector<8x128xf32>
    %680 = math.tanh %679 : vector<8x128xf32>
    %681 = vector.extract_strided_slice %666 {offsets = [0, 384], sizes = [8, 128], strides = [1, 1]} : vector<8x512xf32> to vector<8x128xf32>
    %682 = arith.negf %681 : vector<8x128xf32>
    %683 = math.exp %682 : vector<8x128xf32>
    %cst_204 = arith.constant 1.000000e+00 : f32
    %684 = vector.broadcast %cst_204 : f32 to vector<8x128xf32>
    %685 = arith.addf %684, %683 : vector<8x128xf32>
    %686 = arith.divf %684, %685 : vector<8x128xf32>
    %687 = arith.mulf %678, %639 : vector<8x128xf32>
    %688 = arith.mulf %672, %680 : vector<8x128xf32>
    %689 = arith.addf %687, %688 : vector<8x128xf32>
    %690 = math.tanh %689 : vector<8x128xf32>
    %691 = arith.mulf %686, %690 : vector<8x128xf32>
    %cst_205 = arith.constant -1.000000e+30 : f32
    %692 = vector.broadcast %cst_205 : f32 to vector<8x128xf32>
    %693 = arith.select %5, %691, %692 : vector<8x128xi1>, vector<8x128xf32>
    %cst_206 = arith.constant dense<0xFF800000> : vector<8xf32>
    %694 = vector.multi_reduction <maximumf>, %693, %cst_206 [1] : vector<8x128xf32> to vector<8xf32>
    %695 = vector.shape_cast %694 : vector<8xf32> to vector<8x1xf32>
    %696 = vector.broadcast %695 : vector<8x1xf32> to vector<8x128xf32>
    %697 = arith.subf %693, %696 : vector<8x128xf32>
    %698 = math.exp %697 : vector<8x128xf32>
    %cst_207 = arith.constant dense<0.000000e+00> : vector<8xf32>
    %699 = vector.multi_reduction <add>, %698, %cst_207 [1] : vector<8x128xf32> to vector<8xf32>
    %700 = vector.shape_cast %699 : vector<8xf32> to vector<8x1xf32>
    %701 = tpu.reciprocal %700 {approx = true} : vector<8x1xf32> -> vector<8x1xf32>
    %702 = arith.mulf %700, %701 : vector<8x1xf32>
    %cst_208 = arith.constant 2.000000e+00 : f32
    %703 = vector.broadcast %cst_208 : f32 to vector<8x1xf32>
    %704 = arith.subf %703, %702 : vector<8x1xf32>
    %705 = arith.mulf %701, %704 : vector<8x1xf32>
    %706 = vector.broadcast %705 : vector<8x1xf32> to vector<8x128xf32>
    %707 = arith.mulf %698, %706 : vector<8x128xf32>
    %708 = arith.index_cast %c7_i32_198 : i32 to index
    %c0_209 = arith.constant 0 : index
    %c0_210 = arith.constant 0 : index
    %709 = vector.load %arg11[%708, %c0_209, %c0_210] : memref<8x8x128xf32, #tpu.memory_space<vmem>>, vector<1x8x128xf32>
    %710 = vector.shape_cast %709 : vector<1x8x128xf32> to vector<8x128xf32>
    %711 = vector.shape_cast %707 : vector<8x128xf32> to vector<1x8x128xf32>
    tpu.vector_store %arg11[%708, %c0_209, %c0_210], %711 {strides = array<i32>} : memref<8x8x128xf32, #tpu.memory_space<vmem>>, vector<1x8x128xf32>,
    %c8_i32_211 = arith.constant 8 : i32
    %c1_212 = arith.constant 1 : index
    %c0_213 = arith.constant 0 : index
    %c0_214 = arith.constant 0 : index
    %712 = vector.load %arg16[%c1_212, %c0_213, %c0_214] : memref<2x8x128xf32, #tpu.memory_space<vmem>>, vector<1x8x128xf32>
    %713 = vector.shape_cast %712 : vector<1x8x128xf32> to vector<8x128xf32>
    %714 = vector.shape_cast %691 : vector<8x128xf32> to vector<1x8x128xf32>
    tpu.vector_store %arg16[%c1_212, %c0_213, %c0_214], %714 {strides = array<i32>} : memref<2x8x128xf32, #tpu.memory_space<vmem>>, vector<1x8x128xf32>,
    %c1_215 = arith.constant 1 : index
    %c0_216 = arith.constant 0 : index
    %c0_217 = arith.constant 0 : index
    %715 = vector.load %arg17[%c1_215, %c0_216, %c0_217] : memref<2x8x128xf32, #tpu.memory_space<vmem>>, vector<1x8x128xf32>
    %716 = vector.shape_cast %715 : vector<1x8x128xf32> to vector<8x128xf32>
    %717 = vector.shape_cast %689 : vector<8x128xf32> to vector<1x8x128xf32>
    tpu.vector_store %arg17[%c1_215, %c0_216, %c0_217], %717 {strides = array<i32>} : memref<2x8x128xf32, #tpu.memory_space<vmem>>, vector<1x8x128xf32>,
    %c0_i32_218 = arith.constant 0 : i32
    %718 = arith.cmpi eq, %arg1, %c0_i32_218 : i32
    %719 = arith.extui %718 : i1 to i32
    %c0_i32_219 = arith.constant 0 : i32
    %720 = arith.cmpi ne, %719, %c0_i32_219 : i32
    scf.if %720 {
      %c0_220 = arith.constant 0 : index
      %c0_221 = arith.constant 0 : index
      %c0_222 = arith.constant 0 : index
      %721 = vector.load %arg16[%c0_220, %c0_221, %c0_222] : memref<2x8x128xf32, #tpu.memory_space<vmem>>, vector<2x8x128xf32>
      %c0_223 = arith.constant 0 : index
      %c0_224 = arith.constant 0 : index
      %c0_225 = arith.constant 0 : index
      %722 = vector.load %arg12[%c0_223, %c0_224, %c0_225] : memref<2x8x128xf32, #tpu.memory_space<vmem>>, vector<2x8x128xf32>
      tpu.vector_store %arg12[%c0_223, %c0_224, %c0_225], %721 {strides = array<i32>} : memref<2x8x128xf32, #tpu.memory_space<vmem>>, vector<2x8x128xf32>,
      %c0_226 = arith.constant 0 : index
      %c0_227 = arith.constant 0 : index
      %c0_228 = arith.constant 0 : index
      %723 = vector.load %arg17[%c0_226, %c0_227, %c0_228] : memref<2x8x128xf32, #tpu.memory_space<vmem>>, vector<2x8x128xf32>
      %c0_229 = arith.constant 0 : index
      %c0_230 = arith.constant 0 : index
      %c0_231 = arith.constant 0 : index
      %724 = vector.load %arg13[%c0_229, %c0_230, %c0_231] : memref<2x8x128xf32, #tpu.memory_space<vmem>>, vector<2x8x128xf32>
      tpu.vector_store %arg13[%c0_229, %c0_230, %c0_231], %723 {strides = array<i32>} : memref<2x8x128xf32, #tpu.memory_space<vmem>>, vector<2x8x128xf32>,
    } else {
    }
    return
  }
  func.func @transform_0(%arg0: i32, %arg1: i32) -> (i32, i32, i32) {
    %c0_i32 = arith.constant 0 : i32
    %c0_i32_0 = arith.constant 0 : i32
    return %arg1, %arg0, %c0_i32 : i32, i32, i32
  }
  func.func @transform_1(%arg0: i32, %arg1: i32) -> (i32, i32) {
    %c0_i32 = arith.constant 0 : i32
    %c0_i32_0 = arith.constant 0 : i32
    %c0_i32_1 = arith.constant 0 : i32
    return %c0_i32, %c0_i32_0 : i32, i32
  }
  func.func @transform_2(%arg0: i32, %arg1: i32) -> (i32, i32) {
    %c0_i32 = arith.constant 0 : i32
    %c0_i32_0 = arith.constant 0 : i32
    %c0_i32_1 = arith.constant 0 : i32
    return %c0_i32, %c0_i32_0 : i32, i32
  }
  func.func @transform_3(%arg0: i32, %arg1: i32) -> (i32, i32) {
    %c0_i32 = arith.constant 0 : i32
    %c0_i32_0 = arith.constant 0 : i32
    %c0_i32_1 = arith.constant 0 : i32
    return %c0_i32, %c0_i32_0 : i32, i32
  }
  func.func @transform_4(%arg0: i32, %arg1: i32) -> (i32, i32) {
    %c0_i32 = arith.constant 0 : i32
    %c0_i32_0 = arith.constant 0 : i32
    %c0_i32_1 = arith.constant 0 : i32
    return %c0_i32, %c0_i32_0 : i32, i32
  }
  func.func @transform_5(%arg0: i32, %arg1: i32) -> (i32, i32) {
    %c0_i32 = arith.constant 0 : i32
    %c0_i32_0 = arith.constant 0 : i32
    %c0_i32_1 = arith.constant 0 : i32
    return %c0_i32, %c0_i32_0 : i32, i32
  }
  func.func @transform_6(%arg0: i32, %arg1: i32) -> (i32, i32) {
    %c0_i32 = arith.constant 0 : i32
    %c0_i32_0 = arith.constant 0 : i32
    %c0_i32_1 = arith.constant 0 : i32
    return %c0_i32, %c0_i32_0 : i32, i32
  }
  func.func @transform_7(%arg0: i32, %arg1: i32) -> (i32, i32, i32) {
    %c0_i32 = arith.constant 0 : i32
    %c0_i32_0 = arith.constant 0 : i32
    %c0_i32_1 = arith.constant 0 : i32
    return %c0_i32, %arg0, %c0_i32_0 : i32, i32, i32
  }
  func.func @transform_8(%arg0: i32, %arg1: i32) -> (i32, i32, i32) {
    %c0_i32 = arith.constant 0 : i32
    %c0_i32_0 = arith.constant 0 : i32
    %c0_i32_1 = arith.constant 0 : i32
    return %c0_i32, %arg0, %c0_i32_0 : i32, i32, i32
  }
  func.func @transform_9(%arg0: i32, %arg1: i32) -> (i32, i32, i32) {
    %c0_i32 = arith.constant 0 : i32
    %c0_i32_0 = arith.constant 0 : i32
    return %arg1, %arg0, %c0_i32 : i32, i32, i32
  }
  func.func @transform_10(%arg0: i32, %arg1: i32) -> (i32, i32, i32) {
    %c0_i32 = arith.constant 0 : i32
    %c0_i32_0 = arith.constant 0 : i32
    %c0_i32_1 = arith.constant 0 : i32
    return %c0_i32, %arg0, %c0_i32_0 : i32, i32, i32
  }
  func.func @transform_11(%arg0: i32, %arg1: i32) -> (i32, i32, i32) {
    %c0_i32 = arith.constant 0 : i32
    %c0_i32_0 = arith.constant 0 : i32
    %c0_i32_1 = arith.constant 0 : i32
    return %c0_i32, %arg0, %c0_i32_0 : i32, i32, i32
  }
}

</mosaic_0001>

<llo_original>
// kernel: tpu_custom_call.1
$region0: #{tpu_custom_call.1}
  #allocation0 [shape = 'u32[]', space=smem, size = 0x4, offset = 0x4, fixed_abs, tag = 'smem constant byte address 0x4 - core index']
  #allocation1 [shape = 'u32[144,128]{1,0:T(1,128)}', space=vmem, size = 0x12000, scoped, tag = 'internal scratch']
  #allocation2 [shape = 'f32[8,8,512]{2,1,0:T(8,128)}', space=vmem, size = 0x20000, scoped, tag = 'scratch operand']
  #allocation3 [shape = 'f32[8,8,128]{2,1,0:T(8,128)}', space=vmem, size = 0x8000, scoped, tag = 'scratch operand']
  #allocation4 [shape = 'f32[2,8,128]{2,1,0:T(8,128)}', space=vmem, size = 0x2000, scoped, tag = 'scratch operand']
  #allocation5 [shape = 'f32[2,8,128]{2,1,0:T(8,128)}', space=vmem, size = 0x2000, scoped, tag = 'scratch operand']
  %s0 = inlined_call_operand.hbm [shape: f32[8,8,128], index: 0, kind: input, shape index: {}]
  %s1 = inlined_call_operand.hbm [shape: f32[128,512], index: 1, kind: input, shape index: {}]
  %s2 = inlined_call_operand.hbm [shape: f32[128,512], index: 2, kind: input, shape index: {}]
  %s3 = inlined_call_operand.vmem [shape: f32[1,512], index: 3, kind: input, shape index: {}]
  %s4 = inlined_call_operand.hbm [shape: f32[128,512], index: 4, kind: input, shape index: {}]
  %s5 = inlined_call_operand.hbm [shape: f32[128,512], index: 5, kind: input, shape index: {}]
  %s6 = inlined_call_operand.vmem [shape: f32[1,512], index: 6, kind: input, shape index: {}]
  %s7 = inlined_call_operand.vmem [shape: f32[2,8,128], index: 7, kind: input, shape index: {}]
  %s8 = inlined_call_operand.hbm [shape: f32[2,8,128], index: 8, kind: input, shape index: {}]
  %s9 = inlined_call_operand.hbm [shape: f32[8,8,128], index: 9, kind: output, shape index: {0}]
  %s10 = inlined_call_operand.hbm [shape: f32[2,8,128], index: 10, kind: output, shape index: {1}]
  %s11 = inlined_call_operand.hbm [shape: f32[2,8,128], index: 11, kind: output, shape index: {2}]
  %12 = xla_tuple %s9, %s10, %s11
  %s13 = sld [smem:[#allocation0]]
  $region94: #{tpu_custom_call.1} parent=0
    _
  %s15 = ssub.s32 1, %s13
  %s16 = scalar_select 0, %s15, %s13
  $region1: #{tpu_custom_call.1} parent=0
    #allocation6 [shape = 'u8[32768]{0}', space=vmem, size = 0x8000, scoped, tag = 'input window, operand 0, single buffered']
    #allocation7 [shape = 's32[1]{0}', space=sflag, size = 0x4, scoped, tag = 'scoped memory for tpu_custom_call.1']
    #allocation8 [shape = 's32[1]{0}', space=sflag, size = 0x4, scoped, tag = 'scoped memory for tpu_custom_call.1']
    #allocation9 [shape = 'u8[262144]{0}', space=vmem, size = 0x40000, scoped, tag = 'input window, operand 1, single buffered']
    #allocation10 [shape = 's32[1]{0}', space=sflag, size = 0x4, scoped, tag = 'scoped memory for tpu_custom_call.1']
    #allocation11 [shape = 'u8[262144]{0}', space=vmem, size = 0x40000, scoped, tag = 'input window, operand 2, single buffered']
    #allocation12 [shape = 'u8[262144]{0}', space=vmem, size = 0x40000, scoped, tag = 'input window, operand 4, single buffered']
    #allocation13 [shape = 's32[1]{0}', space=sflag, size = 0x4, scoped, tag = 'scoped memory for tpu_custom_call.1']
    #allocation14 [shape = 'u8[262144]{0}', space=vmem, size = 0x40000, scoped, tag = 'input window, operand 5, single buffered']
    #allocation15 [shape = 'u8[8192]{0}', space=vmem, size = 0x2000, scoped, tag = 'input window, operand 8, single buffered']
    #allocation16 [shape = 's32[1]{0}', space=sflag, size = 0x4, scoped, tag = 'scoped memory for tpu_custom_call.1']
    #allocation17 [shape = 'u8[32768]{0}', space=vmem, size = 0x8000, scoped, tag = 'output window, operand 0, single buffered']
    #allocation18 [shape = 'u8[8192]{0}', space=vmem, size = 0x2000, scoped, tag = 'output window, operand 1, single buffered']
    #allocation19 [shape = 's32[1]{0}', space=sflag, size = 0x4, scoped, tag = 'scoped memory for tpu_custom_call.1']
    #allocation20 [shape = 'u8[8192]{0}', space=vmem, size = 0x2000, scoped, tag = 'output window, operand 2, single buffered']
    %17 = vsyncpa [#allocation7], 0
    %18 = vsyncpa [#allocation10], 0
    %19 = vsyncpa [#allocation13], 0
    %20 = vsyncpa [#allocation16], 0
    %21 = vsyncpa [#allocation8], 0
    %22 = vsyncpa [#allocation19], 0
    // Predicated region
    $region2: #{tpu_custom_call.1} parent=1 // pred_check
      _
    $region3: #{tpu_custom_call.1} parent=1 // pred_check_branch
      %24 = sbr.rel (0) target = $region5
    $region4: #{tpu_custom_call.1} parent=1 // pred_region
      %s26 = ssub.s32 1024, 1024
      %27 = vsyncadd [#allocation7], %s26
      %s28 = sshll.u32 [#allocation6], 4
      %s29 = int_to_ptr.vmem [resolvable:$true] %s28
      %34 = dma.hbm_to_vmem [thread:$0]  %s0, 1024, %s29, [#allocation7], 128, 128, 8
    $region5: #{tpu_custom_call.1} parent=1 // pred_fallthru
      _
    // Predicated region
    $region6: #{tpu_custom_call.1} parent=1 // pred_check
      _
    $region7: #{tpu_custom_call.1} parent=1 // pred_check_branch
      %36 = sbr.rel (0) target = $region9
    $region8: #{tpu_custom_call.1} parent=1 // pred_region
      %s38 = ssub.s32 8192, 8192
      %39 = vsyncadd [#allocation10], %s38
      %s40 = sshll.u32 [#allocation9], 4
      %s41 = int_to_ptr.vmem [resolvable:$true] %s40
      %46 = dma.hbm_to_vmem [thread:$0]  %s1, 8192, %s41, [#allocation10], 512, 512, 32
    $region9: #{tpu_custom_call.1} parent=1 // pred_fallthru
      _
    // Predicated region
    $region10: #{tpu_custom_call.1} parent=1 // pred_check
      _
    $region11: #{tpu_custom_call.1} parent=1 // pred_check_branch
      %48 = sbr.rel (0) target = $region13
    $region12: #{tpu_custom_call.1} parent=1 // pred_region
      %s50 = ssub.s32 8192, 8192
      %51 = vsyncadd [#allocation10], %s50
      %s52 = sshll.u32 [#allocation11], 4
      %s53 = int_to_ptr.vmem [resolvable:$true] %s52
      %58 = dma.hbm_to_vmem [thread:$0]  %s2, 8192, %s53, [#allocation10], 512, 512, 32
    $region13: #{tpu_custom_call.1} parent=1 // pred_fallthru
      _
    // Predicated region
    $region14: #{tpu_custom_call.1} parent=1 // pred_check
      _
    $region15: #{tpu_custom_call.1} parent=1 // pred_check_branch
      %60 = sbr.rel (0) target = $region17
    $region16: #{tpu_custom_call.1} parent=1 // pred_region
      _
    $region17: #{tpu_custom_call.1} parent=1 // pred_fallthru
      _
    // Predicated region
    $region18: #{tpu_custom_call.1} parent=1 // pred_check
      _
    $region19: #{tpu_custom_call.1} parent=1 // pred_check_branch
      %62 = sbr.rel (0) target = $region21
    $region20: #{tpu_custom_call.1} parent=1 // pred_region
      %s64 = ssub.s32 8192, 8192
      %65 = vsyncadd [#allocation13], %s64
      %s66 = sshll.u32 [#allocation12], 4
      %s67 = int_to_ptr.vmem [resolvable:$true] %s66
      %72 = dma.hbm_to_vmem [thread:$0]  %s4, 8192, %s67, [#allocation13], 512, 512, 32
    $region21: #{tpu_custom_call.1} parent=1 // pred_fallthru
      _
    // Predicated region
    $region22: #{tpu_custom_call.1} parent=1 // pred_check
      _
    $region23: #{tpu_custom_call.1} parent=1 // pred_check_branch
      %74 = sbr.rel (0) target = $region25
    $region24: #{tpu_custom_call.1} parent=1 // pred_region
      %s76 = ssub.s32 8192, 8192
      %77 = vsyncadd [#allocation13], %s76
      %s78 = sshll.u32 [#allocation14], 4
      %s79 = int_to_ptr.vmem [resolvable:$true] %s78
      %84 = dma.hbm_to_vmem [thread:$0]  %s5, 8192, %s79, [#allocation13], 512, 512, 32
    $region25: #{tpu_custom_call.1} parent=1 // pred_fallthru
      _
    // Predicated region
    $region26: #{tpu_custom_call.1} parent=1 // pred_check
      _
    $region27: #{tpu_custom_call.1} parent=1 // pred_check_branch
      %86 = sbr.rel (0) target = $region29
    $region28: #{tpu_custom_call.1} parent=1 // pred_region
      _
    $region29: #{tpu_custom_call.1} parent=1 // pred_fallthru
      _
    // Predicated region
    $region30: #{tpu_custom_call.1} parent=1 // pred_check
      _
    $region31: #{tpu_custom_call.1} parent=1 // pred_check_branch
      %88 = sbr.rel (0) target = $region33
    $region32: #{tpu_custom_call.1} parent=1 // pred_region
      _
    $region33: #{tpu_custom_call.1} parent=1 // pred_fallthru
      _
    // Predicated region
    $region34: #{tpu_custom_call.1} parent=1 // pred_check
      _
    $region35: #{tpu_custom_call.1} parent=1 // pred_check_branch
      %90 = sbr.rel (0) target = $region37
    $region36: #{tpu_custom_call.1} parent=1 // pred_region
      %s92 = ssub.s32 256, 256
      %93 = vsyncadd [#allocation16], %s92
      %s94 = sshll.u32 [#allocation15], 4
      %s95 = int_to_ptr.vmem [resolvable:$true] %s94
      %100 = dma.hbm_to_vmem [thread:$0]  %s8, 256, %s95, [#allocation16], 128, 128, 8
    $region37: #{tpu_custom_call.1} parent=1 // pred_fallthru
      _
    // Predicated region
    $region38: #{tpu_custom_call.1} parent=1 // pred_check
      _
    $region39: #{tpu_custom_call.1} parent=1 // pred_check_branch
      %102 = sbr.rel (0) target = $region41
    $region40: #{tpu_custom_call.1} parent=1 // pred_region
      %103 = dma.done [#allocation7], 1024
    $region41: #{tpu_custom_call.1} parent=1 // pred_fallthru
      _
    // Predicated region
    $region42: #{tpu_custom_call.1} parent=1 // pred_check
      _
    $region43: #{tpu_custom_call.1} parent=1 // pred_check_branch
      %105 = sbr.rel (0) target = $region45
    $region44: #{tpu_custom_call.1} parent=1 // pred_region
      %106 = dma.done [#allocation10], 8192
    $region45: #{tpu_custom_call.1} parent=1 // pred_fallthru
      _
    // Predicated region
    $region46: #{tpu_custom_call.1} parent=1 // pred_check
      _
    $region47: #{tpu_custom_call.1} parent=1 // pred_check_branch
      %108 = sbr.rel (0) target = $region49
    $region48: #{tpu_custom_call.1} parent=1 // pred_region
      %109 = dma.done [#allocation10], 8192
    $region49: #{tpu_custom_call.1} parent=1 // pred_fallthru
      _
    // Predicated region
    $region50: #{tpu_custom_call.1} parent=1 // pred_check
      _
    $region51: #{tpu_custom_call.1} parent=1 // pred_check_branch
      %111 = sbr.rel (0) target = $region53
    $region52: #{tpu_custom_call.1} parent=1 // pred_region
      %112 = dma.done [#allocation13], 8192
    $region53: #{tpu_custom_call.1} parent=1 // pred_fallthru
      _
    // Predicated region
    $region54: #{tpu_custom_call.1} parent=1 // pred_check
      _
    $region55: #{tpu_custom_call.1} parent=1 // pred_check_branch
      %114 = sbr.rel (0) target = $region57
    $region56: #{tpu_custom_call.1} parent=1 // pred_region
      %115 = dma.done [#allocation13], 8192
    $region57: #{tpu_custom_call.1} parent=1 // pred_fallthru
      _
    // Predicated region
    $region58: #{tpu_custom_call.1} parent=1 // pred_check
      _
    $region59: #{tpu_custom_call.1} parent=1 // pred_check_branch
      %117 = sbr.rel (0) target = $region61
    $region60: #{tpu_custom_call.1} parent=1 // pred_region
      %118 = dma.done [#allocation16], 256
    $region61: #{tpu_custom_call.1} parent=1 // pred_fallthru
      _
    %p119 = scmp.eq.s32.totalorder 0, 0
    // Predicated region
    $region62: #{tpu_custom_call.1} parent=1 // pred_check
      %p120 = pneg %p119
    $region63: #{tpu_custom_call.1} parent=1 // pred_check_branch
      %122 = sbr.rel (%p120) target = $region65
    $region64: #{tpu_custom_call.1} parent=1 // pred_region
      %v123 = vld [vmem:[%s7] sm:$0xff]
      %v124 = vld [vmem:[%s7 + $0x8] sm:$0xff]
      %125 = vst [vmem:[#allocation4] sm:$0xff] %v123
      %126 = vst [vmem:[#allocation4 + $0x8] sm:$0xff] %v124
      %v127 = vld [vmem:[#allocation15] sm:$0xff]
      %v128 = vld [vmem:[#allocation15 + $0x8] sm:$0xff]
      %129 = vst [vmem:[#allocation5] sm:$0xff] %v127
      %130 = vst [vmem:[#allocation5 + $0x8] sm:$0xff] %v128
    $region65: #{tpu_custom_call.1} parent=1 // pred_fallthru
      _
    %v131 = vlaneseq
    %v132 = vand.u32 %v131, 127
    %vm133 = vcmp.lt.s32.totalorder %v132, 32
    %v134 = vld [vmem:[#allocation6] sm:$0xff]
    %v135 = vld [vmem:[#allocation6 + $0x8] sm:$0xff]
    %v136 = vld [vmem:[#allocation6 + $0x10] sm:$0xff]
    %v137 = vld [vmem:[#allocation6 + $0x18] sm:$0xff]
    %v138 = vld [vmem:[#allocation6 + $0x20] sm:$0xff]
    %v139 = vld [vmem:[#allocation6 + $0x28] sm:$0xff]
    %v140 = vld [vmem:[#allocation6 + $0x30] sm:$0xff]
    %v141 = vld [vmem:[#allocation6 + $0x38] sm:$0xff]
    %v142 = vld [vmem:[#allocation9] sm:$0xff]
    %v143 = vld [vmem:[#allocation9 + $0x8] sm:$0xff]
    %v144 = vld [vmem:[#allocation9 + $0x10] sm:$0xff]
    %v145 = vld [vmem:[#allocation9 + $0x18] sm:$0xff]
    %v146 = vld [vmem:[#allocation9 + $0x20] sm:$0xff]
    %v147 = vld [vmem:[#allocation9 + $0x28] sm:$0xff]
    %v148 = vld [vmem:[#allocation9 + $0x30] sm:$0xff]
    %v149 = vld [vmem:[#allocation9 + $0x38] sm:$0xff]
    %v150 = vld [vmem:[#allocation9 + $0x40] sm:$0xff]
    %v151 = vld [vmem:[#allocation9 + $0x48] sm:$0xff]
    %v152 = vld [vmem:[#allocation9 + $0x50] sm:$0xff]
    %v153 = vld [vmem:[#allocation9 + $0x58] sm:$0xff]
    %v154 = vld [vmem:[#allocation9 + $0x60] sm:$0xff]
    %v155 = vld [vmem:[#allocation9 + $0x68] sm:$0xff]
    %v156 = vld [vmem:[#allocation9 + $0x70] sm:$0xff]
    %v157 = vld [vmem:[#allocation9 + $0x78] sm:$0xff]
    %v158 = vld [vmem:[#allocation9 + $0x80] sm:$0xff]
    %v159 = vld [vmem:[#allocation9 + $0x88] sm:$0xff]
    %v160 = vld [vmem:[#allocation9 + $0x90] sm:$0xff]
    %v161 = vld [vmem:[#allocation9 + $0x98] sm:$0xff]
    %v162 = vld [vmem:[#allocation9 + $0xa0] sm:$0xff]
    %v163 = vld [vmem:[#allocation9 + $0xa8] sm:$0xff]
    %v164 = vld [vmem:[#allocation9 + $0xb0] sm:$0xff]
    %v165 = vld [vmem:[#allocation9 + $0xb8] sm:$0xff]
    %v166 = vld [vmem:[#allocation9 + $0xc0] sm:$0xff]
    %v167 = vld [vmem:[#allocation9 + $0xc8] sm:$0xff]
    %v168 = vld [vmem:[#allocation9 + $0xd0] sm:$0xff]
    %v169 = vld [vmem:[#allocation9 + $0xd8] sm:$0xff]
    %v170 = vld [vmem:[#allocation9 + $0xe0] sm:$0xff]
    %v171 = vld [vmem:[#allocation9 + $0xe8] sm:$0xff]
    %v172 = vld [vmem:[#allocation9 + $0xf0] sm:$0xff]
    %v173 = vld [vmem:[#allocation9 + $0xf8] sm:$0xff]
    %v174 = vld [vmem:[#allocation9 + $0x100] sm:$0xff]
    %v175 = vld [vmem:[#allocation9 + $0x108] sm:$0xff]
    %v176 = vld [vmem:[#allocation9 + $0x110] sm:$0xff]
    %v177 = vld [vmem:[#allocation9 + $0x118] sm:$0xff]
    %v178 = vld [vmem:[#allocation9 + $0x120] sm:$0xff]
    %v179 = vld [vmem:[#allocation9 + $0x128] sm:$0xff]
    %v180 = vld [vmem:[#allocation9 + $0x130] sm:$0xff]
    %v181 = vld [vmem:[#allocation9 + $0x138] sm:$0xff]
    %v182 = vld [vmem:[#allocation9 + $0x140] sm:$0xff]
    %v183 = vld [vmem:[#allocation9 + $0x148] sm:$0xff]
    %v184 = vld [vmem:[#allocation9 + $0x150] sm:$0xff]
    %v185 = vld [vmem:[#allocation9 + $0x158] sm:$0xff]
    %v186 = vld [vmem:[#allocation9 + $0x160] sm:$0xff]
    %v187 = vld [vmem:[#allocation9 + $0x168] sm:$0xff]
    %v188 = vld [vmem:[#allocation9 + $0x170] sm:$0xff]
    %v189 = vld [vmem:[#allocation9 + $0x178] sm:$0xff]
    %v190 = vld [vmem:[#allocation9 + $0x180] sm:$0xff]
    %v191 = vld [vmem:[#allocation9 + $0x188] sm:$0xff]
    %v192 = vld [vmem:[#allocation9 + $0x190] sm:$0xff]
    %v193 = vld [vmem:[#allocation9 + $0x198] sm:$0xff]
    %v194 = vld [vmem:[#allocation9 + $0x1a0] sm:$0xff]
    %v195 = vld [vmem:[#allocation9 + $0x1a8] sm:$0xff]
    %v196 = vld [vmem:[#allocation9 + $0x1b0] sm:$0xff]
    %v197 = vld [vmem:[#allocation9 + $0x1b8] sm:$0xff]
    %v198 = vld [vmem:[#allocation9 + $0x1c0] sm:$0xff]
    %v199 = vld [vmem:[#allocation9 + $0x1c8] sm:$0xff]
    %v200 = vld [vmem:[#allocation9 + $0x1d0] sm:$0xff]
    %v201 = vld [vmem:[#allocation9 + $0x1d8] sm:$0xff]
    %v202 = vld [vmem:[#allocation9 + $0x1e0] sm:$0xff]
    %v203 = vld [vmem:[#allocation9 + $0x1e8] sm:$0xff]
    %v204 = vld [vmem:[#allocation9 + $0x1f0] sm:$0xff]
    %v205 = vld [vmem:[#allocation9 + $0x1f8] sm:$0xff]
    %v206 = vld [vmem:[%s3] sm:$0xf]
    %v208 = vlaneseq
    %v209 = vshrl.u32 %v208, 7
    %v210 = vsub.s32 0, %v209
    %v211 = vrot.slane %v206, %v210
    %v212 = vlaneseq
    %v213 = vshrl.u32 %v212, 7
    %v214 = vsub.s32 1, %v213
    %v215 = vrot.slane %v206, %v214
    %v216 = vlaneseq
    %v217 = vshrl.u32 %v216, 7
    %v218 = vsub.s32 2, %v217
    %v219 = vrot.slane %v206, %v218
    %v220 = vlaneseq
    %v221 = vshrl.u32 %v220, 7
    %v222 = vsub.s32 3, %v221
    %v223 = vrot.slane %v206, %v222
    %228 = vmatprep.subr.mxu0 %v143
    %229 = vmatpush1.msra.mxu0 %v142
    %230 = vmatprep.subr.mxu0 %v147
    %231 = vmatpush1.msra.mxu0 %v146
    %232 = vmatprep.subr.mxu0 %v151
    %233 = vmatpush1.msra.mxu0 %v150
    %234 = vmatprep.subr.mxu0 %v155
    %235 = vmatpush1.msra.mxu0 %v154
    %236 = vmatprep.subr.mxu0 %v159
    %237 = vmatpush1.msra.mxu0 %v158
    %238 = vmatprep.subr.mxu0 %v163
    %239 = vmatpush1.msra.mxu0 %v162
    %240 = vmatprep.subr.mxu0 %v167
    %241 = vmatpush1.msra.mxu0 %v166
    %242 = vmatprep.subr.mxu0 %v171
    %243 = vmatpush1.msra.mxu0 %v170
    %244 = vmatprep.subr.mxu0 %v175
    %245 = vmatpush1.msra.mxu0 %v174
    %246 = vmatprep.subr.mxu0 %v179
    %247 = vmatpush1.msra.mxu0 %v178
    %248 = vmatprep.subr.mxu0 %v183
    %249 = vmatpush1.msra.mxu0 %v182
    %250 = vmatprep.subr.mxu0 %v187
    %251 = vmatpush1.msra.mxu0 %v186
    %252 = vmatprep.subr.mxu0 %v191
    %253 = vmatpush1.msra.mxu0 %v190
    %254 = vmatprep.subr.mxu0 %v195
    %255 = vmatpush1.msra.mxu0 %v194
    %256 = vmatprep.subr.mxu0 %v199
    %257 = vmatpush1.msra.mxu0 %v198
    %258 = vmatprep.subr.mxu0 %v203
    %259 = vmatpush1.msra.mxu0 %v202
    %260 = vmatprep.subr.mxu0 0.0
    %261 = vmatpush1.msra.mxu0 0.0
    %262 = vmatprep.subr.mxu0 0.0
    %263 = vmatpush1.msra.mxu0 0.0
    %264 = vmatprep.subr.mxu0 0.0
    %265 = vmatpush1.msra.mxu0 0.0
    %266 = vmatprep.subr.mxu0 0.0
    %267 = vmatpush1.msra.mxu0 0.0
    %268 = vmatprep.subr.mxu0 0.0
    %269 = vmatpush1.msra.mxu0 0.0
    %270 = vmatprep.subr.mxu0 0.0
    %271 = vmatpush1.msra.mxu0 0.0
    %272 = vmatprep.subr.mxu0 0.0
    %273 = vmatpush1.msra.mxu0 0.0
    %274 = vmatprep.subr.mxu0 0.0
    %275 = vmatpush1.msra.mxu0 0.0
    %276 = vmatprep.subr.mxu0 0.0
    %277 = vmatpush1.msra.mxu0 0.0
    %278 = vmatprep.subr.mxu0 0.0
    %279 = vmatpush1.msra.mxu0 0.0
    %280 = vmatprep.subr.mxu0 0.0
    %281 = vmatpush1.msra.mxu0 0.0
    %282 = vmatprep.subr.mxu0 0.0
    %283 = vmatpush1.msra.mxu0 0.0
    %284 = vmatprep.subr.mxu0 0.0
    %285 = vmatpush1.msra.mxu0 0.0
    %286 = vmatprep.subr.mxu0 0.0
    %287 = vmatpush1.msra.mxu0 0.0
    %288 = vmatprep.subr.mxu0 0.0
    %289 = vmatpush1.msra.mxu0 0.0
    %290 = vmatprep.subr.mxu0 0.0
    %291 = vmatpush1.msra.mxu0 0.0
    %292 = vmatprep.mubr.f32.mxu0 0.0
    %293 = vmatmul.mubr.f32.gmra.mrb[0].mxu0 %v134
    %v294 = vpop.f32.mrb[0].mxu0
    %v295 = vadd.f32 %v211, %v294
    %v296 = vpop.f32.mrb[0].mxu0
    %v297 = vadd.f32 %v215, %v296
    %298 = vmatprep.mubr.f32.mxu0 0.0
    %299 = vmatmul.mubr.f32.gmra.mrb[0].mxu0 %v135
    %v300 = vpop.f32.mrb[0].mxu0
    %v301 = vadd.f32 %v211, %v300
    %v302 = vpop.f32.mrb[0].mxu0
    %v303 = vadd.f32 %v215, %v302
    %304 = vmatprep.mubr.f32.mxu0 0.0
    %305 = vmatmul.mubr.f32.gmra.mrb[0].mxu0 %v136
    %v306 = vpop.f32.mrb[0].mxu0
    %v307 = vadd.f32 %v211, %v306
    %v308 = vpop.f32.mrb[0].mxu0
    %v309 = vadd.f32 %v215, %v308
    %310 = vmatprep.mubr.f32.mxu0 0.0
    %311 = vmatmul.mubr.f32.gmra.mrb[0].mxu0 %v137
    %v312 = vpop.f32.mrb[0].mxu0
    %v313 = vadd.f32 %v211, %v312
    %v314 = vpop.f32.mrb[0].mxu0
    %v315 = vadd.f32 %v215, %v314
    %316 = vmatprep.mubr.f32.mxu0 0.0
    %317 = vmatmul.mubr.f32.gmra.mrb[0].mxu0 %v138
    %v318 = vpop.f32.mrb[0].mxu0
    %v319 = vadd.f32 %v211, %v318
    %v320 = vpop.f32.mrb[0].mxu0
    %v321 = vadd.f32 %v215, %v320
    %322 = vmatprep.mubr.f32.mxu0 0.0
    %323 = vmatmul.mubr.f32.gmra.mrb[0].mxu0 %v139
    %v324 = vpop.f32.mrb[0].mxu0
    %v325 = vadd.f32 %v211, %v324
    %v326 = vpop.f32.mrb[0].mxu0
    %v327 = vadd.f32 %v215, %v326
    %328 = vmatprep.mubr.f32.mxu0 0.0
    %329 = vmatmul.mubr.f32.gmra.mrb[0].mxu0 %v140
    %v330 = vpop.f32.mrb[0].mxu0
    %v331 = vadd.f32 %v211, %v330
    %v332 = vpop.f32.mrb[0].mxu0
    %v333 = vadd.f32 %v215, %v332
    %334 = vmatprep.mubr.f32.mxu0 0.0
    %335 = vmatmul.mubr.f32.gmra.mrb[0].mxu0 %v141
    %v336 = vpop.f32.mrb[0].mxu0
    %v337 = vadd.f32 %v211, %v336
    %v338 = vpop.f32.mrb[0].mxu0
    %v339 = vadd.f32 %v215, %v338
    %340 = vdwg.mxu0
    %341 = vmatprep.subr.mxu0 %v145
    %342 = vmatpush1.msra.mxu0 %v144
    %343 = vmatprep.subr.mxu0 %v149
    %344 = vmatpush1.msra.mxu0 %v148
    %345 = vmatprep.subr.mxu0 %v153
    %346 = vmatpush1.msra.mxu0 %v152
    %347 = vmatprep.subr.mxu0 %v157
    %348 = vmatpush1.msra.mxu0 %v156
    %349 = vmatprep.subr.mxu0 %v161
    %350 = vmatpush1.msra.mxu0 %v160
    %351 = vmatprep.subr.mxu0 %v165
    %352 = vmatpush1.msra.mxu0 %v164
    %353 = vmatprep.subr.mxu0 %v169
    %354 = vmatpush1.msra.mxu0 %v168
    %355 = vmatprep.subr.mxu0 %v173
    %356 = vmatpush1.msra.mxu0 %v172
    %357 = vmatprep.subr.mxu0 %v177
    %358 = vmatpush1.msra.mxu0 %v176
    %359 = vmatprep.subr.mxu0 %v181
    %360 = vmatpush1.msra.mxu0 %v180
    %361 = vmatprep.subr.mxu0 %v185
    %362 = vmatpush1.msra.mxu0 %v184
    %363 = vmatprep.subr.mxu0 %v189
    %364 = vmatpush1.msra.mxu0 %v188
    %365 = vmatprep.subr.mxu0 %v193
    %366 = vmatpush1.msra.mxu0 %v192
    %367 = vmatprep.subr.mxu0 %v197
    %368 = vmatpush1.msra.mxu0 %v196
    %369 = vmatprep.subr.mxu0 %v201
    %370 = vmatpush1.msra.mxu0 %v200
    %371 = vmatprep.subr.mxu0 %v205
    %372 = vmatpush1.msra.mxu0 %v204
    %373 = vmatprep.subr.mxu0 0.0
    %374 = vmatpush1.msra.mxu0 0.0
    %375 = vmatprep.subr.mxu0 0.0
    %376 = vmatpush1.msra.mxu0 0.0
    %377 = vmatprep.subr.mxu0 0.0
    %378 = vmatpush1.msra.mxu0 0.0
    %379 = vmatprep.subr.mxu0 0.0
    %380 = vmatpush1.msra.mxu0 0.0
    %381 = vmatprep.subr.mxu0 0.0
    %382 = vmatpush1.msra.mxu0 0.0
    %383 = vmatprep.subr.mxu0 0.0
    %384 = vmatpush1.msra.mxu0 0.0
    %385 = vmatprep.subr.mxu0 0.0
    %386 = vmatpush1.msra.mxu0 0.0
    %387 = vmatprep.subr.mxu0 0.0
    %388 = vmatpush1.msra.mxu0 0.0
    %389 = vmatprep.subr.mxu0 0.0
    %390 = vmatpush1.msra.mxu0 0.0
    %391 = vmatprep.subr.mxu0 0.0
    %392 = vmatpush1.msra.mxu0 0.0
    %393 = vmatprep.subr.mxu0 0.0
    %394 = vmatpush1.msra.mxu0 0.0
    %395 = vmatprep.subr.mxu0 0.0
    %396 = vmatpush1.msra.mxu0 0.0
    %397 = vmatprep.subr.mxu0 0.0
    %398 = vmatpush1.msra.mxu0 0.0
    %399 = vmatprep.subr.mxu0 0.0
    %400 = vmatpush1.msra.mxu0 0.0
    %401 = vmatprep.subr.mxu0 0.0
    %402 = vmatpush1.msra.mxu0 0.0
    %403 = vmatprep.subr.mxu0 0.0
    %404 = vmatpush1.msra.mxu0 0.0
    %405 = vmatprep.mubr.f32.mxu0 0.0
    %406 = vmatmul.mubr.f32.gmra.mrb[0].mxu0 %v134
    %v407 = vpop.f32.mrb[0].mxu0
    %v408 = vadd.f32 %v219, %v407
    %v409 = vpop.f32.mrb[0].mxu0
    %v410 = vadd.f32 %v223, %v409
    %411 = vmatprep.mubr.f32.mxu0 0.0
    %412 = vmatmul.mubr.f32.gmra.mrb[0].mxu0 %v135
    %v413 = vpop.f32.mrb[0].mxu0
    %v414 = vadd.f32 %v219, %v413
    %v415 = vpop.f32.mrb[0].mxu0
    %v416 = vadd.f32 %v223, %v415
    %417 = vmatprep.mubr.f32.mxu0 0.0
    %418 = vmatmul.mubr.f32.gmra.mrb[0].mxu0 %v136
    %v419 = vpop.f32.mrb[0].mxu0
    %v420 = vadd.f32 %v219, %v419
    %v421 = vpop.f32.mrb[0].mxu0
    %v422 = vadd.f32 %v223, %v421
    %423 = vmatprep.mubr.f32.mxu0 0.0
    %424 = vmatmul.mubr.f32.gmra.mrb[0].mxu0 %v137
    %v425 = vpop.f32.mrb[0].mxu0
    %v426 = vadd.f32 %v219, %v425
    %v427 = vpop.f32.mrb[0].mxu0
    %v428 = vadd.f32 %v223, %v427
    %429 = vmatprep.mubr.f32.mxu0 0.0
    %430 = vmatmul.mubr.f32.gmra.mrb[0].mxu0 %v138
    %v431 = vpop.f32.mrb[0].mxu0
    %v432 = vadd.f32 %v219, %v431
    %v433 = vpop.f32.mrb[0].mxu0
    %v434 = vadd.f32 %v223, %v433
    %435 = vmatprep.mubr.f32.mxu0 0.0
    %436 = vmatmul.mubr.f32.gmra.mrb[0].mxu0 %v139
    %v437 = vpop.f32.mrb[0].mxu0
    %v438 = vadd.f32 %v219, %v437
    %v439 = vpop.f32.mrb[0].mxu0
    %v440 = vadd.f32 %v223, %v439
    %441 = vmatprep.mubr.f32.mxu0 0.0
    %442 = vmatmul.mubr.f32.gmra.mrb[0].mxu0 %v140
    %v443 = vpop.f32.mrb[0].mxu0
    %v444 = vadd.f32 %v219, %v443
    %v445 = vpop.f32.mrb[0].mxu0
    %v446 = vadd.f32 %v223, %v445
    %447 = vmatprep.mubr.f32.mxu0 0.0
    %448 = vmatmul.mubr.f32.gmra.mrb[0].mxu0 %v141
    %v449 = vpop.f32.mrb[0].mxu0
    %v450 = vadd.f32 %v219, %v449
    %v451 = vpop.f32.mrb[0].mxu0
    %v452 = vadd.f32 %v223, %v451
    %453 = vdwg.mxu0
    %454 = vst [vmem:[#allocation2] sm:$0xff] %v295
    %455 = vst [vmem:[#allocation2 + $0x8] sm:$0xff] %v297
    %456 = vst [vmem:[#allocation2 + $0x10] sm:$0xff] %v408
    %457 = vst [vmem:[#allocation2 + $0x18] sm:$0xff] %v410
    %458 = vst [vmem:[#allocation2 + $0x20] sm:$0xff] %v301
    %459 = vst [vmem:[#allocation2 + $0x28] sm:$0xff] %v303
    %460 = vst [vmem:[#allocation2 + $0x30] sm:$0xff] %v414
    %461 = vst [vmem:[#allocation2 + $0x38] sm:$0xff] %v416
    %462 = vst [vmem:[#allocation2 + $0x40] sm:$0xff] %v307
    %463 = vst [vmem:[#allocation2 + $0x48] sm:$0xff] %v309
    %464 = vst [vmem:[#allocation2 + $0x50] sm:$0xff] %v420
    %465 = vst [vmem:[#allocation2 + $0x58] sm:$0xff] %v422
    %466 = vst [vmem:[#allocation2 + $0x60] sm:$0xff] %v313
    %467 = vst [vmem:[#allocation2 + $0x68] sm:$0xff] %v315
    %468 = vst [vmem:[#allocation2 + $0x70] sm:$0xff] %v426
    %469 = vst [vmem:[#allocation2 + $0x78] sm:$0xff] %v428
    %470 = vst [vmem:[#allocation2 + $0x80] sm:$0xff] %v319
    %471 = vst [vmem:[#allocation2 + $0x88] sm:$0xff] %v321
    %472 = vst [vmem:[#allocation2 + $0x90] sm:$0xff] %v432
    %473 = vst [vmem:[#allocation2 + $0x98] sm:$0xff] %v434
    %474 = vst [vmem:[#allocation2 + $0xa0] sm:$0xff] %v325
    %475 = vst [vmem:[#allocation2 + $0xa8] sm:$0xff] %v327
    %476 = vst [vmem:[#allocation2 + $0xb0] sm:$0xff] %v438
    %477 = vst [vmem:[#allocation2 + $0xb8] sm:$0xff] %v440
    %478 = vst [vmem:[#allocation2 + $0xc0] sm:$0xff] %v331
    %479 = vst [vmem:[#allocation2 + $0xc8] sm:$0xff] %v333
    %480 = vst [vmem:[#allocation2 + $0xd0] sm:$0xff] %v444
    %481 = vst [vmem:[#allocation2 + $0xd8] sm:$0xff] %v446
    %482 = vst [vmem:[#allocation2 + $0xe0] sm:$0xff] %v337
    %483 = vst [vmem:[#allocation2 + $0xe8] sm:$0xff] %v339
    %484 = vst [vmem:[#allocation2 + $0xf0] sm:$0xff] %v450
    %485 = vst [vmem:[#allocation2 + $0xf8] sm:$0xff] %v452
    %v486 = vld [vmem:[#allocation11] sm:$0xff]
    %v487 = vld [vmem:[#allocation11 + $0x8] sm:$0xff]
    %v488 = vld [vmem:[#allocation11 + $0x10] sm:$0xff]
    %v489 = vld [vmem:[#allocation11 + $0x18] sm:$0xff]
    %v490 = vld [vmem:[#allocation11 + $0x20] sm:$0xff]
    %v491 = vld [vmem:[#allocation11 + $0x28] sm:$0xff]
    %v492 = vld [vmem:[#allocation11 + $0x30] sm:$0xff]
    %v493 = vld [vmem:[#allocation11 + $0x38] sm:$0xff]
    %v494 = vld [vmem:[#allocation11 + $0x40] sm:$0xff]
    %v495 = vld [vmem:[#allocation11 + $0x48] sm:$0xff]
    %v496 = vld [vmem:[#allocation11 + $0x50] sm:$0xff]
    %v497 = vld [vmem:[#allocation11 + $0x58] sm:$0xff]
    %v498 = vld [vmem:[#allocation11 + $0x60] sm:$0xff]
    %v499 = vld [vmem:[#allocation11 + $0x68] sm:$0xff]
    %v500 = vld [vmem:[#allocation11 + $0x70] sm:$0xff]
    %v501 = vld [vmem:[#allocation11 + $0x78] sm:$0xff]
    %v502 = vld [vmem:[#allocation11 + $0x80] sm:$0xff]
    %v503 = vld [vmem:[#allocation11 + $0x88] sm:$0xff]
    %v504 = vld [vmem:[#allocation11 + $0x90] sm:$0xff]
    %v505 = vld [vmem:[#allocation11 + $0x98] sm:$0xff]
    %v506 = vld [vmem:[#allocation11 + $0xa0] sm:$0xff]
    %v507 = vld [vmem:[#allocation11 + $0xa8] sm:$0xff]
    %v508 = vld [vmem:[#allocation11 + $0xb0] sm:$0xff]
    %v509 = vld [vmem:[#allocation11 + $0xb8] sm:$0xff]
    %v510 = vld [vmem:[#allocation11 + $0xc0] sm:$0xff]
    %v511 = vld [vmem:[#allocation11 + $0xc8] sm:$0xff]
    %v512 = vld [vmem:[#allocation11 + $0xd0] sm:$0xff]
    %v513 = vld [vmem:[#allocation11 + $0xd8] sm:$0xff]
    %v514 = vld [vmem:[#allocation11 + $0xe0] sm:$0xff]
    %v515 = vld [vmem:[#allocation11 + $0xe8] sm:$0xff]
    %v516 = vld [vmem:[#allocation11 + $0xf0] sm:$0xff]
    %v517 = vld [vmem:[#allocation11 + $0xf8] sm:$0xff]
    %v518 = vld [vmem:[#allocation11 + $0x100] sm:$0xff]
    %v519 = vld [vmem:[#allocation11 + $0x108] sm:$0xff]
    %v520 = vld [vmem:[#allocation11 + $0x110] sm:$0xff]
    %v521 = vld [vmem:[#allocation11 + $0x118] sm:$0xff]
    %v522 = vld [vmem:[#allocation11 + $0x120] sm:$0xff]
    %v523 = vld [vmem:[#allocation11 + $0x128] sm:$0xff]
    %v524 = vld [vmem:[#allocation11 + $0x130] sm:$0xff]
    %v525 = vld [vmem:[#allocation11 + $0x138] sm:$0xff]
    %v526 = vld [vmem:[#allocation11 + $0x140] sm:$0xff]
    %v527 = vld [vmem:[#allocation11 + $0x148] sm:$0xff]
    %v528 = vld [vmem:[#allocation11 + $0x150] sm:$0xff]
    %v529 = vld [vmem:[#allocation11 + $0x158] sm:$0xff]
    %v530 = vld [vmem:[#allocation11 + $0x160] sm:$0xff]
    %v531 = vld [vmem:[#allocation11 + $0x168] sm:$0xff]
    %v532 = vld [vmem:[#allocation11 + $0x170] sm:$0xff]
    %v533 = vld [vmem:[#allocation11 + $0x178] sm:$0xff]
    %v534 = vld [vmem:[#allocation11 + $0x180] sm:$0xff]
    %v535 = vld [vmem:[#allocation11 + $0x188] sm:$0xff]
    %v536 = vld [vmem:[#allocation11 + $0x190] sm:$0xff]
    %v537 = vld [vmem:[#allocation11 + $0x198] sm:$0xff]
    %v538 = vld [vmem:[#allocation11 + $0x1a0] sm:$0xff]
    %v539 = vld [vmem:[#allocation11 + $0x1a8] sm:$0xff]
    %v540 = vld [vmem:[#allocation11 + $0x1b0] sm:$0xff]
    %v541 = vld [vmem:[#allocation11 + $0x1b8] sm:$0xff]
    %v542 = vld [vmem:[#allocation11 + $0x1c0] sm:$0xff]
    %v543 = vld [vmem:[#allocation11 + $0x1c8] sm:$0xff]
    %v544 = vld [vmem:[#allocation11 + $0x1d0] sm:$0xff]
    %v545 = vld [vmem:[#allocation11 + $0x1d8] sm:$0xff]
    %v546 = vld [vmem:[#allocation11 + $0x1e0] sm:$0xff]
    %v547 = vld [vmem:[#allocation11 + $0x1e8] sm:$0xff]
    %v548 = vld [vmem:[#allocation11 + $0x1f0] sm:$0xff]
    %v549 = vld [vmem:[#allocation11 + $0x1f8] sm:$0xff]
    %v550 = vld [vmem:[#allocation4] sm:$0xff]
    %v551 = vld [vmem:[#allocation5] sm:$0xff]
    %v552 = vld [vmem:[#allocation2] sm:$0xff]
    %v553 = vld [vmem:[#allocation2 + $0x8] sm:$0xff]
    %v554 = vld [vmem:[#allocation2 + $0x10] sm:$0xff]
    %v555 = vld [vmem:[#allocation2 + $0x18] sm:$0xff]
    %556 = vmatprep.subr.mxu0 %v487
    %557 = vmatpush1.msra.mxu0 %v486
    %558 = vmatprep.subr.mxu0 %v491
    %559 = vmatpush1.msra.mxu0 %v490
    %560 = vmatprep.subr.mxu0 %v495
    %561 = vmatpush1.msra.mxu0 %v494
    %562 = vmatprep.subr.mxu0 %v499
    %563 = vmatpush1.msra.mxu0 %v498
    %564 = vmatprep.subr.mxu0 %v503
    %565 = vmatpush1.msra.mxu0 %v502
    %566 = vmatprep.subr.mxu0 %v507
    %567 = vmatpush1.msra.mxu0 %v506
    %568 = vmatprep.subr.mxu0 %v511
    %569 = vmatpush1.msra.mxu0 %v510
    %570 = vmatprep.subr.mxu0 %v515
    %571 = vmatpush1.msra.mxu0 %v514
    %572 = vmatprep.subr.mxu0 %v519
    %573 = vmatpush1.msra.mxu0 %v518
    %574 = vmatprep.subr.mxu0 %v523
    %575 = vmatpush1.msra.mxu0 %v522
    %576 = vmatprep.subr.mxu0 %v527
    %577 = vmatpush1.msra.mxu0 %v526
    %578 = vmatprep.subr.mxu0 %v531
    %579 = vmatpush1.msra.mxu0 %v530
    %580 = vmatprep.subr.mxu0 %v535
    %581 = vmatpush1.msra.mxu0 %v534
    %582 = vmatprep.subr.mxu0 %v539
    %583 = vmatpush1.msra.mxu0 %v538
    %584 = vmatprep.subr.mxu0 %v543
    %585 = vmatpush1.msra.mxu0 %v542
    %586 = vmatprep.subr.mxu0 %v547
    %587 = vmatpush1.msra.mxu0 %v546
    %588 = vmatprep.subr.mxu0 0.0
    %589 = vmatpush1.msra.mxu0 0.0
    %590 = vmatprep.subr.mxu0 0.0
    %591 = vmatpush1.msra.mxu0 0.0
    %592 = vmatprep.subr.mxu0 0.0
    %593 = vmatpush1.msra.mxu0 0.0
    %594 = vmatprep.subr.mxu0 0.0
    %595 = vmatpush1.msra.mxu0 0.0
    %596 = vmatprep.subr.mxu0 0.0
    %597 = vmatpush1.msra.mxu0 0.0
    %598 = vmatprep.subr.mxu0 0.0
    %599 = vmatpush1.msra.mxu0 0.0
    %600 = vmatprep.subr.mxu0 0.0
    %601 = vmatpush1.msra.mxu0 0.0
    %602 = vmatprep.subr.mxu0 0.0
    %603 = vmatpush1.msra.mxu0 0.0
    %604 = vmatprep.subr.mxu0 0.0
    %605 = vmatpush1.msra.mxu0 0.0
    %606 = vmatprep.subr.mxu0 0.0
    %607 = vmatpush1.msra.mxu0 0.0
    %608 = vmatprep.subr.mxu0 0.0
    %609 = vmatpush1.msra.mxu0 0.0
    %610 = vmatprep.subr.mxu0 0.0
    %611 = vmatpush1.msra.mxu0 0.0
    %612 = vmatprep.subr.mxu0 0.0
    %613 = vmatpush1.msra.mxu0 0.0
    %614 = vmatprep.subr.mxu0 0.0
    %615 = vmatpush1.msra.mxu0 0.0
    %616 = vmatprep.subr.mxu0 0.0
    %617 = vmatpush1.msra.mxu0 0.0
    %618 = vmatprep.subr.mxu0 0.0
    %619 = vmatpush1.msra.mxu0 0.0
    %620 = vmatprep.mubr.f32.mxu0 0.0
    %621 = vmatmul.mubr.f32.gmra.mrb[0].mxu0 %v550
    %v622 = vpop.f32.mrb[0].mxu0
    %v623 = vadd.f32 0.0, %v622
    %v624 = vpop.f32.mrb[0].mxu0
    %v625 = vadd.f32 0.0, %v624
    %626 = vdwg.mxu0
    %627 = vmatprep.subr.mxu0 %v489
    %628 = vmatpush1.msra.mxu0 %v488
    %629 = vmatprep.subr.mxu0 %v493
    %630 = vmatpush1.msra.mxu0 %v492
    %631 = vmatprep.subr.mxu0 %v497
    %632 = vmatpush1.msra.mxu0 %v496
    %633 = vmatprep.subr.mxu0 %v501
    %634 = vmatpush1.msra.mxu0 %v500
    %635 = vmatprep.subr.mxu0 %v505
    %636 = vmatpush1.msra.mxu0 %v504
    %637 = vmatprep.subr.mxu0 %v509
    %638 = vmatpush1.msra.mxu0 %v508
    %639 = vmatprep.subr.mxu0 %v513
    %640 = vmatpush1.msra.mxu0 %v512
    %641 = vmatprep.subr.mxu0 %v517
    %642 = vmatpush1.msra.mxu0 %v516
    %643 = vmatprep.subr.mxu0 %v521
    %644 = vmatpush1.msra.mxu0 %v520
    %645 = vmatprep.subr.mxu0 %v525
    %646 = vmatpush1.msra.mxu0 %v524
    %647 = vmatprep.subr.mxu0 %v529
    %648 = vmatpush1.msra.mxu0 %v528
    %649 = vmatprep.subr.mxu0 %v533
    %650 = vmatpush1.msra.mxu0 %v532
    %651 = vmatprep.subr.mxu0 %v537
    %652 = vmatpush1.msra.mxu0 %v536
    %653 = vmatprep.subr.mxu0 %v541
    %654 = vmatpush1.msra.mxu0 %v540
    %655 = vmatprep.subr.mxu0 %v545
    %656 = vmatpush1.msra.mxu0 %v544
    %657 = vmatprep.subr.mxu0 %v549
    %658 = vmatpush1.msra.mxu0 %v548
    %659 = vmatprep.subr.mxu0 0.0
    %660 = vmatpush1.msra.mxu0 0.0
    %661 = vmatprep.subr.mxu0 0.0
    %662 = vmatpush1.msra.mxu0 0.0
    %663 = vmatprep.subr.mxu0 0.0
    %664 = vmatpush1.msra.mxu0 0.0
    %665 = vmatprep.subr.mxu0 0.0
    %666 = vmatpush1.msra.mxu0 0.0
    %667 = vmatprep.subr.mxu0 0.0
    %668 = vmatpush1.msra.mxu0 0.0
    %669 = vmatprep.subr.mxu0 0.0
    %670 = vmatpush1.msra.mxu0 0.0
    %671 = vmatprep.subr.mxu0 0.0
    %672 = vmatpush1.msra.mxu0 0.0
    %673 = vmatprep.subr.mxu0 0.0
    %674 = vmatpush1.msra.mxu0 0.0
    %675 = vmatprep.subr.mxu0 0.0
    %676 = vmatpush1.msra.mxu0 0.0
    %677 = vmatprep.subr.mxu0 0.0
    %678 = vmatpush1.msra.mxu0 0.0
    %679 = vmatprep.subr.mxu0 0.0
    %680 = vmatpush1.msra.mxu0 0.0
    %681 = vmatprep.subr.mxu0 0.0
    %682 = vmatpush1.msra.mxu0 0.0
    %683 = vmatprep.subr.mxu0 0.0
    %684 = vmatpush1.msra.mxu0 0.0
    %685 = vmatprep.subr.mxu0 0.0
    %686 = vmatpush1.msra.mxu0 0.0
    %687 = vmatprep.subr.mxu0 0.0
    %688 = vmatpush1.msra.mxu0 0.0
    %689 = vmatprep.subr.mxu0 0.0
    %690 = vmatpush1.msra.mxu0 0.0
    %691 = vmatprep.mubr.f32.mxu0 0.0
    %692 = vmatmul.mubr.f32.gmra.mrb[0].mxu0 %v550
    %v693 = vpop.f32.mrb[0].mxu0
    %v694 = vadd.f32 0.0, %v693
    %v695 = vpop.f32.mrb[0].mxu0
    %v696 = vadd.f32 0.0, %v695
    %697 = vdwg.mxu0
    %v698 = vadd.f32 %v552, %v623
    %v699 = vadd.f32 %v553, %v625
    %v700 = vadd.f32 %v554, %v694
    %v701 = vadd.f32 %v555, %v696
    %v702 = vxor.u32 %v698, 2147483648
    %v703 = vmul.f32 %v702, 1.442695
    %v704 = vpow.pop %v703
    %v705 = vadd.f32 %v704, 1.0
    %v706 = vrcp.pop %v705
    %v707 = vmul.f32 1.0, %v706
    %v708 = vxor.u32 %v699, 2147483648
    %v709 = vmul.f32 %v708, 1.442695
    %v710 = vpow.pop %v709
    %v711 = vadd.f32 %v710, 1.0
    %v712 = vrcp.pop %v711
    %v713 = vmul.f32 1.0, %v712
    %v714 = vtanh.pop %v700
    %v715 = vxor.u32 %v701, 2147483648
    %v716 = vmul.f32 %v715, 1.442695
    %v717 = vpow.pop %v716
    %v718 = vadd.f32 %v717, 1.0
    %v719 = vrcp.pop %v718
    %v720 = vmul.f32 1.0, %v719
    %v721 = vmul.f32 %v713, %v551
    %v722 = vmul.f32 %v707, %v714
    %v723 = vadd.f32 %v721, %v722
    %v724 = vtanh.pop %v723
    %v725 = vmul.f32 %v720, %v724
    %726 = vst [vmem:[#allocation3] sm:$0xff] %v725
    %s727 = scalar_lea.vmem [#allocation2], 32
    %v728 = vld [vmem:[%s727] sm:$0xff]
    %v729 = vld [vmem:[%s727 + $0x8] sm:$0xff]
    %v730 = vld [vmem:[%s727 + $0x10] sm:$0xff]
    %v731 = vld [vmem:[%s727 + $0x18] sm:$0xff]
    %732 = vmatprep.subr.mxu0 %v487
    %733 = vmatpush1.msra.mxu0 %v486
    %734 = vmatprep.subr.mxu0 %v491
    %735 = vmatpush1.msra.mxu0 %v490
    %736 = vmatprep.subr.mxu0 %v495
    %737 = vmatpush1.msra.mxu0 %v494
    %738 = vmatprep.subr.mxu0 %v499
    %739 = vmatpush1.msra.mxu0 %v498
    %740 = vmatprep.subr.mxu0 %v503
    %741 = vmatpush1.msra.mxu0 %v502
    %742 = vmatprep.subr.mxu0 %v507
    %743 = vmatpush1.msra.mxu0 %v506
    %744 = vmatprep.subr.mxu0 %v511
    %745 = vmatpush1.msra.mxu0 %v510
    %746 = vmatprep.subr.mxu0 %v515
    %747 = vmatpush1.msra.mxu0 %v514
    %748 = vmatprep.subr.mxu0 %v519
    %749 = vmatpush1.msra.mxu0 %v518
    %750 = vmatprep.subr.mxu0 %v523
    %751 = vmatpush1.msra.mxu0 %v522
    %752 = vmatprep.subr.mxu0 %v527
    %753 = vmatpush1.msra.mxu0 %v526
    %754 = vmatprep.subr.mxu0 %v531
    %755 = vmatpush1.msra.mxu0 %v530
    %756 = vmatprep.subr.mxu0 %v535
    %757 = vmatpush1.msra.mxu0 %v534
    %758 = vmatprep.subr.mxu0 %v539
    %759 = vmatpush1.msra.mxu0 %v538
    %760 = vmatprep.subr.mxu0 %v543
    %761 = vmatpush1.msra.mxu0 %v542
    %762 = vmatprep.subr.mxu0 %v547
    %763 = vmatpush1.msra.mxu0 %v546
    %764 = vmatprep.subr.mxu0 0.0
    %765 = vmatpush1.msra.mxu0 0.0
    %766 = vmatprep.subr.mxu0 0.0
    %767 = vmatpush1.msra.mxu0 0.0
    %768 = vmatprep.subr.mxu0 0.0
    %769 = vmatpush1.msra.mxu0 0.0
    %770 = vmatprep.subr.mxu0 0.0
    %771 = vmatpush1.msra.mxu0 0.0
    %772 = vmatprep.subr.mxu0 0.0
    %773 = vmatpush1.msra.mxu0 0.0
    %774 = vmatprep.subr.mxu0 0.0
    %775 = vmatpush1.msra.mxu0 0.0
    %776 = vmatprep.subr.mxu0 0.0
    %777 = vmatpush1.msra.mxu0 0.0
    %778 = vmatprep.subr.mxu0 0.0
    %779 = vmatpush1.msra.mxu0 0.0
    %780 = vmatprep.subr.mxu0 0.0
    %781 = vmatpush1.msra.mxu0 0.0
    %782 = vmatprep.subr.mxu0 0.0
    %783 = vmatpush1.msra.mxu0 0.0
    %784 = vmatprep.subr.mxu0 0.0
    %785 = vmatpush1.msra.mxu0 0.0
    %786 = vmatprep.subr.mxu0 0.0
    %787 = vmatpush1.msra.mxu0 0.0
    %788 = vmatprep.subr.mxu0 0.0
    %789 = vmatpush1.msra.mxu0 0.0
    %790 = vmatprep.subr.mxu0 0.0
    %791 = vmatpush1.msra.mxu0 0.0
    %792 = vmatprep.subr.mxu0 0.0
    %793 = vmatpush1.msra.mxu0 0.0
    %794 = vmatprep.subr.mxu0 0.0
    %795 = vmatpush1.msra.mxu0 0.0
    %796 = vmatprep.mubr.f32.mxu0 0.0
    %797 = vmatmul.mubr.f32.gmra.mrb[0].mxu0 %v725
    %v798 = vpop.f32.mrb[0].mxu0
    %v799 = vadd.f32 0.0, %v798
    %v800 = vpop.f32.mrb[0].mxu0
    %v801 = vadd.f32 0.0, %v800
    %802 = vdwg.mxu0
    %803 = vmatprep.subr.mxu0 %v489
    %804 = vmatpush1.msra.mxu0 %v488
    %805 = vmatprep.subr.mxu0 %v493
    %806 = vmatpush1.msra.mxu0 %v492
    %807 = vmatprep.subr.mxu0 %v497
    %808 = vmatpush1.msra.mxu0 %v496
    %809 = vmatprep.subr.mxu0 %v501
    %810 = vmatpush1.msra.mxu0 %v500
    %811 = vmatprep.subr.mxu0 %v505
    %812 = vmatpush1.msra.mxu0 %v504
    %813 = vmatprep.subr.mxu0 %v509
    %814 = vmatpush1.msra.mxu0 %v508
    %815 = vmatprep.subr.mxu0 %v513
    %816 = vmatpush1.msra.mxu0 %v512
    %817 = vmatprep.subr.mxu0 %v517
    %818 = vmatpush1.msra.mxu0 %v516
    %819 = vmatprep.subr.mxu0 %v521
    %820 = vmatpush1.msra.mxu0 %v520
    %821 = vmatprep.subr.mxu0 %v525
    %822 = vmatpush1.msra.mxu0 %v524
    %823 = vmatprep.subr.mxu0 %v529
    %824 = vmatpush1.msra.mxu0 %v528
    %825 = vmatprep.subr.mxu0 %v533
    %826 = vmatpush1.msra.mxu0 %v532
    %827 = vmatprep.subr.mxu0 %v537
    %828 = vmatpush1.msra.mxu0 %v536
    %829 = vmatprep.subr.mxu0 %v541
    %830 = vmatpush1.msra.mxu0 %v540
    %831 = vmatprep.subr.mxu0 %v545
    %832 = vmatpush1.msra.mxu0 %v544
    %833 = vmatprep.subr.mxu0 %v549
    %834 = vmatpush1.msra.mxu0 %v548
    %835 = vmatprep.subr.mxu0 0.0
    %836 = vmatpush1.msra.mxu0 0.0
    %837 = vmatprep.subr.mxu0 0.0
    %838 = vmatpush1.msra.mxu0 0.0
    %839 = vmatprep.subr.mxu0 0.0
    %840 = vmatpush1.msra.mxu0 0.0
    %841 = vmatprep.subr.mxu0 0.0
    %842 = vmatpush1.msra.mxu0 0.0
    %843 = vmatprep.subr.mxu0 0.0
    %844 = vmatpush1.msra.mxu0 0.0
    %845 = vmatprep.subr.mxu0 0.0
    %846 = vmatpush1.msra.mxu0 0.0
    %847 = vmatprep.subr.mxu0 0.0
    %848 = vmatpush1.msra.mxu0 0.0
    %849 = vmatprep.subr.mxu0 0.0
    %850 = vmatpush1.msra.mxu0 0.0
    %851 = vmatprep.subr.mxu0 0.0
    %852 = vmatpush1.msra.mxu0 0.0
    %853 = vmatprep.subr.mxu0 0.0
    %854 = vmatpush1.msra.mxu0 0.0
    %855 = vmatprep.subr.mxu0 0.0
    %856 = vmatpush1.msra.mxu0 0.0
    %857 = vmatprep.subr.mxu0 0.0
    %858 = vmatpush1.msra.mxu0 0.0
    %859 = vmatprep.subr.mxu0 0.0
    %860 = vmatpush1.msra.mxu0 0.0
    %861 = vmatprep.subr.mxu0 0.0
    %862 = vmatpush1.msra.mxu0 0.0
    %863 = vmatprep.subr.mxu0 0.0
    %864 = vmatpush1.msra.mxu0 0.0
    %865 = vmatprep.subr.mxu0 0.0
    %866 = vmatpush1.msra.mxu0 0.0
    %867 = vmatprep.mubr.f32.mxu0 0.0
    %868 = vmatmul.mubr.f32.gmra.mrb[0].mxu0 %v725
    %v869 = vpop.f32.mrb[0].mxu0
    %v870 = vadd.f32 0.0, %v869
    %v871 = vpop.f32.mrb[0].mxu0
    %v872 = vadd.f32 0.0, %v871
    %873 = vdwg.mxu0
    %v874 = vadd.f32 %v728, %v799
    %v875 = vadd.f32 %v729, %v801
    %v876 = vadd.f32 %v730, %v870
    %v877 = vadd.f32 %v731, %v872
    %v878 = vxor.u32 %v874, 2147483648
    %v879 = vmul.f32 %v878, 1.442695
    %v880 = vpow.pop %v879
    %v881 = vadd.f32 %v880, 1.0
    %v882 = vrcp.pop %v881
    %v883 = vmul.f32 1.0, %v882
    %v884 = vxor.u32 %v875, 2147483648
    %v885 = vmul.f32 %v884, 1.442695
    %v886 = vpow.pop %v885
    %v887 = vadd.f32 %v886, 1.0
    %v888 = vrcp.pop %v887
    %v889 = vmul.f32 1.0, %v888
    %v890 = vtanh.pop %v876
    %v891 = vxor.u32 %v877, 2147483648
    %v892 = vmul.f32 %v891, 1.442695
    %v893 = vpow.pop %v892
    %v894 = vadd.f32 %v893, 1.0
    %v895 = vrcp.pop %v894
    %v896 = vmul.f32 1.0, %v895
    %v897 = vmul.f32 %v889, %v723
    %v898 = vmul.f32 %v883, %v890
    %v899 = vadd.f32 %v897, %v898
    %v900 = vtanh.pop %v899
    %v901 = vmul.f32 %v896, %v900
    %s902 = scalar_lea.vmem [#allocation3], 8
    %903 = vst [vmem:[%s902] sm:$0xff] %v901
    %s904 = scalar_lea.vmem [#allocation2], 64
    %v905 = vld [vmem:[%s904] sm:$0xff]
    %v906 = vld [vmem:[%s904 + $0x8] sm:$0xff]
    %v907 = vld [vmem:[%s904 + $0x10] sm:$0xff]
    %v908 = vld [vmem:[%s904 + $0x18] sm:$0xff]
    %909 = vmatprep.subr.mxu0 %v487
    %910 = vmatpush1.msra.mxu0 %v486
    %911 = vmatprep.subr.mxu0 %v491
    %912 = vmatpush1.msra.mxu0 %v490
    %913 = vmatprep.subr.mxu0 %v495
    %914 = vmatpush1.msra.mxu0 %v494
    %915 = vmatprep.subr.mxu0 %v499
    %916 = vmatpush1.msra.mxu0 %v498
    %917 = vmatprep.subr.mxu0 %v503
    %918 = vmatpush1.msra.mxu0 %v502
    %919 = vmatprep.subr.mxu0 %v507
    %920 = vmatpush1.msra.mxu0 %v506
    %921 = vmatprep.subr.mxu0 %v511
    %922 = vmatpush1.msra.mxu0 %v510
    %923 = vmatprep.subr.mxu0 %v515
    %924 = vmatpush1.msra.mxu0 %v514
    %925 = vmatprep.subr.mxu0 %v519
    %926 = vmatpush1.msra.mxu0 %v518
    %927 = vmatprep.subr.mxu0 %v523
    %928 = vmatpush1.msra.mxu0 %v522
    %929 = vmatprep.subr.mxu0 %v527
    %930 = vmatpush1.msra.mxu0 %v526
    %931 = vmatprep.subr.mxu0 %v531
    %932 = vmatpush1.msra.mxu0 %v530
    %933 = vmatprep.subr.mxu0 %v535
    %934 = vmatpush1.msra.mxu0 %v534
    %935 = vmatprep.subr.mxu0 %v539
    %936 = vmatpush1.msra.mxu0 %v538
    %937 = vmatprep.subr.mxu0 %v543
    %938 = vmatpush1.msra.mxu0 %v542
    %939 = vmatprep.subr.mxu0 %v547
    %940 = vmatpush1.msra.mxu0 %v546
    %941 = vmatprep.subr.mxu0 0.0
    %942 = vmatpush1.msra.mxu0 0.0
    %943 = vmatprep.subr.mxu0 0.0
    %944 = vmatpush1.msra.mxu0 0.0
    %945 = vmatprep.subr.mxu0 0.0
    %946 = vmatpush1.msra.mxu0 0.0
    %947 = vmatprep.subr.mxu0 0.0
    %948 = vmatpush1.msra.mxu0 0.0
    %949 = vmatprep.subr.mxu0 0.0
    %950 = vmatpush1.msra.mxu0 0.0
    %951 = vmatprep.subr.mxu0 0.0
    %952 = vmatpush1.msra.mxu0 0.0
    %953 = vmatprep.subr.mxu0 0.0
    %954 = vmatpush1.msra.mxu0 0.0
    %955 = vmatprep.subr.mxu0 0.0
    %956 = vmatpush1.msra.mxu0 0.0
    %957 = vmatprep.subr.mxu0 0.0
    %958 = vmatpush1.msra.mxu0 0.0
    %959 = vmatprep.subr.mxu0 0.0
    %960 = vmatpush1.msra.mxu0 0.0
    %961 = vmatprep.subr.mxu0 0.0
    %962 = vmatpush1.msra.mxu0 0.0
    %963 = vmatprep.subr.mxu0 0.0
    %964 = vmatpush1.msra.mxu0 0.0
    %965 = vmatprep.subr.mxu0 0.0
    %966 = vmatpush1.msra.mxu0 0.0
    %967 = vmatprep.subr.mxu0 0.0
    %968 = vmatpush1.msra.mxu0 0.0
    %969 = vmatprep.subr.mxu0 0.0
    %970 = vmatpush1.msra.mxu0 0.0
    %971 = vmatprep.subr.mxu0 0.0
    %972 = vmatpush1.msra.mxu0 0.0
    %973 = vmatprep.mubr.f32.mxu0 0.0
    %974 = vmatmul.mubr.f32.gmra.mrb[0].mxu0 %v901
    %v975 = vpop.f32.mrb[0].mxu0
    %v976 = vadd.f32 0.0, %v975
    %v977 = vpop.f32.mrb[0].mxu0
    %v978 = vadd.f32 0.0, %v977
    %979 = vdwg.mxu0
    %980 = vmatprep.subr.mxu0 %v489
    %981 = vmatpush1.msra.mxu0 %v488
    %982 = vmatprep.subr.mxu0 %v493
    %983 = vmatpush1.msra.mxu0 %v492
    %984 = vmatprep.subr.mxu0 %v497
    %985 = vmatpush1.msra.mxu0 %v496
    %986 = vmatprep.subr.mxu0 %v501
    %987 = vmatpush1.msra.mxu0 %v500
    %988 = vmatprep.subr.mxu0 %v505
    %989 = vmatpush1.msra.mxu0 %v504
    %990 = vmatprep.subr.mxu0 %v509
    %991 = vmatpush1.msra.mxu0 %v508
    %992 = vmatprep.subr.mxu0 %v513
    %993 = vmatpush1.msra.mxu0 %v512
    %994 = vmatprep.subr.mxu0 %v517
    %995 = vmatpush1.msra.mxu0 %v516
    %996 = vmatprep.subr.mxu0 %v521
    %997 = vmatpush1.msra.mxu0 %v520
    %998 = vmatprep.subr.mxu0 %v525
    %999 = vmatpush1.msra.mxu0 %v524
    %1000 = vmatprep.subr.mxu0 %v529
    %1001 = vmatpush1.msra.mxu0 %v528
    %1002 = vmatprep.subr.mxu0 %v533
    %1003 = vmatpush1.msra.mxu0 %v532
    %1004 = vmatprep.subr.mxu0 %v537
    %1005 = vmatpush1.msra.mxu0 %v536
    %1006 = vmatprep.subr.mxu0 %v541
    %1007 = vmatpush1.msra.mxu0 %v540
    %1008 = vmatprep.subr.mxu0 %v545
    %1009 = vmatpush1.msra.mxu0 %v544
    %1010 = vmatprep.subr.mxu0 %v549
    %1011 = vmatpush1.msra.mxu0 %v548
    %1012 = vmatprep.subr.mxu0 0.0
    %1013 = vmatpush1.msra.mxu0 0.0
    %1014 = vmatprep.subr.mxu0 0.0
    %1015 = vmatpush1.msra.mxu0 0.0
    %1016 = vmatprep.subr.mxu0 0.0
    %1017 = vmatpush1.msra.mxu0 0.0
    %1018 = vmatprep.subr.mxu0 0.0
    %1019 = vmatpush1.msra.mxu0 0.0
    %1020 = vmatprep.subr.mxu0 0.0
    %1021 = vmatpush1.msra.mxu0 0.0
    %1022 = vmatprep.subr.mxu0 0.0
    %1023 = vmatpush1.msra.mxu0 0.0
    %1024 = vmatprep.subr.mxu0 0.0
    %1025 = vmatpush1.msra.mxu0 0.0
    %1026 = vmatprep.subr.mxu0 0.0
    %1027 = vmatpush1.msra.mxu0 0.0
    %1028 = vmatprep.subr.mxu0 0.0
    %1029 = vmatpush1.msra.mxu0 0.0
    %1030 = vmatprep.subr.mxu0 0.0
    %1031 = vmatpush1.msra.mxu0 0.0
    %1032 = vmatprep.subr.mxu0 0.0
    %1033 = vmatpush1.msra.mxu0 0.0
    %1034 = vmatprep.subr.mxu0 0.0
    %1035 = vmatpush1.msra.mxu0 0.0
    %1036 = vmatprep.subr.mxu0 0.0
    %1037 = vmatpush1.msra.mxu0 0.0
    %1038 = vmatprep.subr.mxu0 0.0
    %1039 = vmatpush1.msra.mxu0 0.0
    %1040 = vmatprep.subr.mxu0 0.0
    %1041 = vmatpush1.msra.mxu0 0.0
    %1042 = vmatprep.subr.mxu0 0.0
    %1043 = vmatpush1.msra.mxu0 0.0
    %1044 = vmatprep.mubr.f32.mxu0 0.0
    %1045 = vmatmul.mubr.f32.gmra.mrb[0].mxu0 %v901
    %v1046 = vpop.f32.mrb[0].mxu0
    %v1047 = vadd.f32 0.0, %v1046
    %v1048 = vpop.f32.mrb[0].mxu0
    %v1049 = vadd.f32 0.0, %v1048
    %1050 = vdwg.mxu0
    %v1051 = vadd.f32 %v905, %v976
    %v1052 = vadd.f32 %v906, %v978
    %v1053 = vadd.f32 %v907, %v1047
    %v1054 = vadd.f32 %v908, %v1049
    %v1055 = vxor.u32 %v1051, 2147483648
    %v1056 = vmul.f32 %v1055, 1.442695
    %v1057 = vpow.pop %v1056
    %v1058 = vadd.f32 %v1057, 1.0
    %v1059 = vrcp.pop %v1058
    %v1060 = vmul.f32 1.0, %v1059
    %v1061 = vxor.u32 %v1052, 2147483648
    %v1062 = vmul.f32 %v1061, 1.442695
    %v1063 = vpow.pop %v1062
    %v1064 = vadd.f32 %v1063, 1.0
    %v1065 = vrcp.pop %v1064
    %v1066 = vmul.f32 1.0, %v1065
    %v1067 = vtanh.pop %v1053
    %v1068 = vxor.u32 %v1054, 2147483648
    %v1069 = vmul.f32 %v1068, 1.442695
    %v1070 = vpow.pop %v1069
    %v1071 = vadd.f32 %v1070, 1.0
    %v1072 = vrcp.pop %v1071
    %v1073 = vmul.f32 1.0, %v1072
    %v1074 = vmul.f32 %v1066, %v899
    %v1075 = vmul.f32 %v1060, %v1067
    %v1076 = vadd.f32 %v1074, %v1075
    %v1077 = vtanh.pop %v1076
    %v1078 = vmul.f32 %v1073, %v1077
    %s1079 = scalar_lea.vmem [#allocation3], 16
    %1080 = vst [vmem:[%s1079] sm:$0xff] %v1078
    %s1081 = scalar_lea.vmem [#allocation2], 96
    %v1082 = vld [vmem:[%s1081] sm:$0xff]
    %v1083 = vld [vmem:[%s1081 + $0x8] sm:$0xff]
    %v1084 = vld [vmem:[%s1081 + $0x10] sm:$0xff]
    %v1085 = vld [vmem:[%s1081 + $0x18] sm:$0xff]
    %1086 = vmatprep.subr.mxu0 %v487
    %1087 = vmatpush1.msra.mxu0 %v486
    %1088 = vmatprep.subr.mxu0 %v491
    %1089 = vmatpush1.msra.mxu0 %v490
    %1090 = vmatprep.subr.mxu0 %v495
    %1091 = vmatpush1.msra.mxu0 %v494
    %1092 = vmatprep.subr.mxu0 %v499
    %1093 = vmatpush1.msra.mxu0 %v498
    %1094 = vmatprep.subr.mxu0 %v503
    %1095 = vmatpush1.msra.mxu0 %v502
    %1096 = vmatprep.subr.mxu0 %v507
    %1097 = vmatpush1.msra.mxu0 %v506
    %1098 = vmatprep.subr.mxu0 %v511
    %1099 = vmatpush1.msra.mxu0 %v510
    %1100 = vmatprep.subr.mxu0 %v515
    %1101 = vmatpush1.msra.mxu0 %v514
    %1102 = vmatprep.subr.mxu0 %v519
    %1103 = vmatpush1.msra.mxu0 %v518
    %1104 = vmatprep.subr.mxu0 %v523
    %1105 = vmatpush1.msra.mxu0 %v522
    %1106 = vmatprep.subr.mxu0 %v527
    %1107 = vmatpush1.msra.mxu0 %v526
    %1108 = vmatprep.subr.mxu0 %v531
    %1109 = vmatpush1.msra.mxu0 %v530
    %1110 = vmatprep.subr.mxu0 %v535
    %1111 = vmatpush1.msra.mxu0 %v534
    %1112 = vmatprep.subr.mxu0 %v539
    %1113 = vmatpush1.msra.mxu0 %v538
    %1114 = vmatprep.subr.mxu0 %v543
    %1115 = vmatpush1.msra.mxu0 %v542
    %1116 = vmatprep.subr.mxu0 %v547
    %1117 = vmatpush1.msra.mxu0 %v546
    %1118 = vmatprep.subr.mxu0 0.0
    %1119 = vmatpush1.msra.mxu0 0.0
    %1120 = vmatprep.subr.mxu0 0.0
    %1121 = vmatpush1.msra.mxu0 0.0
    %1122 = vmatprep.subr.mxu0 0.0
    %1123 = vmatpush1.msra.mxu0 0.0
    %1124 = vmatprep.subr.mxu0 0.0
    %1125 = vmatpush1.msra.mxu0 0.0
    %1126 = vmatprep.subr.mxu0 0.0
    %1127 = vmatpush1.msra.mxu0 0.0
    %1128 = vmatprep.subr.mxu0 0.0
    %1129 = vmatpush1.msra.mxu0 0.0
    %1130 = vmatprep.subr.mxu0 0.0
    %1131 = vmatpush1.msra.mxu0 0.0
    %1132 = vmatprep.subr.mxu0 0.0
    %1133 = vmatpush1.msra.mxu0 0.0
    %1134 = vmatprep.subr.mxu0 0.0
    %1135 = vmatpush1.msra.mxu0 0.0
    %1136 = vmatprep.subr.mxu0 0.0
    %1137 = vmatpush1.msra.mxu0 0.0
    %1138 = vmatprep.subr.mxu0 0.0
    %1139 = vmatpush1.msra.mxu0 0.0
    %1140 = vmatprep.subr.mxu0 0.0
    %1141 = vmatpush1.msra.mxu0 0.0
    %1142 = vmatprep.subr.mxu0 0.0
    %1143 = vmatpush1.msra.mxu0 0.0
    %1144 = vmatprep.subr.mxu0 0.0
    %1145 = vmatpush1.msra.mxu0 0.0
    %1146 = vmatprep.subr.mxu0 0.0
    %1147 = vmatpush1.msra.mxu0 0.0
    %1148 = vmatprep.subr.mxu0 0.0
    %1149 = vmatpush1.msra.mxu0 0.0
    %1150 = vmatprep.mubr.f32.mxu0 0.0
    %1151 = vmatmul.mubr.f32.gmra.mrb[0].mxu0 %v1078
    %v1152 = vpop.f32.mrb[0].mxu0
    %v1153 = vadd.f32 0.0, %v1152
    %v1154 = vpop.f32.mrb[0].mxu0
    %v1155 = vadd.f32 0.0, %v1154
    %1156 = vdwg.mxu0
    %1157 = vmatprep.subr.mxu0 %v489
    %1158 = vmatpush1.msra.mxu0 %v488
    %1159 = vmatprep.subr.mxu0 %v493
    %1160 = vmatpush1.msra.mxu0 %v492
    %1161 = vmatprep.subr.mxu0 %v497
    %1162 = vmatpush1.msra.mxu0 %v496
    %1163 = vmatprep.subr.mxu0 %v501
    %1164 = vmatpush1.msra.mxu0 %v500
    %1165 = vmatprep.subr.mxu0 %v505
    %1166 = vmatpush1.msra.mxu0 %v504
    %1167 = vmatprep.subr.mxu0 %v509
    %1168 = vmatpush1.msra.mxu0 %v508
    %1169 = vmatprep.subr.mxu0 %v513
    %1170 = vmatpush1.msra.mxu0 %v512
    %1171 = vmatprep.subr.mxu0 %v517
    %1172 = vmatpush1.msra.mxu0 %v516
    %1173 = vmatprep.subr.mxu0 %v521
    %1174 = vmatpush1.msra.mxu0 %v520
    %1175 = vmatprep.subr.mxu0 %v525
    %1176 = vmatpush1.msra.mxu0 %v524
    %1177 = vmatprep.subr.mxu0 %v529
    %1178 = vmatpush1.msra.mxu0 %v528
    %1179 = vmatprep.subr.mxu0 %v533
    %1180 = vmatpush1.msra.mxu0 %v532
    %1181 = vmatprep.subr.mxu0 %v537
    %1182 = vmatpush1.msra.mxu0 %v536
    %1183 = vmatprep.subr.mxu0 %v541
    %1184 = vmatpush1.msra.mxu0 %v540
    %1185 = vmatprep.subr.mxu0 %v545
    %1186 = vmatpush1.msra.mxu0 %v544
    %1187 = vmatprep.subr.mxu0 %v549
    %1188 = vmatpush1.msra.mxu0 %v548
    %1189 = vmatprep.subr.mxu0 0.0
    %1190 = vmatpush1.msra.mxu0 0.0
    %1191 = vmatprep.subr.mxu0 0.0
    %1192 = vmatpush1.msra.mxu0 0.0
    %1193 = vmatprep.subr.mxu0 0.0
    %1194 = vmatpush1.msra.mxu0 0.0
    %1195 = vmatprep.subr.mxu0 0.0
    %1196 = vmatpush1.msra.mxu0 0.0
    %1197 = vmatprep.subr.mxu0 0.0
    %1198 = vmatpush1.msra.mxu0 0.0
    %1199 = vmatprep.subr.mxu0 0.0
    %1200 = vmatpush1.msra.mxu0 0.0
    %1201 = vmatprep.subr.mxu0 0.0
    %1202 = vmatpush1.msra.mxu0 0.0
    %1203 = vmatprep.subr.mxu0 0.0
    %1204 = vmatpush1.msra.mxu0 0.0
    %1205 = vmatprep.subr.mxu0 0.0
    %1206 = vmatpush1.msra.mxu0 0.0
    %1207 = vmatprep.subr.mxu0 0.0
    %1208 = vmatpush1.msra.mxu0 0.0
    %1209 = vmatprep.subr.mxu0 0.0
    %1210 = vmatpush1.msra.mxu0 0.0
    %1211 = vmatprep.subr.mxu0 0.0
    %1212 = vmatpush1.msra.mxu0 0.0
    %1213 = vmatprep.subr.mxu0 0.0
    %1214 = vmatpush1.msra.mxu0 0.0
    %1215 = vmatprep.subr.mxu0 0.0
    %1216 = vmatpush1.msra.mxu0 0.0
    %1217 = vmatprep.subr.mxu0 0.0
    %1218 = vmatpush1.msra.mxu0 0.0
    %1219 = vmatprep.subr.mxu0 0.0
    %1220 = vmatpush1.msra.mxu0 0.0
    %1221 = vmatprep.mubr.f32.mxu0 0.0
    %1222 = vmatmul.mubr.f32.gmra.mrb[0].mxu0 %v1078
    %v1223 = vpop.f32.mrb[0].mxu0
    %v1224 = vadd.f32 0.0, %v1223
    %v1225 = vpop.f32.mrb[0].mxu0
    %v1226 = vadd.f32 0.0, %v1225
    %1227 = vdwg.mxu0
    %v1228 = vadd.f32 %v1082, %v1153
    %v1229 = vadd.f32 %v1083, %v1155
    %v1230 = vadd.f32 %v1084, %v1224
    %v1231 = vadd.f32 %v1085, %v1226
    %v1232 = vxor.u32 %v1228, 2147483648
    %v1233 = vmul.f32 %v1232, 1.442695
    %v1234 = vpow.pop %v1233
    %v1235 = vadd.f32 %v1234, 1.0
    %v1236 = vrcp.pop %v1235
    %v1237 = vmul.f32 1.0, %v1236
    %v1238 = vxor.u32 %v1229, 2147483648
    %v1239 = vmul.f32 %v1238, 1.442695
    %v1240 = vpow.pop %v1239
    %v1241 = vadd.f32 %v1240, 1.0
    %v1242 = vrcp.pop %v1241
    %v1243 = vmul.f32 1.0, %v1242
    %v1244 = vtanh.pop %v1230
    %v1245 = vxor.u32 %v1231, 2147483648
    %v1246 = vmul.f32 %v1245, 1.442695
    %v1247 = vpow.pop %v1246
    %v1248 = vadd.f32 %v1247, 1.0
    %v1249 = vrcp.pop %v1248
    %v1250 = vmul.f32 1.0, %v1249
    %v1251 = vmul.f32 %v1243, %v1076
    %v1252 = vmul.f32 %v1237, %v1244
    %v1253 = vadd.f32 %v1251, %v1252
    %v1254 = vtanh.pop %v1253
    %v1255 = vmul.f32 %v1250, %v1254
    %s1256 = scalar_lea.vmem [#allocation3], 24
    %1257 = vst [vmem:[%s1256] sm:$0xff] %v1255
    %s1258 = scalar_lea.vmem [#allocation2], 128
    %v1259 = vld [vmem:[%s1258] sm:$0xff]
    %v1260 = vld [vmem:[%s1258 + $0x8] sm:$0xff]
    %v1261 = vld [vmem:[%s1258 + $0x10] sm:$0xff]
    %v1262 = vld [vmem:[%s1258 + $0x18] sm:$0xff]
    %1263 = vmatprep.subr.mxu0 %v487
    %1264 = vmatpush1.msra.mxu0 %v486
    %1265 = vmatprep.subr.mxu0 %v491
    %1266 = vmatpush1.msra.mxu0 %v490
    %1267 = vmatprep.subr.mxu0 %v495
    %1268 = vmatpush1.msra.mxu0 %v494
    %1269 = vmatprep.subr.mxu0 %v499
    %1270 = vmatpush1.msra.mxu0 %v498
    %1271 = vmatprep.subr.mxu0 %v503
    %1272 = vmatpush1.msra.mxu0 %v502
    %1273 = vmatprep.subr.mxu0 %v507
    %1274 = vmatpush1.msra.mxu0 %v506
    %1275 = vmatprep.subr.mxu0 %v511
    %1276 = vmatpush1.msra.mxu0 %v510
    %1277 = vmatprep.subr.mxu0 %v515
    %1278 = vmatpush1.msra.mxu0 %v514
    %1279 = vmatprep.subr.mxu0 %v519
    %1280 = vmatpush1.msra.mxu0 %v518
    %1281 = vmatprep.subr.mxu0 %v523
    %1282 = vmatpush1.msra.mxu0 %v522
    %1283 = vmatprep.subr.mxu0 %v527
    %1284 = vmatpush1.msra.mxu0 %v526
    %1285 = vmatprep.subr.mxu0 %v531
    %1286 = vmatpush1.msra.mxu0 %v530
    %1287 = vmatprep.subr.mxu0 %v535
    %1288 = vmatpush1.msra.mxu0 %v534
    %1289 = vmatprep.subr.mxu0 %v539
    %1290 = vmatpush1.msra.mxu0 %v538
    %1291 = vmatprep.subr.mxu0 %v543
    %1292 = vmatpush1.msra.mxu0 %v542
    %1293 = vmatprep.subr.mxu0 %v547
    %1294 = vmatpush1.msra.mxu0 %v546
    %1295 = vmatprep.subr.mxu0 0.0
    %1296 = vmatpush1.msra.mxu0 0.0
    %1297 = vmatprep.subr.mxu0 0.0
    %1298 = vmatpush1.msra.mxu0 0.0
    %1299 = vmatprep.subr.mxu0 0.0
    %1300 = vmatpush1.msra.mxu0 0.0
    %1301 = vmatprep.subr.mxu0 0.0
    %1302 = vmatpush1.msra.mxu0 0.0
    %1303 = vmatprep.subr.mxu0 0.0
    %1304 = vmatpush1.msra.mxu0 0.0
    %1305 = vmatprep.subr.mxu0 0.0
    %1306 = vmatpush1.msra.mxu0 0.0
    %1307 = vmatprep.subr.mxu0 0.0
    %1308 = vmatpush1.msra.mxu0 0.0
    %1309 = vmatprep.subr.mxu0 0.0
    %1310 = vmatpush1.msra.mxu0 0.0
    %1311 = vmatprep.subr.mxu0 0.0
    %1312 = vmatpush1.msra.mxu0 0.0
    %1313 = vmatprep.subr.mxu0 0.0
    %1314 = vmatpush1.msra.mxu0 0.0
    %1315 = vmatprep.subr.mxu0 0.0
    %1316 = vmatpush1.msra.mxu0 0.0
    %1317 = vmatprep.subr.mxu0 0.0
    %1318 = vmatpush1.msra.mxu0 0.0
    %1319 = vmatprep.subr.mxu0 0.0
    %1320 = vmatpush1.msra.mxu0 0.0
    %1321 = vmatprep.subr.mxu0 0.0
    %1322 = vmatpush1.msra.mxu0 0.0
    %1323 = vmatprep.subr.mxu0 0.0
    %1324 = vmatpush1.msra.mxu0 0.0
    %1325 = vmatprep.subr.mxu0 0.0
    %1326 = vmatpush1.msra.mxu0 0.0
    %1327 = vmatprep.mubr.f32.mxu0 0.0
    %1328 = vmatmul.mubr.f32.gmra.mrb[0].mxu0 %v1255
    %v1329 = vpop.f32.mrb[0].mxu0
    %v1330 = vadd.f32 0.0, %v1329
    %v1331 = vpop.f32.mrb[0].mxu0
    %v1332 = vadd.f32 0.0, %v1331
    %1333 = vdwg.mxu0
    %1334 = vmatprep.subr.mxu0 %v489
    %1335 = vmatpush1.msra.mxu0 %v488
    %1336 = vmatprep.subr.mxu0 %v493
    %1337 = vmatpush1.msra.mxu0 %v492
    %1338 = vmatprep.subr.mxu0 %v497
    %1339 = vmatpush1.msra.mxu0 %v496
    %1340 = vmatprep.subr.mxu0 %v501
    %1341 = vmatpush1.msra.mxu0 %v500
    %1342 = vmatprep.subr.mxu0 %v505
    %1343 = vmatpush1.msra.mxu0 %v504
    %1344 = vmatprep.subr.mxu0 %v509
    %1345 = vmatpush1.msra.mxu0 %v508
    %1346 = vmatprep.subr.mxu0 %v513
    %1347 = vmatpush1.msra.mxu0 %v512
    %1348 = vmatprep.subr.mxu0 %v517
    %1349 = vmatpush1.msra.mxu0 %v516
    %1350 = vmatprep.subr.mxu0 %v521
    %1351 = vmatpush1.msra.mxu0 %v520
    %1352 = vmatprep.subr.mxu0 %v525
    %1353 = vmatpush1.msra.mxu0 %v524
    %1354 = vmatprep.subr.mxu0 %v529
    %1355 = vmatpush1.msra.mxu0 %v528
    %1356 = vmatprep.subr.mxu0 %v533
    %1357 = vmatpush1.msra.mxu0 %v532
    %1358 = vmatprep.subr.mxu0 %v537
    %1359 = vmatpush1.msra.mxu0 %v536
    %1360 = vmatprep.subr.mxu0 %v541
    %1361 = vmatpush1.msra.mxu0 %v540
    %1362 = vmatprep.subr.mxu0 %v545
    %1363 = vmatpush1.msra.mxu0 %v544
    %1364 = vmatprep.subr.mxu0 %v549
    %1365 = vmatpush1.msra.mxu0 %v548
    %1366 = vmatprep.subr.mxu0 0.0
    %1367 = vmatpush1.msra.mxu0 0.0
    %1368 = vmatprep.subr.mxu0 0.0
    %1369 = vmatpush1.msra.mxu0 0.0
    %1370 = vmatprep.subr.mxu0 0.0
    %1371 = vmatpush1.msra.mxu0 0.0
    %1372 = vmatprep.subr.mxu0 0.0
    %1373 = vmatpush1.msra.mxu0 0.0
    %1374 = vmatprep.subr.mxu0 0.0
    %1375 = vmatpush1.msra.mxu0 0.0
    %1376 = vmatprep.subr.mxu0 0.0
    %1377 = vmatpush1.msra.mxu0 0.0
    %1378 = vmatprep.subr.mxu0 0.0
    %1379 = vmatpush1.msra.mxu0 0.0
    %1380 = vmatprep.subr.mxu0 0.0
    %1381 = vmatpush1.msra.mxu0 0.0
    %1382 = vmatprep.subr.mxu0 0.0
    %1383 = vmatpush1.msra.mxu0 0.0
    %1384 = vmatprep.subr.mxu0 0.0
    %1385 = vmatpush1.msra.mxu0 0.0
    %1386 = vmatprep.subr.mxu0 0.0
    %1387 = vmatpush1.msra.mxu0 0.0
    %1388 = vmatprep.subr.mxu0 0.0
    %1389 = vmatpush1.msra.mxu0 0.0
    %1390 = vmatprep.subr.mxu0 0.0
    %1391 = vmatpush1.msra.mxu0 0.0
    %1392 = vmatprep.subr.mxu0 0.0
    %1393 = vmatpush1.msra.mxu0 0.0
    %1394 = vmatprep.subr.mxu0 0.0
    %1395 = vmatpush1.msra.mxu0 0.0
    %1396 = vmatprep.subr.mxu0 0.0
    %1397 = vmatpush1.msra.mxu0 0.0
    %1398 = vmatprep.mubr.f32.mxu0 0.0
    %1399 = vmatmul.mubr.f32.gmra.mrb[0].mxu0 %v1255
    %v1400 = vpop.f32.mrb[0].mxu0
    %v1401 = vadd.f32 0.0, %v1400
    %v1402 = vpop.f32.mrb[0].mxu0
    %v1403 = vadd.f32 0.0, %v1402
    %1404 = vdwg.mxu0
    %v1405 = vadd.f32 %v1259, %v1330
    %v1406 = vadd.f32 %v1260, %v1332
    %v1407 = vadd.f32 %v1261, %v1401
    %v1408 = vadd.f32 %v1262, %v1403
    %v1409 = vxor.u32 %v1405, 2147483648
    %v1410 = vmul.f32 %v1409, 1.442695
    %v1411 = vpow.pop %v1410
    %v1412 = vadd.f32 %v1411, 1.0
    %v1413 = vrcp.pop %v1412
    %v1414 = vmul.f32 1.0, %v1413
    %v1415 = vxor.u32 %v1406, 2147483648
    %v1416 = vmul.f32 %v1415, 1.442695
    %v1417 = vpow.pop %v1416
    %v1418 = vadd.f32 %v1417, 1.0
    %v1419 = vrcp.pop %v1418
    %v1420 = vmul.f32 1.0, %v1419
    %v1421 = vtanh.pop %v1407
    %v1422 = vxor.u32 %v1408, 2147483648
    %v1423 = vmul.f32 %v1422, 1.442695
    %v1424 = vpow.pop %v1423
    %v1425 = vadd.f32 %v1424, 1.0
    %v1426 = vrcp.pop %v1425
    %v1427 = vmul.f32 1.0, %v1426
    %v1428 = vmul.f32 %v1420, %v1253
    %v1429 = vmul.f32 %v1414, %v1421
    %v1430 = vadd.f32 %v1428, %v1429
    %v1431 = vtanh.pop %v1430
    %v1432 = vmul.f32 %v1427, %v1431
    %s1433 = scalar_lea.vmem [#allocation3], 32
    %1434 = vst [vmem:[%s1433] sm:$0xff] %v1432
    %s1435 = scalar_lea.vmem [#allocation2], 160
    %v1436 = vld [vmem:[%s1435] sm:$0xff]
    %v1437 = vld [vmem:[%s1435 + $0x8] sm:$0xff]
    %v1438 = vld [vmem:[%s1435 + $0x10] sm:$0xff]
    %v1439 = vld [vmem:[%s1435 + $0x18] sm:$0xff]
    %1440 = vmatprep.subr.mxu0 %v487
    %1441 = vmatpush1.msra.mxu0 %v486
    %1442 = vmatprep.subr.mxu0 %v491
    %1443 = vmatpush1.msra.mxu0 %v490
    %1444 = vmatprep.subr.mxu0 %v495
    %1445 = vmatpush1.msra.mxu0 %v494
    %1446 = vmatprep.subr.mxu0 %v499
    %1447 = vmatpush1.msra.mxu0 %v498
    %1448 = vmatprep.subr.mxu0 %v503
    %1449 = vmatpush1.msra.mxu0 %v502
    %1450 = vmatprep.subr.mxu0 %v507
    %1451 = vmatpush1.msra.mxu0 %v506
    %1452 = vmatprep.subr.mxu0 %v511
    %1453 = vmatpush1.msra.mxu0 %v510
    %1454 = vmatprep.subr.mxu0 %v515
    %1455 = vmatpush1.msra.mxu0 %v514
    %1456 = vmatprep.subr.mxu0 %v519
    %1457 = vmatpush1.msra.mxu0 %v518
    %1458 = vmatprep.subr.mxu0 %v523
    %1459 = vmatpush1.msra.mxu0 %v522
    %1460 = vmatprep.subr.mxu0 %v527
    %1461 = vmatpush1.msra.mxu0 %v526
    %1462 = vmatprep.subr.mxu0 %v531
    %1463 = vmatpush1.msra.mxu0 %v530
    %1464 = vmatprep.subr.mxu0 %v535
    %1465 = vmatpush1.msra.mxu0 %v534
    %1466 = vmatprep.subr.mxu0 %v539
    %1467 = vmatpush1.msra.mxu0 %v538
    %1468 = vmatprep.subr.mxu0 %v543
    %1469 = vmatpush1.msra.mxu0 %v542
    %1470 = vmatprep.subr.mxu0 %v547
    %1471 = vmatpush1.msra.mxu0 %v546
    %1472 = vmatprep.subr.mxu0 0.0
    %1473 = vmatpush1.msra.mxu0 0.0
    %1474 = vmatprep.subr.mxu0 0.0
    %1475 = vmatpush1.msra.mxu0 0.0
    %1476 = vmatprep.subr.mxu0 0.0
    %1477 = vmatpush1.msra.mxu0 0.0
    %1478 = vmatprep.subr.mxu0 0.0
    %1479 = vmatpush1.msra.mxu0 0.0
    %1480 = vmatprep.subr.mxu0 0.0
    %1481 = vmatpush1.msra.mxu0 0.0
    %1482 = vmatprep.subr.mxu0 0.0
    %1483 = vmatpush1.msra.mxu0 0.0
    %1484 = vmatprep.subr.mxu0 0.0
    %1485 = vmatpush1.msra.mxu0 0.0
    %1486 = vmatprep.subr.mxu0 0.0
    %1487 = vmatpush1.msra.mxu0 0.0
    %1488 = vmatprep.subr.mxu0 0.0
    %1489 = vmatpush1.msra.mxu0 0.0
    %1490 = vmatprep.subr.mxu0 0.0
    %1491 = vmatpush1.msra.mxu0 0.0
    %1492 = vmatprep.subr.mxu0 0.0
    %1493 = vmatpush1.msra.mxu0 0.0
    %1494 = vmatprep.subr.mxu0 0.0
    %1495 = vmatpush1.msra.mxu0 0.0
    %1496 = vmatprep.subr.mxu0 0.0
    %1497 = vmatpush1.msra.mxu0 0.0
    %1498 = vmatprep.subr.mxu0 0.0
    %1499 = vmatpush1.msra.mxu0 0.0
    %1500 = vmatprep.subr.mxu0 0.0
    %1501 = vmatpush1.msra.mxu0 0.0
    %1502 = vmatprep.subr.mxu0 0.0
    %1503 = vmatpush1.msra.mxu0 0.0
    %1504 = vmatprep.mubr.f32.mxu0 0.0
    %1505 = vmatmul.mubr.f32.gmra.mrb[0].mxu0 %v1432
    %v1506 = vpop.f32.mrb[0].mxu0
    %v1507 = vadd.f32 0.0, %v1506
    %v1508 = vpop.f32.mrb[0].mxu0
    %v1509 = vadd.f32 0.0, %v1508
    %1510 = vdwg.mxu0
    %1511 = vmatprep.subr.mxu0 %v489
    %1512 = vmatpush1.msra.mxu0 %v488
    %1513 = vmatprep.subr.mxu0 %v493
    %1514 = vmatpush1.msra.mxu0 %v492
    %1515 = vmatprep.subr.mxu0 %v497
    %1516 = vmatpush1.msra.mxu0 %v496
    %1517 = vmatprep.subr.mxu0 %v501
    %1518 = vmatpush1.msra.mxu0 %v500
    %1519 = vmatprep.subr.mxu0 %v505
    %1520 = vmatpush1.msra.mxu0 %v504
    %1521 = vmatprep.subr.mxu0 %v509
    %1522 = vmatpush1.msra.mxu0 %v508
    %1523 = vmatprep.subr.mxu0 %v513
    %1524 = vmatpush1.msra.mxu0 %v512
    %1525 = vmatprep.subr.mxu0 %v517
    %1526 = vmatpush1.msra.mxu0 %v516
    %1527 = vmatprep.subr.mxu0 %v521
    %1528 = vmatpush1.msra.mxu0 %v520
    %1529 = vmatprep.subr.mxu0 %v525
    %1530 = vmatpush1.msra.mxu0 %v524
    %1531 = vmatprep.subr.mxu0 %v529
    %1532 = vmatpush1.msra.mxu0 %v528
    %1533 = vmatprep.subr.mxu0 %v533
    %1534 = vmatpush1.msra.mxu0 %v532
    %1535 = vmatprep.subr.mxu0 %v537
    %1536 = vmatpush1.msra.mxu0 %v536
    %1537 = vmatprep.subr.mxu0 %v541
    %1538 = vmatpush1.msra.mxu0 %v540
    %1539 = vmatprep.subr.mxu0 %v545
    %1540 = vmatpush1.msra.mxu0 %v544
    %1541 = vmatprep.subr.mxu0 %v549
    %1542 = vmatpush1.msra.mxu0 %v548
    %1543 = vmatprep.subr.mxu0 0.0
    %1544 = vmatpush1.msra.mxu0 0.0
    %1545 = vmatprep.subr.mxu0 0.0
    %1546 = vmatpush1.msra.mxu0 0.0
    %1547 = vmatprep.subr.mxu0 0.0
    %1548 = vmatpush1.msra.mxu0 0.0
    %1549 = vmatprep.subr.mxu0 0.0
    %1550 = vmatpush1.msra.mxu0 0.0
    %1551 = vmatprep.subr.mxu0 0.0
    %1552 = vmatpush1.msra.mxu0 0.0
    %1553 = vmatprep.subr.mxu0 0.0
    %1554 = vmatpush1.msra.mxu0 0.0
    %1555 = vmatprep.subr.mxu0 0.0
    %1556 = vmatpush1.msra.mxu0 0.0
    %1557 = vmatprep.subr.mxu0 0.0
    %1558 = vmatpush1.msra.mxu0 0.0
    %1559 = vmatprep.subr.mxu0 0.0
    %1560 = vmatpush1.msra.mxu0 0.0
    %1561 = vmatprep.subr.mxu0 0.0
    %1562 = vmatpush1.msra.mxu0 0.0
    %1563 = vmatprep.subr.mxu0 0.0
    %1564 = vmatpush1.msra.mxu0 0.0
    %1565 = vmatprep.subr.mxu0 0.0
    %1566 = vmatpush1.msra.mxu0 0.0
    %1567 = vmatprep.subr.mxu0 0.0
    %1568 = vmatpush1.msra.mxu0 0.0
    %1569 = vmatprep.subr.mxu0 0.0
    %1570 = vmatpush1.msra.mxu0 0.0
    %1571 = vmatprep.subr.mxu0 0.0
    %1572 = vmatpush1.msra.mxu0 0.0
    %1573 = vmatprep.subr.mxu0 0.0
    %1574 = vmatpush1.msra.mxu0 0.0
    %1575 = vmatprep.mubr.f32.mxu0 0.0
    %1576 = vmatmul.mubr.f32.gmra.mrb[0].mxu0 %v1432
    %v1577 = vpop.f32.mrb[0].mxu0
    %v1578 = vadd.f32 0.0, %v1577
    %v1579 = vpop.f32.mrb[0].mxu0
    %v1580 = vadd.f32 0.0, %v1579
    %1581 = vdwg.mxu0
    %v1582 = vadd.f32 %v1436, %v1507
    %v1583 = vadd.f32 %v1437, %v1509
    %v1584 = vadd.f32 %v1438, %v1578
    %v1585 = vadd.f32 %v1439, %v1580
    %v1586 = vxor.u32 %v1582, 2147483648
    %v1587 = vmul.f32 %v1586, 1.442695
    %v1588 = vpow.pop %v1587
    %v1589 = vadd.f32 %v1588, 1.0
    %v1590 = vrcp.pop %v1589
    %v1591 = vmul.f32 1.0, %v1590
    %v1592 = vxor.u32 %v1583, 2147483648
    %v1593 = vmul.f32 %v1592, 1.442695
    %v1594 = vpow.pop %v1593
    %v1595 = vadd.f32 %v1594, 1.0
    %v1596 = vrcp.pop %v1595
    %v1597 = vmul.f32 1.0, %v1596
    %v1598 = vtanh.pop %v1584
    %v1599 = vxor.u32 %v1585, 2147483648
    %v1600 = vmul.f32 %v1599, 1.442695
    %v1601 = vpow.pop %v1600
    %v1602 = vadd.f32 %v1601, 1.0
    %v1603 = vrcp.pop %v1602
    %v1604 = vmul.f32 1.0, %v1603
    %v1605 = vmul.f32 %v1597, %v1430
    %v1606 = vmul.f32 %v1591, %v1598
    %v1607 = vadd.f32 %v1605, %v1606
    %v1608 = vtanh.pop %v1607
    %v1609 = vmul.f32 %v1604, %v1608
    %s1610 = scalar_lea.vmem [#allocation3], 40
    %1611 = vst [vmem:[%s1610] sm:$0xff] %v1609
    %s1612 = scalar_lea.vmem [#allocation2], 192
    %v1613 = vld [vmem:[%s1612] sm:$0xff]
    %v1614 = vld [vmem:[%s1612 + $0x8] sm:$0xff]
    %v1615 = vld [vmem:[%s1612 + $0x10] sm:$0xff]
    %v1616 = vld [vmem:[%s1612 + $0x18] sm:$0xff]
    %1617 = vmatprep.subr.mxu0 %v487
    %1618 = vmatpush1.msra.mxu0 %v486
    %1619 = vmatprep.subr.mxu0 %v491
    %1620 = vmatpush1.msra.mxu0 %v490
    %1621 = vmatprep.subr.mxu0 %v495
    %1622 = vmatpush1.msra.mxu0 %v494
    %1623 = vmatprep.subr.mxu0 %v499
    %1624 = vmatpush1.msra.mxu0 %v498
    %1625 = vmatprep.subr.mxu0 %v503
    %1626 = vmatpush1.msra.mxu0 %v502
    %1627 = vmatprep.subr.mxu0 %v507
    %1628 = vmatpush1.msra.mxu0 %v506
    %1629 = vmatprep.subr.mxu0 %v511
    %1630 = vmatpush1.msra.mxu0 %v510
    %1631 = vmatprep.subr.mxu0 %v515
    %1632 = vmatpush1.msra.mxu0 %v514
    %1633 = vmatprep.subr.mxu0 %v519
    %1634 = vmatpush1.msra.mxu0 %v518
    %1635 = vmatprep.subr.mxu0 %v523
    %1636 = vmatpush1.msra.mxu0 %v522
    %1637 = vmatprep.subr.mxu0 %v527
    %1638 = vmatpush1.msra.mxu0 %v526
    %1639 = vmatprep.subr.mxu0 %v531
    %1640 = vmatpush1.msra.mxu0 %v530
    %1641 = vmatprep.subr.mxu0 %v535
    %1642 = vmatpush1.msra.mxu0 %v534
    %1643 = vmatprep.subr.mxu0 %v539
    %1644 = vmatpush1.msra.mxu0 %v538
    %1645 = vmatprep.subr.mxu0 %v543
    %1646 = vmatpush1.msra.mxu0 %v542
    %1647 = vmatprep.subr.mxu0 %v547
    %1648 = vmatpush1.msra.mxu0 %v546
    %1649 = vmatprep.subr.mxu0 0.0
    %1650 = vmatpush1.msra.mxu0 0.0
    %1651 = vmatprep.subr.mxu0 0.0
    %1652 = vmatpush1.msra.mxu0 0.0
    %1653 = vmatprep.subr.mxu0 0.0
    %1654 = vmatpush1.msra.mxu0 0.0
    %1655 = vmatprep.subr.mxu0 0.0
    %1656 = vmatpush1.msra.mxu0 0.0
    %1657 = vmatprep.subr.mxu0 0.0
    %1658 = vmatpush1.msra.mxu0 0.0
    %1659 = vmatprep.subr.mxu0 0.0
    %1660 = vmatpush1.msra.mxu0 0.0
    %1661 = vmatprep.subr.mxu0 0.0
    %1662 = vmatpush1.msra.mxu0 0.0
    %1663 = vmatprep.subr.mxu0 0.0
    %1664 = vmatpush1.msra.mxu0 0.0
    %1665 = vmatprep.subr.mxu0 0.0
    %1666 = vmatpush1.msra.mxu0 0.0
    %1667 = vmatprep.subr.mxu0 0.0
    %1668 = vmatpush1.msra.mxu0 0.0
    %1669 = vmatprep.subr.mxu0 0.0
    %1670 = vmatpush1.msra.mxu0 0.0
    %1671 = vmatprep.subr.mxu0 0.0
    %1672 = vmatpush1.msra.mxu0 0.0
    %1673 = vmatprep.subr.mxu0 0.0
    %1674 = vmatpush1.msra.mxu0 0.0
    %1675 = vmatprep.subr.mxu0 0.0
    %1676 = vmatpush1.msra.mxu0 0.0
    %1677 = vmatprep.subr.mxu0 0.0
    %1678 = vmatpush1.msra.mxu0 0.0
    %1679 = vmatprep.subr.mxu0 0.0
    %1680 = vmatpush1.msra.mxu0 0.0
    %1681 = vmatprep.mubr.f32.mxu0 0.0
    %1682 = vmatmul.mubr.f32.gmra.mrb[0].mxu0 %v1609
    %v1683 = vpop.f32.mrb[0].mxu0
    %v1684 = vadd.f32 0.0, %v1683
    %v1685 = vpop.f32.mrb[0].mxu0
    %v1686 = vadd.f32 0.0, %v1685
    %1687 = vdwg.mxu0
    %1688 = vmatprep.subr.mxu0 %v489
    %1689 = vmatpush1.msra.mxu0 %v488
    %1690 = vmatprep.subr.mxu0 %v493
    %1691 = vmatpush1.msra.mxu0 %v492
    %1692 = vmatprep.subr.mxu0 %v497
    %1693 = vmatpush1.msra.mxu0 %v496
    %1694 = vmatprep.subr.mxu0 %v501
    %1695 = vmatpush1.msra.mxu0 %v500
    %1696 = vmatprep.subr.mxu0 %v505
    %1697 = vmatpush1.msra.mxu0 %v504
    %1698 = vmatprep.subr.mxu0 %v509
    %1699 = vmatpush1.msra.mxu0 %v508
    %1700 = vmatprep.subr.mxu0 %v513
    %1701 = vmatpush1.msra.mxu0 %v512
    %1702 = vmatprep.subr.mxu0 %v517
    %1703 = vmatpush1.msra.mxu0 %v516
    %1704 = vmatprep.subr.mxu0 %v521
    %1705 = vmatpush1.msra.mxu0 %v520
    %1706 = vmatprep.subr.mxu0 %v525
    %1707 = vmatpush1.msra.mxu0 %v524
    %1708 = vmatprep.subr.mxu0 %v529
    %1709 = vmatpush1.msra.mxu0 %v528
    %1710 = vmatprep.subr.mxu0 %v533
    %1711 = vmatpush1.msra.mxu0 %v532
    %1712 = vmatprep.subr.mxu0 %v537
    %1713 = vmatpush1.msra.mxu0 %v536
    %1714 = vmatprep.subr.mxu0 %v541
    %1715 = vmatpush1.msra.mxu0 %v540
    %1716 = vmatprep.subr.mxu0 %v545
    %1717 = vmatpush1.msra.mxu0 %v544
    %1718 = vmatprep.subr.mxu0 %v549
    %1719 = vmatpush1.msra.mxu0 %v548
    %1720 = vmatprep.subr.mxu0 0.0
    %1721 = vmatpush1.msra.mxu0 0.0
    %1722 = vmatprep.subr.mxu0 0.0
    %1723 = vmatpush1.msra.mxu0 0.0
    %1724 = vmatprep.subr.mxu0 0.0
    %1725 = vmatpush1.msra.mxu0 0.0
    %1726 = vmatprep.subr.mxu0 0.0
    %1727 = vmatpush1.msra.mxu0 0.0
    %1728 = vmatprep.subr.mxu0 0.0
    %1729 = vmatpush1.msra.mxu0 0.0
    %1730 = vmatprep.subr.mxu0 0.0
    %1731 = vmatpush1.msra.mxu0 0.0
    %1732 = vmatprep.subr.mxu0 0.0
    %1733 = vmatpush1.msra.mxu0 0.0
    %1734 = vmatprep.subr.mxu0 0.0
    %1735 = vmatpush1.msra.mxu0 0.0
    %1736 = vmatprep.subr.mxu0 0.0
    %1737 = vmatpush1.msra.mxu0 0.0
    %1738 = vmatprep.subr.mxu0 0.0
    %1739 = vmatpush1.msra.mxu0 0.0
    %1740 = vmatprep.subr.mxu0 0.0
    %1741 = vmatpush1.msra.mxu0 0.0
    %1742 = vmatprep.subr.mxu0 0.0
    %1743 = vmatpush1.msra.mxu0 0.0
    %1744 = vmatprep.subr.mxu0 0.0
    %1745 = vmatpush1.msra.mxu0 0.0
    %1746 = vmatprep.subr.mxu0 0.0
    %1747 = vmatpush1.msra.mxu0 0.0
    %1748 = vmatprep.subr.mxu0 0.0
    %1749 = vmatpush1.msra.mxu0 0.0
    %1750 = vmatprep.subr.mxu0 0.0
    %1751 = vmatpush1.msra.mxu0 0.0
    %1752 = vmatprep.mubr.f32.mxu0 0.0
    %1753 = vmatmul.mubr.f32.gmra.mrb[0].mxu0 %v1609
    %v1754 = vpop.f32.mrb[0].mxu0
    %v1755 = vadd.f32 0.0, %v1754
    %v1756 = vpop.f32.mrb[0].mxu0
    %v1757 = vadd.f32 0.0, %v1756
    %1758 = vdwg.mxu0
    %v1759 = vadd.f32 %v1613, %v1684
    %v1760 = vadd.f32 %v1614, %v1686
    %v1761 = vadd.f32 %v1615, %v1755
    %v1762 = vadd.f32 %v1616, %v1757
    %v1763 = vxor.u32 %v1759, 2147483648
    %v1764 = vmul.f32 %v1763, 1.442695
    %v1765 = vpow.pop %v1764
    %v1766 = vadd.f32 %v1765, 1.0
    %v1767 = vrcp.pop %v1766
    %v1768 = vmul.f32 1.0, %v1767
    %v1769 = vxor.u32 %v1760, 2147483648
    %v1770 = vmul.f32 %v1769, 1.442695
    %v1771 = vpow.pop %v1770
    %v1772 = vadd.f32 %v1771, 1.0
    %v1773 = vrcp.pop %v1772
    %v1774 = vmul.f32 1.0, %v1773
    %v1775 = vtanh.pop %v1761
    %v1776 = vxor.u32 %v1762, 2147483648
    %v1777 = vmul.f32 %v1776, 1.442695
    %v1778 = vpow.pop %v1777
    %v1779 = vadd.f32 %v1778, 1.0
    %v1780 = vrcp.pop %v1779
    %v1781 = vmul.f32 1.0, %v1780
    %v1782 = vmul.f32 %v1774, %v1607
    %v1783 = vmul.f32 %v1768, %v1775
    %v1784 = vadd.f32 %v1782, %v1783
    %v1785 = vtanh.pop %v1784
    %v1786 = vmul.f32 %v1781, %v1785
    %s1787 = scalar_lea.vmem [#allocation3], 48
    %1788 = vst [vmem:[%s1787] sm:$0xff] %v1786
    %s1789 = scalar_lea.vmem [#allocation2], 224
    %v1790 = vld [vmem:[%s1789] sm:$0xff]
    %v1791 = vld [vmem:[%s1789 + $0x8] sm:$0xff]
    %v1792 = vld [vmem:[%s1789 + $0x10] sm:$0xff]
    %v1793 = vld [vmem:[%s1789 + $0x18] sm:$0xff]
    %1794 = vmatprep.subr.mxu0 %v487
    %1795 = vmatpush1.msra.mxu0 %v486
    %1796 = vmatprep.subr.mxu0 %v491
    %1797 = vmatpush1.msra.mxu0 %v490
    %1798 = vmatprep.subr.mxu0 %v495
    %1799 = vmatpush1.msra.mxu0 %v494
    %1800 = vmatprep.subr.mxu0 %v499
    %1801 = vmatpush1.msra.mxu0 %v498
    %1802 = vmatprep.subr.mxu0 %v503
    %1803 = vmatpush1.msra.mxu0 %v502
    %1804 = vmatprep.subr.mxu0 %v507
    %1805 = vmatpush1.msra.mxu0 %v506
    %1806 = vmatprep.subr.mxu0 %v511
    %1807 = vmatpush1.msra.mxu0 %v510
    %1808 = vmatprep.subr.mxu0 %v515
    %1809 = vmatpush1.msra.mxu0 %v514
    %1810 = vmatprep.subr.mxu0 %v519
    %1811 = vmatpush1.msra.mxu0 %v518
    %1812 = vmatprep.subr.mxu0 %v523
    %1813 = vmatpush1.msra.mxu0 %v522
    %1814 = vmatprep.subr.mxu0 %v527
    %1815 = vmatpush1.msra.mxu0 %v526
    %1816 = vmatprep.subr.mxu0 %v531
    %1817 = vmatpush1.msra.mxu0 %v530
    %1818 = vmatprep.subr.mxu0 %v535
    %1819 = vmatpush1.msra.mxu0 %v534
    %1820 = vmatprep.subr.mxu0 %v539
    %1821 = vmatpush1.msra.mxu0 %v538
    %1822 = vmatprep.subr.mxu0 %v543
    %1823 = vmatpush1.msra.mxu0 %v542
    %1824 = vmatprep.subr.mxu0 %v547
    %1825 = vmatpush1.msra.mxu0 %v546
    %1826 = vmatprep.subr.mxu0 0.0
    %1827 = vmatpush1.msra.mxu0 0.0
    %1828 = vmatprep.subr.mxu0 0.0
    %1829 = vmatpush1.msra.mxu0 0.0
    %1830 = vmatprep.subr.mxu0 0.0
    %1831 = vmatpush1.msra.mxu0 0.0
    %1832 = vmatprep.subr.mxu0 0.0
    %1833 = vmatpush1.msra.mxu0 0.0
    %1834 = vmatprep.subr.mxu0 0.0
    %1835 = vmatpush1.msra.mxu0 0.0
    %1836 = vmatprep.subr.mxu0 0.0
    %1837 = vmatpush1.msra.mxu0 0.0
    %1838 = vmatprep.subr.mxu0 0.0
    %1839 = vmatpush1.msra.mxu0 0.0
    %1840 = vmatprep.subr.mxu0 0.0
    %1841 = vmatpush1.msra.mxu0 0.0
    %1842 = vmatprep.subr.mxu0 0.0
    %1843 = vmatpush1.msra.mxu0 0.0
    %1844 = vmatprep.subr.mxu0 0.0
    %1845 = vmatpush1.msra.mxu0 0.0
    %1846 = vmatprep.subr.mxu0 0.0
    %1847 = vmatpush1.msra.mxu0 0.0
    %1848 = vmatprep.subr.mxu0 0.0
    %1849 = vmatpush1.msra.mxu0 0.0
    %1850 = vmatprep.subr.mxu0 0.0
    %1851 = vmatpush1.msra.mxu0 0.0
    %1852 = vmatprep.subr.mxu0 0.0
    %1853 = vmatpush1.msra.mxu0 0.0
    %1854 = vmatprep.subr.mxu0 0.0
    %1855 = vmatpush1.msra.mxu0 0.0
    %1856 = vmatprep.subr.mxu0 0.0
    %1857 = vmatpush1.msra.mxu0 0.0
    %1858 = vmatprep.mubr.f32.mxu0 0.0
    %1859 = vmatmul.mubr.f32.gmra.mrb[0].mxu0 %v1786
    %v1860 = vpop.f32.mrb[0].mxu0
    %v1861 = vadd.f32 0.0, %v1860
    %v1862 = vpop.f32.mrb[0].mxu0
    %v1863 = vadd.f32 0.0, %v1862
    %1864 = vdwg.mxu0
    %1865 = vmatprep.subr.mxu0 %v489
    %1866 = vmatpush1.msra.mxu0 %v488
    %1867 = vmatprep.subr.mxu0 %v493
    %1868 = vmatpush1.msra.mxu0 %v492
    %1869 = vmatprep.subr.mxu0 %v497
    %1870 = vmatpush1.msra.mxu0 %v496
    %1871 = vmatprep.subr.mxu0 %v501
    %1872 = vmatpush1.msra.mxu0 %v500
    %1873 = vmatprep.subr.mxu0 %v505
    %1874 = vmatpush1.msra.mxu0 %v504
    %1875 = vmatprep.subr.mxu0 %v509
    %1876 = vmatpush1.msra.mxu0 %v508
    %1877 = vmatprep.subr.mxu0 %v513
    %1878 = vmatpush1.msra.mxu0 %v512
    %1879 = vmatprep.subr.mxu0 %v517
    %1880 = vmatpush1.msra.mxu0 %v516
    %1881 = vmatprep.subr.mxu0 %v521
    %1882 = vmatpush1.msra.mxu0 %v520
    %1883 = vmatprep.subr.mxu0 %v525
    %1884 = vmatpush1.msra.mxu0 %v524
    %1885 = vmatprep.subr.mxu0 %v529
    %1886 = vmatpush1.msra.mxu0 %v528
    %1887 = vmatprep.subr.mxu0 %v533
    %1888 = vmatpush1.msra.mxu0 %v532
    %1889 = vmatprep.subr.mxu0 %v537
    %1890 = vmatpush1.msra.mxu0 %v536
    %1891 = vmatprep.subr.mxu0 %v541
    %1892 = vmatpush1.msra.mxu0 %v540
    %1893 = vmatprep.subr.mxu0 %v545
    %1894 = vmatpush1.msra.mxu0 %v544
    %1895 = vmatprep.subr.mxu0 %v549
    %1896 = vmatpush1.msra.mxu0 %v548
    %1897 = vmatprep.subr.mxu0 0.0
    %1898 = vmatpush1.msra.mxu0 0.0
    %1899 = vmatprep.subr.mxu0 0.0
    %1900 = vmatpush1.msra.mxu0 0.0
    %1901 = vmatprep.subr.mxu0 0.0
    %1902 = vmatpush1.msra.mxu0 0.0
    %1903 = vmatprep.subr.mxu0 0.0
    %1904 = vmatpush1.msra.mxu0 0.0
    %1905 = vmatprep.subr.mxu0 0.0
    %1906 = vmatpush1.msra.mxu0 0.0
    %1907 = vmatprep.subr.mxu0 0.0
    %1908 = vmatpush1.msra.mxu0 0.0
    %1909 = vmatprep.subr.mxu0 0.0
    %1910 = vmatpush1.msra.mxu0 0.0
    %1911 = vmatprep.subr.mxu0 0.0
    %1912 = vmatpush1.msra.mxu0 0.0
    %1913 = vmatprep.subr.mxu0 0.0
    %1914 = vmatpush1.msra.mxu0 0.0
    %1915 = vmatprep.subr.mxu0 0.0
    %1916 = vmatpush1.msra.mxu0 0.0
    %1917 = vmatprep.subr.mxu0 0.0
    %1918 = vmatpush1.msra.mxu0 0.0
    %1919 = vmatprep.subr.mxu0 0.0
    %1920 = vmatpush1.msra.mxu0 0.0
    %1921 = vmatprep.subr.mxu0 0.0
    %1922 = vmatpush1.msra.mxu0 0.0
    %1923 = vmatprep.subr.mxu0 0.0
    %1924 = vmatpush1.msra.mxu0 0.0
    %1925 = vmatprep.subr.mxu0 0.0
    %1926 = vmatpush1.msra.mxu0 0.0
    %1927 = vmatprep.subr.mxu0 0.0
    %1928 = vmatpush1.msra.mxu0 0.0
    %1929 = vmatprep.mubr.f32.mxu0 0.0
    %1930 = vmatmul.mubr.f32.gmra.mrb[0].mxu0 %v1786
    %v1931 = vpop.f32.mrb[0].mxu0
    %v1932 = vadd.f32 0.0, %v1931
    %v1933 = vpop.f32.mrb[0].mxu0
    %v1934 = vadd.f32 0.0, %v1933
    %1935 = vdwg.mxu0
    %v1936 = vadd.f32 %v1790, %v1861
    %v1937 = vadd.f32 %v1791, %v1863
    %v1938 = vadd.f32 %v1792, %v1932
    %v1939 = vadd.f32 %v1793, %v1934
    %v1940 = vxor.u32 %v1936, 2147483648
    %v1941 = vmul.f32 %v1940, 1.442695
    %v1942 = vpow.pop %v1941
    %v1943 = vadd.f32 %v1942, 1.0
    %v1944 = vrcp.pop %v1943
    %v1945 = vmul.f32 1.0, %v1944
    %v1946 = vxor.u32 %v1937, 2147483648
    %v1947 = vmul.f32 %v1946, 1.442695
    %v1948 = vpow.pop %v1947
    %v1949 = vadd.f32 %v1948, 1.0
    %v1950 = vrcp.pop %v1949
    %v1951 = vmul.f32 1.0, %v1950
    %v1952 = vtanh.pop %v1938
    %v1953 = vxor.u32 %v1939, 2147483648
    %v1954 = vmul.f32 %v1953, 1.442695
    %v1955 = vpow.pop %v1954
    %v1956 = vadd.f32 %v1955, 1.0
    %v1957 = vrcp.pop %v1956
    %v1958 = vmul.f32 1.0, %v1957
    %v1959 = vmul.f32 %v1951, %v1784
    %v1960 = vmul.f32 %v1945, %v1952
    %v1961 = vadd.f32 %v1959, %v1960
    %v1962 = vtanh.pop %v1961
    %v1963 = vmul.f32 %v1958, %v1962
    %s1964 = scalar_lea.vmem [#allocation3], 56
    %1965 = vst [vmem:[%s1964] sm:$0xff] %v1963
    %1966 = vst [vmem:[#allocation4] sm:$0xff] %v1963
    %1967 = vst [vmem:[#allocation5] sm:$0xff] %v1961
    %v1968 = vld [vmem:[#allocation3] sm:$0xff]
    %v1969 = vld [vmem:[#allocation3 + $0x8] sm:$0xff]
    %v1970 = vld [vmem:[#allocation3 + $0x10] sm:$0xff]
    %v1971 = vld [vmem:[#allocation3 + $0x18] sm:$0xff]
    %v1972 = vld [vmem:[#allocation3 + $0x20] sm:$0xff]
    %v1973 = vld [vmem:[#allocation3 + $0x28] sm:$0xff]
    %v1974 = vld [vmem:[#allocation3 + $0x30] sm:$0xff]
    %v1975 = vld [vmem:[#allocation3 + $0x38] sm:$0xff]
    %v1976 = vld [vmem:[#allocation12] sm:$0xff]
    %v1977 = vld [vmem:[#allocation12 + $0x8] sm:$0xff]
    %v1978 = vld [vmem:[#allocation12 + $0x10] sm:$0xff]
    %v1979 = vld [vmem:[#allocation12 + $0x18] sm:$0xff]
    %v1980 = vld [vmem:[#allocation12 + $0x20] sm:$0xff]
    %v1981 = vld [vmem:[#allocation12 + $0x28] sm:$0xff]
    %v1982 = vld [vmem:[#allocation12 + $0x30] sm:$0xff]
    %v1983 = vld [vmem:[#allocation12 + $0x38] sm:$0xff]
    %v1984 = vld [vmem:[#allocation12 + $0x40] sm:$0xff]
    %v1985 = vld [vmem:[#allocation12 + $0x48] sm:$0xff]
    %v1986 = vld [vmem:[#allocation12 + $0x50] sm:$0xff]
    %v1987 = vld [vmem:[#allocation12 + $0x58] sm:$0xff]
    %v1988 = vld [vmem:[#allocation12 + $0x60] sm:$0xff]
    %v1989 = vld [vmem:[#allocation12 + $0x68] sm:$0xff]
    %v1990 = vld [vmem:[#allocation12 + $0x70] sm:$0xff]
    %v1991 = vld [vmem:[#allocation12 + $0x78] sm:$0xff]
    %v1992 = vld [vmem:[#allocation12 + $0x80] sm:$0xff]
    %v1993 = vld [vmem:[#allocation12 + $0x88] sm:$0xff]
    %v1994 = vld [vmem:[#allocation12 + $0x90] sm:$0xff]
    %v1995 = vld [vmem:[#allocation12 + $0x98] sm:$0xff]
    %v1996 = vld [vmem:[#allocation12 + $0xa0] sm:$0xff]
    %v1997 = vld [vmem:[#allocation12 + $0xa8] sm:$0xff]
    %v1998 = vld [vmem:[#allocation12 + $0xb0] sm:$0xff]
    %v1999 = vld [vmem:[#allocation12 + $0xb8] sm:$0xff]
    %v2000 = vld [vmem:[#allocation12 + $0xc0] sm:$0xff]
    %v2001 = vld [vmem:[#allocation12 + $0xc8] sm:$0xff]
    %v2002 = vld [vmem:[#allocation12 + $0xd0] sm:$0xff]
    %v2003 = vld [vmem:[#allocation12 + $0xd8] sm:$0xff]
    %v2004 = vld [vmem:[#allocation12 + $0xe0] sm:$0xff]
    %v2005 = vld [vmem:[#allocation12 + $0xe8] sm:$0xff]
    %v2006 = vld [vmem:[#allocation12 + $0xf0] sm:$0xff]
    %v2007 = vld [vmem:[#allocation12 + $0xf8] sm:$0xff]
    %v2008 = vld [vmem:[#allocation12 + $0x100] sm:$0xff]
    %v2009 = vld [vmem:[#allocation12 + $0x108] sm:$0xff]
    %v2010 = vld [vmem:[#allocation12 + $0x110] sm:$0xff]
    %v2011 = vld [vmem:[#allocation12 + $0x118] sm:$0xff]
    %v2012 = vld [vmem:[#allocation12 + $0x120] sm:$0xff]
    %v2013 = vld [vmem:[#allocation12 + $0x128] sm:$0xff]
    %v2014 = vld [vmem:[#allocation12 + $0x130] sm:$0xff]
    %v2015 = vld [vmem:[#allocation12 + $0x138] sm:$0xff]
    %v2016 = vld [vmem:[#allocation12 + $0x140] sm:$0xff]
    %v2017 = vld [vmem:[#allocation12 + $0x148] sm:$0xff]
    %v2018 = vld [vmem:[#allocation12 + $0x150] sm:$0xff]
    %v2019 = vld [vmem:[#allocation12 + $0x158] sm:$0xff]
    %v2020 = vld [vmem:[#allocation12 + $0x160] sm:$0xff]
    %v2021 = vld [vmem:[#allocation12 + $0x168] sm:$0xff]
    %v2022 = vld [vmem:[#allocation12 + $0x170] sm:$0xff]
    %v2023 = vld [vmem:[#allocation12 + $0x178] sm:$0xff]
    %v2024 = vld [vmem:[#allocation12 + $0x180] sm:$0xff]
    %v2025 = vld [vmem:[#allocation12 + $0x188] sm:$0xff]
    %v2026 = vld [vmem:[#allocation12 + $0x190] sm:$0xff]
    %v2027 = vld [vmem:[#allocation12 + $0x198] sm:$0xff]
    %v2028 = vld [vmem:[#allocation12 + $0x1a0] sm:$0xff]
    %v2029 = vld [vmem:[#allocation12 + $0x1a8] sm:$0xff]
    %v2030 = vld [vmem:[#allocation12 + $0x1b0] sm:$0xff]
    %v2031 = vld [vmem:[#allocation12 + $0x1b8] sm:$0xff]
    %v2032 = vld [vmem:[#allocation12 + $0x1c0] sm:$0xff]
    %v2033 = vld [vmem:[#allocation12 + $0x1c8] sm:$0xff]
    %v2034 = vld [vmem:[#allocation12 + $0x1d0] sm:$0xff]
    %v2035 = vld [vmem:[#allocation12 + $0x1d8] sm:$0xff]
    %v2036 = vld [vmem:[#allocation12 + $0x1e0] sm:$0xff]
    %v2037 = vld [vmem:[#allocation12 + $0x1e8] sm:$0xff]
    %v2038 = vld [vmem:[#allocation12 + $0x1f0] sm:$0xff]
    %v2039 = vld [vmem:[#allocation12 + $0x1f8] sm:$0xff]
    %v2040 = vld [vmem:[%s6] sm:$0xf]
    %v2042 = vlaneseq
    %v2043 = vshrl.u32 %v2042, 7
    %v2044 = vsub.s32 0, %v2043
    %v2045 = vrot.slane %v2040, %v2044
    %v2046 = vlaneseq
    %v2047 = vshrl.u32 %v2046, 7
    %v2048 = vsub.s32 1, %v2047
    %v2049 = vrot.slane %v2040, %v2048
    %v2050 = vlaneseq
    %v2051 = vshrl.u32 %v2050, 7
    %v2052 = vsub.s32 2, %v2051
    %v2053 = vrot.slane %v2040, %v2052
    %v2054 = vlaneseq
    %v2055 = vshrl.u32 %v2054, 7
    %v2056 = vsub.s32 3, %v2055
    %v2057 = vrot.slane %v2040, %v2056
    %2062 = vmatprep.subr.mxu0 %v1977
    %2063 = vmatpush1.msra.mxu0 %v1976
    %2064 = vmatprep.subr.mxu0 %v1981
    %2065 = vmatpush1.msra.mxu0 %v1980
    %2066 = vmatprep.subr.mxu0 %v1985
    %2067 = vmatpush1.msra.mxu0 %v1984
    %2068 = vmatprep.subr.mxu0 %v1989
    %2069 = vmatpush1.msra.mxu0 %v1988
    %2070 = vmatprep.subr.mxu0 %v1993
    %2071 = vmatpush1.msra.mxu0 %v1992
    %2072 = vmatprep.subr.mxu0 %v1997
    %2073 = vmatpush1.msra.mxu0 %v1996
    %2074 = vmatprep.subr.mxu0 %v2001
    %2075 = vmatpush1.msra.mxu0 %v2000
    %2076 = vmatprep.subr.mxu0 %v2005
    %2077 = vmatpush1.msra.mxu0 %v2004
    %2078 = vmatprep.subr.mxu0 %v2009
    %2079 = vmatpush1.msra.mxu0 %v2008
    %2080 = vmatprep.subr.mxu0 %v2013
    %2081 = vmatpush1.msra.mxu0 %v2012
    %2082 = vmatprep.subr.mxu0 %v2017
    %2083 = vmatpush1.msra.mxu0 %v2016
    %2084 = vmatprep.subr.mxu0 %v2021
    %2085 = vmatpush1.msra.mxu0 %v2020
    %2086 = vmatprep.subr.mxu0 %v2025
    %2087 = vmatpush1.msra.mxu0 %v2024
    %2088 = vmatprep.subr.mxu0 %v2029
    %2089 = vmatpush1.msra.mxu0 %v2028
    %2090 = vmatprep.subr.mxu0 %v2033
    %2091 = vmatpush1.msra.mxu0 %v2032
    %2092 = vmatprep.subr.mxu0 %v2037
    %2093 = vmatpush1.msra.mxu0 %v2036
    %2094 = vmatprep.subr.mxu0 0.0
    %2095 = vmatpush1.msra.mxu0 0.0
    %2096 = vmatprep.subr.mxu0 0.0
    %2097 = vmatpush1.msra.mxu0 0.0
    %2098 = vmatprep.subr.mxu0 0.0
    %2099 = vmatpush1.msra.mxu0 0.0
    %2100 = vmatprep.subr.mxu0 0.0
    %2101 = vmatpush1.msra.mxu0 0.0
    %2102 = vmatprep.subr.mxu0 0.0
    %2103 = vmatpush1.msra.mxu0 0.0
    %2104 = vmatprep.subr.mxu0 0.0
    %2105 = vmatpush1.msra.mxu0 0.0
    %2106 = vmatprep.subr.mxu0 0.0
    %2107 = vmatpush1.msra.mxu0 0.0
    %2108 = vmatprep.subr.mxu0 0.0
    %2109 = vmatpush1.msra.mxu0 0.0
    %2110 = vmatprep.subr.mxu0 0.0
    %2111 = vmatpush1.msra.mxu0 0.0
    %2112 = vmatprep.subr.mxu0 0.0
    %2113 = vmatpush1.msra.mxu0 0.0
    %2114 = vmatprep.subr.mxu0 0.0
    %2115 = vmatpush1.msra.mxu0 0.0
    %2116 = vmatprep.subr.mxu0 0.0
    %2117 = vmatpush1.msra.mxu0 0.0
    %2118 = vmatprep.subr.mxu0 0.0
    %2119 = vmatpush1.msra.mxu0 0.0
    %2120 = vmatprep.subr.mxu0 0.0
    %2121 = vmatpush1.msra.mxu0 0.0
    %2122 = vmatprep.subr.mxu0 0.0
    %2123 = vmatpush1.msra.mxu0 0.0
    %2124 = vmatprep.subr.mxu0 0.0
    %2125 = vmatpush1.msra.mxu0 0.0
    %2126 = vmatprep.mubr.f32.mxu0 0.0
    %2127 = vmatmul.mubr.f32.gmra.mrb[0].mxu0 %v1968
    %v2128 = vpop.f32.mrb[0].mxu0
    %v2129 = vadd.f32 %v2045, %v2128
    %v2130 = vpop.f32.mrb[0].mxu0
    %v2131 = vadd.f32 %v2049, %v2130
    %2132 = vmatprep.mubr.f32.mxu0 0.0
    %2133 = vmatmul.mubr.f32.gmra.mrb[0].mxu0 %v1969
    %v2134 = vpop.f32.mrb[0].mxu0
    %v2135 = vadd.f32 %v2045, %v2134
    %v2136 = vpop.f32.mrb[0].mxu0
    %v2137 = vadd.f32 %v2049, %v2136
    %2138 = vmatprep.mubr.f32.mxu0 0.0
    %2139 = vmatmul.mubr.f32.gmra.mrb[0].mxu0 %v1970
    %v2140 = vpop.f32.mrb[0].mxu0
    %v2141 = vadd.f32 %v2045, %v2140
    %v2142 = vpop.f32.mrb[0].mxu0
    %v2143 = vadd.f32 %v2049, %v2142
    %2144 = vmatprep.mubr.f32.mxu0 0.0
    %2145 = vmatmul.mubr.f32.gmra.mrb[0].mxu0 %v1971
    %v2146 = vpop.f32.mrb[0].mxu0
    %v2147 = vadd.f32 %v2045, %v2146
    %v2148 = vpop.f32.mrb[0].mxu0
    %v2149 = vadd.f32 %v2049, %v2148
    %2150 = vmatprep.mubr.f32.mxu0 0.0
    %2151 = vmatmul.mubr.f32.gmra.mrb[0].mxu0 %v1972
    %v2152 = vpop.f32.mrb[0].mxu0
    %v2153 = vadd.f32 %v2045, %v2152
    %v2154 = vpop.f32.mrb[0].mxu0
    %v2155 = vadd.f32 %v2049, %v2154
    %2156 = vmatprep.mubr.f32.mxu0 0.0
    %2157 = vmatmul.mubr.f32.gmra.mrb[0].mxu0 %v1973
    %v2158 = vpop.f32.mrb[0].mxu0
    %v2159 = vadd.f32 %v2045, %v2158
    %v2160 = vpop.f32.mrb[0].mxu0
    %v2161 = vadd.f32 %v2049, %v2160
    %2162 = vmatprep.mubr.f32.mxu0 0.0
    %2163 = vmatmul.mubr.f32.gmra.mrb[0].mxu0 %v1974
    %v2164 = vpop.f32.mrb[0].mxu0
    %v2165 = vadd.f32 %v2045, %v2164
    %v2166 = vpop.f32.mrb[0].mxu0
    %v2167 = vadd.f32 %v2049, %v2166
    %2168 = vmatprep.mubr.f32.mxu0 0.0
    %2169 = vmatmul.mubr.f32.gmra.mrb[0].mxu0 %v1975
    %v2170 = vpop.f32.mrb[0].mxu0
    %v2171 = vadd.f32 %v2045, %v2170
    %v2172 = vpop.f32.mrb[0].mxu0
    %v2173 = vadd.f32 %v2049, %v2172
    %2174 = vdwg.mxu0
    %2175 = vmatprep.subr.mxu0 %v1979
    %2176 = vmatpush1.msra.mxu0 %v1978
    %2177 = vmatprep.subr.mxu0 %v1983
    %2178 = vmatpush1.msra.mxu0 %v1982
    %2179 = vmatprep.subr.mxu0 %v1987
    %2180 = vmatpush1.msra.mxu0 %v1986
    %2181 = vmatprep.subr.mxu0 %v1991
    %2182 = vmatpush1.msra.mxu0 %v1990
    %2183 = vmatprep.subr.mxu0 %v1995
    %2184 = vmatpush1.msra.mxu0 %v1994
    %2185 = vmatprep.subr.mxu0 %v1999
    %2186 = vmatpush1.msra.mxu0 %v1998
    %2187 = vmatprep.subr.mxu0 %v2003
    %2188 = vmatpush1.msra.mxu0 %v2002
    %2189 = vmatprep.subr.mxu0 %v2007
    %2190 = vmatpush1.msra.mxu0 %v2006
    %2191 = vmatprep.subr.mxu0 %v2011
    %2192 = vmatpush1.msra.mxu0 %v2010
    %2193 = vmatprep.subr.mxu0 %v2015
    %2194 = vmatpush1.msra.mxu0 %v2014
    %2195 = vmatprep.subr.mxu0 %v2019
    %2196 = vmatpush1.msra.mxu0 %v2018
    %2197 = vmatprep.subr.mxu0 %v2023
    %2198 = vmatpush1.msra.mxu0 %v2022
    %2199 = vmatprep.subr.mxu0 %v2027
    %2200 = vmatpush1.msra.mxu0 %v2026
    %2201 = vmatprep.subr.mxu0 %v2031
    %2202 = vmatpush1.msra.mxu0 %v2030
    %2203 = vmatprep.subr.mxu0 %v2035
    %2204 = vmatpush1.msra.mxu0 %v2034
    %2205 = vmatprep.subr.mxu0 %v2039
    %2206 = vmatpush1.msra.mxu0 %v2038
    %2207 = vmatprep.subr.mxu0 0.0
    %2208 = vmatpush1.msra.mxu0 0.0
    %2209 = vmatprep.subr.mxu0 0.0
    %2210 = vmatpush1.msra.mxu0 0.0
    %2211 = vmatprep.subr.mxu0 0.0
    %2212 = vmatpush1.msra.mxu0 0.0
    %2213 = vmatprep.subr.mxu0 0.0
    %2214 = vmatpush1.msra.mxu0 0.0
    %2215 = vmatprep.subr.mxu0 0.0
    %2216 = vmatpush1.msra.mxu0 0.0
    %2217 = vmatprep.subr.mxu0 0.0
    %2218 = vmatpush1.msra.mxu0 0.0
    %2219 = vmatprep.subr.mxu0 0.0
    %2220 = vmatpush1.msra.mxu0 0.0
    %2221 = vmatprep.subr.mxu0 0.0
    %2222 = vmatpush1.msra.mxu0 0.0
    %2223 = vmatprep.subr.mxu0 0.0
    %2224 = vmatpush1.msra.mxu0 0.0
    %2225 = vmatprep.subr.mxu0 0.0
    %2226 = vmatpush1.msra.mxu0 0.0
    %2227 = vmatprep.subr.mxu0 0.0
    %2228 = vmatpush1.msra.mxu0 0.0
    %2229 = vmatprep.subr.mxu0 0.0
    %2230 = vmatpush1.msra.mxu0 0.0
    %2231 = vmatprep.subr.mxu0 0.0
    %2232 = vmatpush1.msra.mxu0 0.0
    %2233 = vmatprep.subr.mxu0 0.0
    %2234 = vmatpush1.msra.mxu0 0.0
    %2235 = vmatprep.subr.mxu0 0.0
    %2236 = vmatpush1.msra.mxu0 0.0
    %2237 = vmatprep.subr.mxu0 0.0
    %2238 = vmatpush1.msra.mxu0 0.0
    %2239 = vmatprep.mubr.f32.mxu0 0.0
    %2240 = vmatmul.mubr.f32.gmra.mrb[0].mxu0 %v1968
    %v2241 = vpop.f32.mrb[0].mxu0
    %v2242 = vadd.f32 %v2053, %v2241
    %v2243 = vpop.f32.mrb[0].mxu0
    %v2244 = vadd.f32 %v2057, %v2243
    %2245 = vmatprep.mubr.f32.mxu0 0.0
    %2246 = vmatmul.mubr.f32.gmra.mrb[0].mxu0 %v1969
    %v2247 = vpop.f32.mrb[0].mxu0
    %v2248 = vadd.f32 %v2053, %v2247
    %v2249 = vpop.f32.mrb[0].mxu0
    %v2250 = vadd.f32 %v2057, %v2249
    %2251 = vmatprep.mubr.f32.mxu0 0.0
    %2252 = vmatmul.mubr.f32.gmra.mrb[0].mxu0 %v1970
    %v2253 = vpop.f32.mrb[0].mxu0
    %v2254 = vadd.f32 %v2053, %v2253
    %v2255 = vpop.f32.mrb[0].mxu0
    %v2256 = vadd.f32 %v2057, %v2255
    %2257 = vmatprep.mubr.f32.mxu0 0.0
    %2258 = vmatmul.mubr.f32.gmra.mrb[0].mxu0 %v1971
    %v2259 = vpop.f32.mrb[0].mxu0
    %v2260 = vadd.f32 %v2053, %v2259
    %v2261 = vpop.f32.mrb[0].mxu0
    %v2262 = vadd.f32 %v2057, %v2261
    %2263 = vmatprep.mubr.f32.mxu0 0.0
    %2264 = vmatmul.mubr.f32.gmra.mrb[0].mxu0 %v1972
    %v2265 = vpop.f32.mrb[0].mxu0
    %v2266 = vadd.f32 %v2053, %v2265
    %v2267 = vpop.f32.mrb[0].mxu0
    %v2268 = vadd.f32 %v2057, %v2267
    %2269 = vmatprep.mubr.f32.mxu0 0.0
    %2270 = vmatmul.mubr.f32.gmra.mrb[0].mxu0 %v1973
    %v2271 = vpop.f32.mrb[0].mxu0
    %v2272 = vadd.f32 %v2053, %v2271
    %v2273 = vpop.f32.mrb[0].mxu0
    %v2274 = vadd.f32 %v2057, %v2273
    %2275 = vmatprep.mubr.f32.mxu0 0.0
    %2276 = vmatmul.mubr.f32.gmra.mrb[0].mxu0 %v1974
    %v2277 = vpop.f32.mrb[0].mxu0
    %v2278 = vadd.f32 %v2053, %v2277
    %v2279 = vpop.f32.mrb[0].mxu0
    %v2280 = vadd.f32 %v2057, %v2279
    %2281 = vmatprep.mubr.f32.mxu0 0.0
    %2282 = vmatmul.mubr.f32.gmra.mrb[0].mxu0 %v1975
    %v2283 = vpop.f32.mrb[0].mxu0
    %v2284 = vadd.f32 %v2053, %v2283
    %v2285 = vpop.f32.mrb[0].mxu0
    %v2286 = vadd.f32 %v2057, %v2285
    %2287 = vdwg.mxu0
    %2288 = vst [vmem:[#allocation2] sm:$0xff] %v2129
    %2289 = vst [vmem:[#allocation2 + $0x8] sm:$0xff] %v2131
    %2290 = vst [vmem:[#allocation2 + $0x10] sm:$0xff] %v2242
    %2291 = vst [vmem:[#allocation2 + $0x18] sm:$0xff] %v2244
    %2292 = vst [vmem:[#allocation2 + $0x20] sm:$0xff] %v2135
    %2293 = vst [vmem:[#allocation2 + $0x28] sm:$0xff] %v2137
    %2294 = vst [vmem:[#allocation2 + $0x30] sm:$0xff] %v2248
    %2295 = vst [vmem:[#allocation2 + $0x38] sm:$0xff] %v2250
    %2296 = vst [vmem:[#allocation2 + $0x40] sm:$0xff] %v2141
    %2297 = vst [vmem:[#allocation2 + $0x48] sm:$0xff] %v2143
    %2298 = vst [vmem:[#allocation2 + $0x50] sm:$0xff] %v2254
    %2299 = vst [vmem:[#allocation2 + $0x58] sm:$0xff] %v2256
    %2300 = vst [vmem:[#allocation2 + $0x60] sm:$0xff] %v2147
    %2301 = vst [vmem:[#allocation2 + $0x68] sm:$0xff] %v2149
    %2302 = vst [vmem:[#allocation2 + $0x70] sm:$0xff] %v2260
    %2303 = vst [vmem:[#allocation2 + $0x78] sm:$0xff] %v2262
    %2304 = vst [vmem:[#allocation2 + $0x80] sm:$0xff] %v2153
    %2305 = vst [vmem:[#allocation2 + $0x88] sm:$0xff] %v2155
    %2306 = vst [vmem:[#allocation2 + $0x90] sm:$0xff] %v2266
    %2307 = vst [vmem:[#allocation2 + $0x98] sm:$0xff] %v2268
    %2308 = vst [vmem:[#allocation2 + $0xa0] sm:$0xff] %v2159
    %2309 = vst [vmem:[#allocation2 + $0xa8] sm:$0xff] %v2161
    %2310 = vst [vmem:[#allocation2 + $0xb0] sm:$0xff] %v2272
    %2311 = vst [vmem:[#allocation2 + $0xb8] sm:$0xff] %v2274
    %2312 = vst [vmem:[#allocation2 + $0xc0] sm:$0xff] %v2165
    %2313 = vst [vmem:[#allocation2 + $0xc8] sm:$0xff] %v2167
    %2314 = vst [vmem:[#allocation2 + $0xd0] sm:$0xff] %v2278
    %2315 = vst [vmem:[#allocation2 + $0xd8] sm:$0xff] %v2280
    %2316 = vst [vmem:[#allocation2 + $0xe0] sm:$0xff] %v2171
    %2317 = vst [vmem:[#allocation2 + $0xe8] sm:$0xff] %v2173
    %2318 = vst [vmem:[#allocation2 + $0xf0] sm:$0xff] %v2284
    %2319 = vst [vmem:[#allocation2 + $0xf8] sm:$0xff] %v2286
    %v2320 = vld [vmem:[#allocation14] sm:$0xff]
    %v2321 = vld [vmem:[#allocation14 + $0x8] sm:$0xff]
    %v2322 = vld [vmem:[#allocation14 + $0x10] sm:$0xff]
    %v2323 = vld [vmem:[#allocation14 + $0x18] sm:$0xff]
    %v2324 = vld [vmem:[#allocation14 + $0x20] sm:$0xff]
    %v2325 = vld [vmem:[#allocation14 + $0x28] sm:$0xff]
    %v2326 = vld [vmem:[#allocation14 + $0x30] sm:$0xff]
    %v2327 = vld [vmem:[#allocation14 + $0x38] sm:$0xff]
    %v2328 = vld [vmem:[#allocation14 + $0x40] sm:$0xff]
    %v2329 = vld [vmem:[#allocation14 + $0x48] sm:$0xff]
    %v2330 = vld [vmem:[#allocation14 + $0x50] sm:$0xff]
    %v2331 = vld [vmem:[#allocation14 + $0x58] sm:$0xff]
    %v2332 = vld [vmem:[#allocation14 + $0x60] sm:$0xff]
    %v2333 = vld [vmem:[#allocation14 + $0x68] sm:$0xff]
    %v2334 = vld [vmem:[#allocation14 + $0x70] sm:$0xff]
    %v2335 = vld [vmem:[#allocation14 + $0x78] sm:$0xff]
    %v2336 = vld [vmem:[#allocation14 + $0x80] sm:$0xff]
    %v2337 = vld [vmem:[#allocation14 + $0x88] sm:$0xff]
    %v2338 = vld [vmem:[#allocation14 + $0x90] sm:$0xff]
    %v2339 = vld [vmem:[#allocation14 + $0x98] sm:$0xff]
    %v2340 = vld [vmem:[#allocation14 + $0xa0] sm:$0xff]
    %v2341 = vld [vmem:[#allocation14 + $0xa8] sm:$0xff]
    %v2342 = vld [vmem:[#allocation14 + $0xb0] sm:$0xff]
    %v2343 = vld [vmem:[#allocation14 + $0xb8] sm:$0xff]
    %v2344 = vld [vmem:[#allocation14 + $0xc0] sm:$0xff]
    %v2345 = vld [vmem:[#allocation14 + $0xc8] sm:$0xff]
    %v2346 = vld [vmem:[#allocation14 + $0xd0] sm:$0xff]
    %v2347 = vld [vmem:[#allocation14 + $0xd8] sm:$0xff]
    %v2348 = vld [vmem:[#allocation14 + $0xe0] sm:$0xff]
    %v2349 = vld [vmem:[#allocation14 + $0xe8] sm:$0xff]
    %v2350 = vld [vmem:[#allocation14 + $0xf0] sm:$0xff]
    %v2351 = vld [vmem:[#allocation14 + $0xf8] sm:$0xff]
    %v2352 = vld [vmem:[#allocation14 + $0x100] sm:$0xff]
    %v2353 = vld [vmem:[#allocation14 + $0x108] sm:$0xff]
    %v2354 = vld [vmem:[#allocation14 + $0x110] sm:$0xff]
    %v2355 = vld [vmem:[#allocation14 + $0x118] sm:$0xff]
    %v2356 = vld [vmem:[#allocation14 + $0x120] sm:$0xff]
    %v2357 = vld [vmem:[#allocation14 + $0x128] sm:$0xff]
    %v2358 = vld [vmem:[#allocation14 + $0x130] sm:$0xff]
    %v2359 = vld [vmem:[#allocation14 + $0x138] sm:$0xff]
    %v2360 = vld [vmem:[#allocation14 + $0x140] sm:$0xff]
    %v2361 = vld [vmem:[#allocation14 + $0x148] sm:$0xff]
    %v2362 = vld [vmem:[#allocation14 + $0x150] sm:$0xff]
    %v2363 = vld [vmem:[#allocation14 + $0x158] sm:$0xff]
    %v2364 = vld [vmem:[#allocation14 + $0x160] sm:$0xff]
    %v2365 = vld [vmem:[#allocation14 + $0x168] sm:$0xff]
    %v2366 = vld [vmem:[#allocation14 + $0x170] sm:$0xff]
    %v2367 = vld [vmem:[#allocation14 + $0x178] sm:$0xff]
    %v2368 = vld [vmem:[#allocation14 + $0x180] sm:$0xff]
    %v2369 = vld [vmem:[#allocation14 + $0x188] sm:$0xff]
    %v2370 = vld [vmem:[#allocation14 + $0x190] sm:$0xff]
    %v2371 = vld [vmem:[#allocation14 + $0x198] sm:$0xff]
    %v2372 = vld [vmem:[#allocation14 + $0x1a0] sm:$0xff]
    %v2373 = vld [vmem:[#allocation14 + $0x1a8] sm:$0xff]
    %v2374 = vld [vmem:[#allocation14 + $0x1b0] sm:$0xff]
    %v2375 = vld [vmem:[#allocation14 + $0x1b8] sm:$0xff]
    %v2376 = vld [vmem:[#allocation14 + $0x1c0] sm:$0xff]
    %v2377 = vld [vmem:[#allocation14 + $0x1c8] sm:$0xff]
    %v2378 = vld [vmem:[#allocation14 + $0x1d0] sm:$0xff]
    %v2379 = vld [vmem:[#allocation14 + $0x1d8] sm:$0xff]
    %v2380 = vld [vmem:[#allocation14 + $0x1e0] sm:$0xff]
    %v2381 = vld [vmem:[#allocation14 + $0x1e8] sm:$0xff]
    %v2382 = vld [vmem:[#allocation14 + $0x1f0] sm:$0xff]
    %v2383 = vld [vmem:[#allocation14 + $0x1f8] sm:$0xff]
    %s2384 = scalar_lea.vmem [#allocation4], 8
    %v2385 = vld [vmem:[%s2384] sm:$0xff]
    %s2386 = scalar_lea.vmem [#allocation5], 8
    %v2387 = vld [vmem:[%s2386] sm:$0xff]
    %v2388 = vld [vmem:[#allocation2] sm:$0xff]
    %v2389 = vld [vmem:[#allocation2 + $0x8] sm:$0xff]
    %v2390 = vld [vmem:[#allocation2 + $0x10] sm:$0xff]
    %v2391 = vld [vmem:[#allocation2 + $0x18] sm:$0xff]
    %2392 = vmatprep.subr.mxu0 %v2321
    %2393 = vmatpush1.msra.mxu0 %v2320
    %2394 = vmatprep.subr.mxu0 %v2325
    %2395 = vmatpush1.msra.mxu0 %v2324
    %2396 = vmatprep.subr.mxu0 %v2329
    %2397 = vmatpush1.msra.mxu0 %v2328
    %2398 = vmatprep.subr.mxu0 %v2333
    %2399 = vmatpush1.msra.mxu0 %v2332
    %2400 = vmatprep.subr.mxu0 %v2337
    %2401 = vmatpush1.msra.mxu0 %v2336
    %2402 = vmatprep.subr.mxu0 %v2341
    %2403 = vmatpush1.msra.mxu0 %v2340
    %2404 = vmatprep.subr.mxu0 %v2345
    %2405 = vmatpush1.msra.mxu0 %v2344
    %2406 = vmatprep.subr.mxu0 %v2349
    %2407 = vmatpush1.msra.mxu0 %v2348
    %2408 = vmatprep.subr.mxu0 %v2353
    %2409 = vmatpush1.msra.mxu0 %v2352
    %2410 = vmatprep.subr.mxu0 %v2357
    %2411 = vmatpush1.msra.mxu0 %v2356
    %2412 = vmatprep.subr.mxu0 %v2361
    %2413 = vmatpush1.msra.mxu0 %v2360
    %2414 = vmatprep.subr.mxu0 %v2365
    %2415 = vmatpush1.msra.mxu0 %v2364
    %2416 = vmatprep.subr.mxu0 %v2369
    %2417 = vmatpush1.msra.mxu0 %v2368
    %2418 = vmatprep.subr.mxu0 %v2373
    %2419 = vmatpush1.msra.mxu0 %v2372
    %2420 = vmatprep.subr.mxu0 %v2377
    %2421 = vmatpush1.msra.mxu0 %v2376
    %2422 = vmatprep.subr.mxu0 %v2381
    %2423 = vmatpush1.msra.mxu0 %v2380
    %2424 = vmatprep.subr.mxu0 0.0
    %2425 = vmatpush1.msra.mxu0 0.0
    %2426 = vmatprep.subr.mxu0 0.0
    %2427 = vmatpush1.msra.mxu0 0.0
    %2428 = vmatprep.subr.mxu0 0.0
    %2429 = vmatpush1.msra.mxu0 0.0
    %2430 = vmatprep.subr.mxu0 0.0
    %2431 = vmatpush1.msra.mxu0 0.0
    %2432 = vmatprep.subr.mxu0 0.0
    %2433 = vmatpush1.msra.mxu0 0.0
    %2434 = vmatprep.subr.mxu0 0.0
    %2435 = vmatpush1.msra.mxu0 0.0
    %2436 = vmatprep.subr.mxu0 0.0
    %2437 = vmatpush1.msra.mxu0 0.0
    %2438 = vmatprep.subr.mxu0 0.0
    %2439 = vmatpush1.msra.mxu0 0.0
    %2440 = vmatprep.subr.mxu0 0.0
    %2441 = vmatpush1.msra.mxu0 0.0
    %2442 = vmatprep.subr.mxu0 0.0
    %2443 = vmatpush1.msra.mxu0 0.0
    %2444 = vmatprep.subr.mxu0 0.0
    %2445 = vmatpush1.msra.mxu0 0.0
    %2446 = vmatprep.subr.mxu0 0.0
    %2447 = vmatpush1.msra.mxu0 0.0
    %2448 = vmatprep.subr.mxu0 0.0
    %2449 = vmatpush1.msra.mxu0 0.0
    %2450 = vmatprep.subr.mxu0 0.0
    %2451 = vmatpush1.msra.mxu0 0.0
    %2452 = vmatprep.subr.mxu0 0.0
    %2453 = vmatpush1.msra.mxu0 0.0
    %2454 = vmatprep.subr.mxu0 0.0
    %2455 = vmatpush1.msra.mxu0 0.0
    %2456 = vmatprep.mubr.f32.mxu0 0.0
    %2457 = vmatmul.mubr.f32.gmra.mrb[0].mxu0 %v2385
    %v2458 = vpop.f32.mrb[0].mxu0
    %v2459 = vadd.f32 0.0, %v2458
    %v2460 = vpop.f32.mrb[0].mxu0
    %v2461 = vadd.f32 0.0, %v2460
    %2462 = vdwg.mxu0
    %2463 = vmatprep.subr.mxu0 %v2323
    %2464 = vmatpush1.msra.mxu0 %v2322
    %2465 = vmatprep.subr.mxu0 %v2327
    %2466 = vmatpush1.msra.mxu0 %v2326
    %2467 = vmatprep.subr.mxu0 %v2331
    %2468 = vmatpush1.msra.mxu0 %v2330
    %2469 = vmatprep.subr.mxu0 %v2335
    %2470 = vmatpush1.msra.mxu0 %v2334
    %2471 = vmatprep.subr.mxu0 %v2339
    %2472 = vmatpush1.msra.mxu0 %v2338
    %2473 = vmatprep.subr.mxu0 %v2343
    %2474 = vmatpush1.msra.mxu0 %v2342
    %2475 = vmatprep.subr.mxu0 %v2347
    %2476 = vmatpush1.msra.mxu0 %v2346
    %2477 = vmatprep.subr.mxu0 %v2351
    %2478 = vmatpush1.msra.mxu0 %v2350
    %2479 = vmatprep.subr.mxu0 %v2355
    %2480 = vmatpush1.msra.mxu0 %v2354
    %2481 = vmatprep.subr.mxu0 %v2359
    %2482 = vmatpush1.msra.mxu0 %v2358
    %2483 = vmatprep.subr.mxu0 %v2363
    %2484 = vmatpush1.msra.mxu0 %v2362
    %2485 = vmatprep.subr.mxu0 %v2367
    %2486 = vmatpush1.msra.mxu0 %v2366
    %2487 = vmatprep.subr.mxu0 %v2371
    %2488 = vmatpush1.msra.mxu0 %v2370
    %2489 = vmatprep.subr.mxu0 %v2375
    %2490 = vmatpush1.msra.mxu0 %v2374
    %2491 = vmatprep.subr.mxu0 %v2379
    %2492 = vmatpush1.msra.mxu0 %v2378
    %2493 = vmatprep.subr.mxu0 %v2383
    %2494 = vmatpush1.msra.mxu0 %v2382
    %2495 = vmatprep.subr.mxu0 0.0
    %2496 = vmatpush1.msra.mxu0 0.0
    %2497 = vmatprep.subr.mxu0 0.0
    %2498 = vmatpush1.msra.mxu0 0.0
    %2499 = vmatprep.subr.mxu0 0.0
    %2500 = vmatpush1.msra.mxu0 0.0
    %2501 = vmatprep.subr.mxu0 0.0
    %2502 = vmatpush1.msra.mxu0 0.0
    %2503 = vmatprep.subr.mxu0 0.0
    %2504 = vmatpush1.msra.mxu0 0.0
    %2505 = vmatprep.subr.mxu0 0.0
    %2506 = vmatpush1.msra.mxu0 0.0
    %2507 = vmatprep.subr.mxu0 0.0
    %2508 = vmatpush1.msra.mxu0 0.0
    %2509 = vmatprep.subr.mxu0 0.0
    %2510 = vmatpush1.msra.mxu0 0.0
    %2511 = vmatprep.subr.mxu0 0.0
    %2512 = vmatpush1.msra.mxu0 0.0
    %2513 = vmatprep.subr.mxu0 0.0
    %2514 = vmatpush1.msra.mxu0 0.0
    %2515 = vmatprep.subr.mxu0 0.0
    %2516 = vmatpush1.msra.mxu0 0.0
    %2517 = vmatprep.subr.mxu0 0.0
    %2518 = vmatpush1.msra.mxu0 0.0
    %2519 = vmatprep.subr.mxu0 0.0
    %2520 = vmatpush1.msra.mxu0 0.0
    %2521 = vmatprep.subr.mxu0 0.0
    %2522 = vmatpush1.msra.mxu0 0.0
    %2523 = vmatprep.subr.mxu0 0.0
    %2524 = vmatpush1.msra.mxu0 0.0
    %2525 = vmatprep.subr.mxu0 0.0
    %2526 = vmatpush1.msra.mxu0 0.0
    %2527 = vmatprep.mubr.f32.mxu0 0.0
    %2528 = vmatmul.mubr.f32.gmra.mrb[0].mxu0 %v2385
    %v2529 = vpop.f32.mrb[0].mxu0
    %v2530 = vadd.f32 0.0, %v2529
    %v2531 = vpop.f32.mrb[0].mxu0
    %v2532 = vadd.f32 0.0, %v2531
    %2533 = vdwg.mxu0
    %v2534 = vadd.f32 %v2388, %v2459
    %v2535 = vadd.f32 %v2389, %v2461
    %v2536 = vadd.f32 %v2390, %v2530
    %v2537 = vadd.f32 %v2391, %v2532
    %v2538 = vxor.u32 %v2534, 2147483648
    %v2539 = vmul.f32 %v2538, 1.442695
    %v2540 = vpow.pop %v2539
    %v2541 = vadd.f32 %v2540, 1.0
    %v2542 = vrcp.pop %v2541
    %v2543 = vmul.f32 1.0, %v2542
    %v2544 = vxor.u32 %v2535, 2147483648
    %v2545 = vmul.f32 %v2544, 1.442695
    %v2546 = vpow.pop %v2545
    %v2547 = vadd.f32 %v2546, 1.0
    %v2548 = vrcp.pop %v2547
    %v2549 = vmul.f32 1.0, %v2548
    %v2550 = vtanh.pop %v2536
    %v2551 = vxor.u32 %v2537, 2147483648
    %v2552 = vmul.f32 %v2551, 1.442695
    %v2553 = vpow.pop %v2552
    %v2554 = vadd.f32 %v2553, 1.0
    %v2555 = vrcp.pop %v2554
    %v2556 = vmul.f32 1.0, %v2555
    %v2557 = vmul.f32 %v2549, %v2387
    %v2558 = vmul.f32 %v2543, %v2550
    %v2559 = vadd.f32 %v2557, %v2558
    %v2560 = vtanh.pop %v2559
    %v2561 = vmul.f32 %v2556, %v2560
    %v2562 = vsel %vm133, %v2561, -1e+30
    %2563 = vmax.xlane.f32.xlu0 %v2562
    %v2564 = vpop.xlane.xlu0 %2563
    %v2565 = vsub.f32 %v2562, %v2564
    %v2566 = vmul.f32 %v2565, 1.442695
    %v2567 = vpow.pop %v2566
    %2568 = vadd.xlane.f32.xlu0 %v2567
    %v2569 = vpop.xlane.xlu0 %2568
    %v2570 = vrcp.pop %v2569
    %v2571 = vmul.f32 %v2569, %v2570
    %v2572 = vsub.f32 2.0, %v2571
    %v2573 = vmul.f32 %v2570, %v2572
    %v2574 = vmul.f32 %v2567, %v2573
    %2575 = vst [vmem:[#allocation17] sm:$0xff] %v2574
    %v2576 = vld [vmem:[%s727] sm:$0xff]
    %v2577 = vld [vmem:[%s727 + $0x8] sm:$0xff]
    %v2578 = vld [vmem:[%s727 + $0x10] sm:$0xff]
    %v2579 = vld [vmem:[%s727 + $0x18] sm:$0xff]
    %2580 = vmatprep.subr.mxu0 %v2321
    %2581 = vmatpush1.msra.mxu0 %v2320
    %2582 = vmatprep.subr.mxu0 %v2325
    %2583 = vmatpush1.msra.mxu0 %v2324
    %2584 = vmatprep.subr.mxu0 %v2329
    %2585 = vmatpush1.msra.mxu0 %v2328
    %2586 = vmatprep.subr.mxu0 %v2333
    %2587 = vmatpush1.msra.mxu0 %v2332
    %2588 = vmatprep.subr.mxu0 %v2337
    %2589 = vmatpush1.msra.mxu0 %v2336
    %2590 = vmatprep.subr.mxu0 %v2341
    %2591 = vmatpush1.msra.mxu0 %v2340
    %2592 = vmatprep.subr.mxu0 %v2345
    %2593 = vmatpush1.msra.mxu0 %v2344
    %2594 = vmatprep.subr.mxu0 %v2349
    %2595 = vmatpush1.msra.mxu0 %v2348
    %2596 = vmatprep.subr.mxu0 %v2353
    %2597 = vmatpush1.msra.mxu0 %v2352
    %2598 = vmatprep.subr.mxu0 %v2357
    %2599 = vmatpush1.msra.mxu0 %v2356
    %2600 = vmatprep.subr.mxu0 %v2361
    %2601 = vmatpush1.msra.mxu0 %v2360
    %2602 = vmatprep.subr.mxu0 %v2365
    %2603 = vmatpush1.msra.mxu0 %v2364
    %2604 = vmatprep.subr.mxu0 %v2369
    %2605 = vmatpush1.msra.mxu0 %v2368
    %2606 = vmatprep.subr.mxu0 %v2373
    %2607 = vmatpush1.msra.mxu0 %v2372
    %2608 = vmatprep.subr.mxu0 %v2377
    %2609 = vmatpush1.msra.mxu0 %v2376
    %2610 = vmatprep.subr.mxu0 %v2381
    %2611 = vmatpush1.msra.mxu0 %v2380
    %2612 = vmatprep.subr.mxu0 0.0
    %2613 = vmatpush1.msra.mxu0 0.0
    %2614 = vmatprep.subr.mxu0 0.0
    %2615 = vmatpush1.msra.mxu0 0.0
    %2616 = vmatprep.subr.mxu0 0.0
    %2617 = vmatpush1.msra.mxu0 0.0
    %2618 = vmatprep.subr.mxu0 0.0
    %2619 = vmatpush1.msra.mxu0 0.0
    %2620 = vmatprep.subr.mxu0 0.0
    %2621 = vmatpush1.msra.mxu0 0.0
    %2622 = vmatprep.subr.mxu0 0.0
    %2623 = vmatpush1.msra.mxu0 0.0
    %2624 = vmatprep.subr.mxu0 0.0
    %2625 = vmatpush1.msra.mxu0 0.0
    %2626 = vmatprep.subr.mxu0 0.0
    %2627 = vmatpush1.msra.mxu0 0.0
    %2628 = vmatprep.subr.mxu0 0.0
    %2629 = vmatpush1.msra.mxu0 0.0
    %2630 = vmatprep.subr.mxu0 0.0
    %2631 = vmatpush1.msra.mxu0 0.0
    %2632 = vmatprep.subr.mxu0 0.0
    %2633 = vmatpush1.msra.mxu0 0.0
    %2634 = vmatprep.subr.mxu0 0.0
    %2635 = vmatpush1.msra.mxu0 0.0
    %2636 = vmatprep.subr.mxu0 0.0
    %2637 = vmatpush1.msra.mxu0 0.0
    %2638 = vmatprep.subr.mxu0 0.0
    %2639 = vmatpush1.msra.mxu0 0.0
    %2640 = vmatprep.subr.mxu0 0.0
    %2641 = vmatpush1.msra.mxu0 0.0
    %2642 = vmatprep.subr.mxu0 0.0
    %2643 = vmatpush1.msra.mxu0 0.0
    %2644 = vmatprep.mubr.f32.mxu0 0.0
    %2645 = vmatmul.mubr.f32.gmra.mrb[0].mxu0 %v2561
    %v2646 = vpop.f32.mrb[0].mxu0
    %v2647 = vadd.f32 0.0, %v2646
    %v2648 = vpop.f32.mrb[0].mxu0
    %v2649 = vadd.f32 0.0, %v2648
    %2650 = vdwg.mxu0
    %2651 = vmatprep.subr.mxu0 %v2323
    %2652 = vmatpush1.msra.mxu0 %v2322
    %2653 = vmatprep.subr.mxu0 %v2327
    %2654 = vmatpush1.msra.mxu0 %v2326
    %2655 = vmatprep.subr.mxu0 %v2331
    %2656 = vmatpush1.msra.mxu0 %v2330
    %2657 = vmatprep.subr.mxu0 %v2335
    %2658 = vmatpush1.msra.mxu0 %v2334
    %2659 = vmatprep.subr.mxu0 %v2339
    %2660 = vmatpush1.msra.mxu0 %v2338
    %2661 = vmatprep.subr.mxu0 %v2343
    %2662 = vmatpush1.msra.mxu0 %v2342
    %2663 = vmatprep.subr.mxu0 %v2347
    %2664 = vmatpush1.msra.mxu0 %v2346
    %2665 = vmatprep.subr.mxu0 %v2351
    %2666 = vmatpush1.msra.mxu0 %v2350
    %2667 = vmatprep.subr.mxu0 %v2355
    %2668 = vmatpush1.msra.mxu0 %v2354
    %2669 = vmatprep.subr.mxu0 %v2359
    %2670 = vmatpush1.msra.mxu0 %v2358
    %2671 = vmatprep.subr.mxu0 %v2363
    %2672 = vmatpush1.msra.mxu0 %v2362
    %2673 = vmatprep.subr.mxu0 %v2367
    %2674 = vmatpush1.msra.mxu0 %v2366
    %2675 = vmatprep.subr.mxu0 %v2371
    %2676 = vmatpush1.msra.mxu0 %v2370
    %2677 = vmatprep.subr.mxu0 %v2375
    %2678 = vmatpush1.msra.mxu0 %v2374
    %2679 = vmatprep.subr.mxu0 %v2379
    %2680 = vmatpush1.msra.mxu0 %v2378
    %2681 = vmatprep.subr.mxu0 %v2383
    %2682 = vmatpush1.msra.mxu0 %v2382
    %2683 = vmatprep.subr.mxu0 0.0
    %2684 = vmatpush1.msra.mxu0 0.0
    %2685 = vmatprep.subr.mxu0 0.0
    %2686 = vmatpush1.msra.mxu0 0.0
    %2687 = vmatprep.subr.mxu0 0.0
    %2688 = vmatpush1.msra.mxu0 0.0
    %2689 = vmatprep.subr.mxu0 0.0
    %2690 = vmatpush1.msra.mxu0 0.0
    %2691 = vmatprep.subr.mxu0 0.0
    %2692 = vmatpush1.msra.mxu0 0.0
    %2693 = vmatprep.subr.mxu0 0.0
    %2694 = vmatpush1.msra.mxu0 0.0
    %2695 = vmatprep.subr.mxu0 0.0
    %2696 = vmatpush1.msra.mxu0 0.0
    %2697 = vmatprep.subr.mxu0 0.0
    %2698 = vmatpush1.msra.mxu0 0.0
    %2699 = vmatprep.subr.mxu0 0.0
    %2700 = vmatpush1.msra.mxu0 0.0
    %2701 = vmatprep.subr.mxu0 0.0
    %2702 = vmatpush1.msra.mxu0 0.0
    %2703 = vmatprep.subr.mxu0 0.0
    %2704 = vmatpush1.msra.mxu0 0.0
    %2705 = vmatprep.subr.mxu0 0.0
    %2706 = vmatpush1.msra.mxu0 0.0
    %2707 = vmatprep.subr.mxu0 0.0
    %2708 = vmatpush1.msra.mxu0 0.0
    %2709 = vmatprep.subr.mxu0 0.0
    %2710 = vmatpush1.msra.mxu0 0.0
    %2711 = vmatprep.subr.mxu0 0.0
    %2712 = vmatpush1.msra.mxu0 0.0
    %2713 = vmatprep.subr.mxu0 0.0
    %2714 = vmatpush1.msra.mxu0 0.0
    %2715 = vmatprep.mubr.f32.mxu0 0.0
    %2716 = vmatmul.mubr.f32.gmra.mrb[0].mxu0 %v2561
    %v2717 = vpop.f32.mrb[0].mxu0
    %v2718 = vadd.f32 0.0, %v2717
    %v2719 = vpop.f32.mrb[0].mxu0
    %v2720 = vadd.f32 0.0, %v2719
    %2721 = vdwg.mxu0
    %v2722 = vadd.f32 %v2576, %v2647
    %v2723 = vadd.f32 %v2577, %v2649
    %v2724 = vadd.f32 %v2578, %v2718
    %v2725 = vadd.f32 %v2579, %v2720
    %v2726 = vxor.u32 %v2722, 2147483648
    %v2727 = vmul.f32 %v2726, 1.442695
    %v2728 = vpow.pop %v2727
    %v2729 = vadd.f32 %v2728, 1.0
    %v2730 = vrcp.pop %v2729
    %v2731 = vmul.f32 1.0, %v2730
    %v2732 = vxor.u32 %v2723, 2147483648
    %v2733 = vmul.f32 %v2732, 1.442695
    %v2734 = vpow.pop %v2733
    %v2735 = vadd.f32 %v2734, 1.0
    %v2736 = vrcp.pop %v2735
    %v2737 = vmul.f32 1.0, %v2736
    %v2738 = vtanh.pop %v2724
    %v2739 = vxor.u32 %v2725, 2147483648
    %v2740 = vmul.f32 %v2739, 1.442695
    %v2741 = vpow.pop %v2740
    %v2742 = vadd.f32 %v2741, 1.0
    %v2743 = vrcp.pop %v2742
    %v2744 = vmul.f32 1.0, %v2743
    %v2745 = vmul.f32 %v2737, %v2559
    %v2746 = vmul.f32 %v2731, %v2738
    %v2747 = vadd.f32 %v2745, %v2746
    %v2748 = vtanh.pop %v2747
    %v2749 = vmul.f32 %v2744, %v2748
    %v2750 = vsel %vm133, %v2749, -1e+30
    %2751 = vmax.xlane.f32.xlu0 %v2750
    %v2752 = vpop.xlane.xlu0 %2751
    %v2753 = vsub.f32 %v2750, %v2752
    %v2754 = vmul.f32 %v2753, 1.442695
    %v2755 = vpow.pop %v2754
    %2756 = vadd.xlane.f32.xlu0 %v2755
    %v2757 = vpop.xlane.xlu0 %2756
    %v2758 = vrcp.pop %v2757
    %v2759 = vmul.f32 %v2757, %v2758
    %v2760 = vsub.f32 2.0, %v2759
    %v2761 = vmul.f32 %v2758, %v2760
    %v2762 = vmul.f32 %v2755, %v2761
    %s2763 = scalar_lea.vmem [#allocation17], 8
    %2764 = vst [vmem:[%s2763] sm:$0xff] %v2762
    %v2765 = vld [vmem:[%s904] sm:$0xff]
    %v2766 = vld [vmem:[%s904 + $0x8] sm:$0xff]
    %v2767 = vld [vmem:[%s904 + $0x10] sm:$0xff]
    %v2768 = vld [vmem:[%s904 + $0x18] sm:$0xff]
    %2769 = vmatprep.subr.mxu0 %v2321
    %2770 = vmatpush1.msra.mxu0 %v2320
    %2771 = vmatprep.subr.mxu0 %v2325
    %2772 = vmatpush1.msra.mxu0 %v2324
    %2773 = vmatprep.subr.mxu0 %v2329
    %2774 = vmatpush1.msra.mxu0 %v2328
    %2775 = vmatprep.subr.mxu0 %v2333
    %2776 = vmatpush1.msra.mxu0 %v2332
    %2777 = vmatprep.subr.mxu0 %v2337
    %2778 = vmatpush1.msra.mxu0 %v2336
    %2779 = vmatprep.subr.mxu0 %v2341
    %2780 = vmatpush1.msra.mxu0 %v2340
    %2781 = vmatprep.subr.mxu0 %v2345
    %2782 = vmatpush1.msra.mxu0 %v2344
    %2783 = vmatprep.subr.mxu0 %v2349
    %2784 = vmatpush1.msra.mxu0 %v2348
    %2785 = vmatprep.subr.mxu0 %v2353
    %2786 = vmatpush1.msra.mxu0 %v2352
    %2787 = vmatprep.subr.mxu0 %v2357
    %2788 = vmatpush1.msra.mxu0 %v2356
    %2789 = vmatprep.subr.mxu0 %v2361
    %2790 = vmatpush1.msra.mxu0 %v2360
    %2791 = vmatprep.subr.mxu0 %v2365
    %2792 = vmatpush1.msra.mxu0 %v2364
    %2793 = vmatprep.subr.mxu0 %v2369
    %2794 = vmatpush1.msra.mxu0 %v2368
    %2795 = vmatprep.subr.mxu0 %v2373
    %2796 = vmatpush1.msra.mxu0 %v2372
    %2797 = vmatprep.subr.mxu0 %v2377
    %2798 = vmatpush1.msra.mxu0 %v2376
    %2799 = vmatprep.subr.mxu0 %v2381
    %2800 = vmatpush1.msra.mxu0 %v2380
    %2801 = vmatprep.subr.mxu0 0.0
    %2802 = vmatpush1.msra.mxu0 0.0
    %2803 = vmatprep.subr.mxu0 0.0
    %2804 = vmatpush1.msra.mxu0 0.0
    %2805 = vmatprep.subr.mxu0 0.0
    %2806 = vmatpush1.msra.mxu0 0.0
    %2807 = vmatprep.subr.mxu0 0.0
    %2808 = vmatpush1.msra.mxu0 0.0
    %2809 = vmatprep.subr.mxu0 0.0
    %2810 = vmatpush1.msra.mxu0 0.0
    %2811 = vmatprep.subr.mxu0 0.0
    %2812 = vmatpush1.msra.mxu0 0.0
    %2813 = vmatprep.subr.mxu0 0.0
    %2814 = vmatpush1.msra.mxu0 0.0
    %2815 = vmatprep.subr.mxu0 0.0
    %2816 = vmatpush1.msra.mxu0 0.0
    %2817 = vmatprep.subr.mxu0 0.0
    %2818 = vmatpush1.msra.mxu0 0.0
    %2819 = vmatprep.subr.mxu0 0.0
    %2820 = vmatpush1.msra.mxu0 0.0
    %2821 = vmatprep.subr.mxu0 0.0
    %2822 = vmatpush1.msra.mxu0 0.0
    %2823 = vmatprep.subr.mxu0 0.0
    %2824 = vmatpush1.msra.mxu0 0.0
    %2825 = vmatprep.subr.mxu0 0.0
    %2826 = vmatpush1.msra.mxu0 0.0
    %2827 = vmatprep.subr.mxu0 0.0
    %2828 = vmatpush1.msra.mxu0 0.0
    %2829 = vmatprep.subr.mxu0 0.0
    %2830 = vmatpush1.msra.mxu0 0.0
    %2831 = vmatprep.subr.mxu0 0.0
    %2832 = vmatpush1.msra.mxu0 0.0
    %2833 = vmatprep.mubr.f32.mxu0 0.0
    %2834 = vmatmul.mubr.f32.gmra.mrb[0].mxu0 %v2749
    %v2835 = vpop.f32.mrb[0].mxu0
    %v2836 = vadd.f32 0.0, %v2835
    %v2837 = vpop.f32.mrb[0].mxu0
    %v2838 = vadd.f32 0.0, %v2837
    %2839 = vdwg.mxu0
    %2840 = vmatprep.subr.mxu0 %v2323
    %2841 = vmatpush1.msra.mxu0 %v2322
    %2842 = vmatprep.subr.mxu0 %v2327
    %2843 = vmatpush1.msra.mxu0 %v2326
    %2844 = vmatprep.subr.mxu0 %v2331
    %2845 = vmatpush1.msra.mxu0 %v2330
    %2846 = vmatprep.subr.mxu0 %v2335
    %2847 = vmatpush1.msra.mxu0 %v2334
    %2848 = vmatprep.subr.mxu0 %v2339
    %2849 = vmatpush1.msra.mxu0 %v2338
    %2850 = vmatprep.subr.mxu0 %v2343
    %2851 = vmatpush1.msra.mxu0 %v2342
    %2852 = vmatprep.subr.mxu0 %v2347
    %2853 = vmatpush1.msra.mxu0 %v2346
    %2854 = vmatprep.subr.mxu0 %v2351
    %2855 = vmatpush1.msra.mxu0 %v2350
    %2856 = vmatprep.subr.mxu0 %v2355
    %2857 = vmatpush1.msra.mxu0 %v2354
    %2858 = vmatprep.subr.mxu0 %v2359
    %2859 = vmatpush1.msra.mxu0 %v2358
    %2860 = vmatprep.subr.mxu0 %v2363
    %2861 = vmatpush1.msra.mxu0 %v2362
    %2862 = vmatprep.subr.mxu0 %v2367
    %2863 = vmatpush1.msra.mxu0 %v2366
    %2864 = vmatprep.subr.mxu0 %v2371
    %2865 = vmatpush1.msra.mxu0 %v2370
    %2866 = vmatprep.subr.mxu0 %v2375
    %2867 = vmatpush1.msra.mxu0 %v2374
    %2868 = vmatprep.subr.mxu0 %v2379
    %2869 = vmatpush1.msra.mxu0 %v2378
    %2870 = vmatprep.subr.mxu0 %v2383
    %2871 = vmatpush1.msra.mxu0 %v2382
    %2872 = vmatprep.subr.mxu0 0.0
    %2873 = vmatpush1.msra.mxu0 0.0
    %2874 = vmatprep.subr.mxu0 0.0
    %2875 = vmatpush1.msra.mxu0 0.0
    %2876 = vmatprep.subr.mxu0 0.0
    %2877 = vmatpush1.msra.mxu0 0.0
    %2878 = vmatprep.subr.mxu0 0.0
    %2879 = vmatpush1.msra.mxu0 0.0
    %2880 = vmatprep.subr.mxu0 0.0
    %2881 = vmatpush1.msra.mxu0 0.0
    %2882 = vmatprep.subr.mxu0 0.0
    %2883 = vmatpush1.msra.mxu0 0.0
    %2884 = vmatprep.subr.mxu0 0.0
    %2885 = vmatpush1.msra.mxu0 0.0
    %2886 = vmatprep.subr.mxu0 0.0
    %2887 = vmatpush1.msra.mxu0 0.0
    %2888 = vmatprep.subr.mxu0 0.0
    %2889 = vmatpush1.msra.mxu0 0.0
    %2890 = vmatprep.subr.mxu0 0.0
    %2891 = vmatpush1.msra.mxu0 0.0
    %2892 = vmatprep.subr.mxu0 0.0
    %2893 = vmatpush1.msra.mxu0 0.0
    %2894 = vmatprep.subr.mxu0 0.0
    %2895 = vmatpush1.msra.mxu0 0.0
    %2896 = vmatprep.subr.mxu0 0.0
    %2897 = vmatpush1.msra.mxu0 0.0
    %2898 = vmatprep.subr.mxu0 0.0
    %2899 = vmatpush1.msra.mxu0 0.0
    %2900 = vmatprep.subr.mxu0 0.0
    %2901 = vmatpush1.msra.mxu0 0.0
    %2902 = vmatprep.subr.mxu0 0.0
    %2903 = vmatpush1.msra.mxu0 0.0
    %2904 = vmatprep.mubr.f32.mxu0 0.0
    %2905 = vmatmul.mubr.f32.gmra.mrb[0].mxu0 %v2749
    %v2906 = vpop.f32.mrb[0].mxu0
    %v2907 = vadd.f32 0.0, %v2906
    %v2908 = vpop.f32.mrb[0].mxu0
    %v2909 = vadd.f32 0.0, %v2908
    %2910 = vdwg.mxu0
    %v2911 = vadd.f32 %v2765, %v2836
    %v2912 = vadd.f32 %v2766, %v2838
    %v2913 = vadd.f32 %v2767, %v2907
    %v2914 = vadd.f32 %v2768, %v2909
    %v2915 = vxor.u32 %v2911, 2147483648
    %v2916 = vmul.f32 %v2915, 1.442695
    %v2917 = vpow.pop %v2916
    %v2918 = vadd.f32 %v2917, 1.0
    %v2919 = vrcp.pop %v2918
    %v2920 = vmul.f32 1.0, %v2919
    %v2921 = vxor.u32 %v2912, 2147483648
    %v2922 = vmul.f32 %v2921, 1.442695
    %v2923 = vpow.pop %v2922
    %v2924 = vadd.f32 %v2923, 1.0
    %v2925 = vrcp.pop %v2924
    %v2926 = vmul.f32 1.0, %v2925
    %v2927 = vtanh.pop %v2913
    %v2928 = vxor.u32 %v2914, 2147483648
    %v2929 = vmul.f32 %v2928, 1.442695
    %v2930 = vpow.pop %v2929
    %v2931 = vadd.f32 %v2930, 1.0
    %v2932 = vrcp.pop %v2931
    %v2933 = vmul.f32 1.0, %v2932
    %v2934 = vmul.f32 %v2926, %v2747
    %v2935 = vmul.f32 %v2920, %v2927
    %v2936 = vadd.f32 %v2934, %v2935
    %v2937 = vtanh.pop %v2936
    %v2938 = vmul.f32 %v2933, %v2937
    %v2939 = vsel %vm133, %v2938, -1e+30
    %2940 = vmax.xlane.f32.xlu0 %v2939
    %v2941 = vpop.xlane.xlu0 %2940
    %v2942 = vsub.f32 %v2939, %v2941
    %v2943 = vmul.f32 %v2942, 1.442695
    %v2944 = vpow.pop %v2943
    %2945 = vadd.xlane.f32.xlu0 %v2944
    %v2946 = vpop.xlane.xlu0 %2945
    %v2947 = vrcp.pop %v2946
    %v2948 = vmul.f32 %v2946, %v2947
    %v2949 = vsub.f32 2.0, %v2948
    %v2950 = vmul.f32 %v2947, %v2949
    %v2951 = vmul.f32 %v2944, %v2950
    %s2952 = scalar_lea.vmem [#allocation17], 16
    %2953 = vst [vmem:[%s2952] sm:$0xff] %v2951
    %v2954 = vld [vmem:[%s1081] sm:$0xff]
    %v2955 = vld [vmem:[%s1081 + $0x8] sm:$0xff]
    %v2956 = vld [vmem:[%s1081 + $0x10] sm:$0xff]
    %v2957 = vld [vmem:[%s1081 + $0x18] sm:$0xff]
    %2958 = vmatprep.subr.mxu0 %v2321
    %2959 = vmatpush1.msra.mxu0 %v2320
    %2960 = vmatprep.subr.mxu0 %v2325
    %2961 = vmatpush1.msra.mxu0 %v2324
    %2962 = vmatprep.subr.mxu0 %v2329
    %2963 = vmatpush1.msra.mxu0 %v2328
    %2964 = vmatprep.subr.mxu0 %v2333
    %2965 = vmatpush1.msra.mxu0 %v2332
    %2966 = vmatprep.subr.mxu0 %v2337
    %2967 = vmatpush1.msra.mxu0 %v2336
    %2968 = vmatprep.subr.mxu0 %v2341
    %2969 = vmatpush1.msra.mxu0 %v2340
    %2970 = vmatprep.subr.mxu0 %v2345
    %2971 = vmatpush1.msra.mxu0 %v2344
    %2972 = vmatprep.subr.mxu0 %v2349
    %2973 = vmatpush1.msra.mxu0 %v2348
    %2974 = vmatprep.subr.mxu0 %v2353
    %2975 = vmatpush1.msra.mxu0 %v2352
    %2976 = vmatprep.subr.mxu0 %v2357
    %2977 = vmatpush1.msra.mxu0 %v2356
    %2978 = vmatprep.subr.mxu0 %v2361
    %2979 = vmatpush1.msra.mxu0 %v2360
    %2980 = vmatprep.subr.mxu0 %v2365
    %2981 = vmatpush1.msra.mxu0 %v2364
    %2982 = vmatprep.subr.mxu0 %v2369
    %2983 = vmatpush1.msra.mxu0 %v2368
    %2984 = vmatprep.subr.mxu0 %v2373
    %2985 = vmatpush1.msra.mxu0 %v2372
    %2986 = vmatprep.subr.mxu0 %v2377
    %2987 = vmatpush1.msra.mxu0 %v2376
    %2988 = vmatprep.subr.mxu0 %v2381
    %2989 = vmatpush1.msra.mxu0 %v2380
    %2990 = vmatprep.subr.mxu0 0.0
    %2991 = vmatpush1.msra.mxu0 0.0
    %2992 = vmatprep.subr.mxu0 0.0
    %2993 = vmatpush1.msra.mxu0 0.0
    %2994 = vmatprep.subr.mxu0 0.0
    %2995 = vmatpush1.msra.mxu0 0.0
    %2996 = vmatprep.subr.mxu0 0.0
    %2997 = vmatpush1.msra.mxu0 0.0
    %2998 = vmatprep.subr.mxu0 0.0
    %2999 = vmatpush1.msra.mxu0 0.0
    %3000 = vmatprep.subr.mxu0 0.0
    %3001 = vmatpush1.msra.mxu0 0.0
    %3002 = vmatprep.subr.mxu0 0.0
    %3003 = vmatpush1.msra.mxu0 0.0
    %3004 = vmatprep.subr.mxu0 0.0
    %3005 = vmatpush1.msra.mxu0 0.0
    %3006 = vmatprep.subr.mxu0 0.0
    %3007 = vmatpush1.msra.mxu0 0.0
    %3008 = vmatprep.subr.mxu0 0.0
    %3009 = vmatpush1.msra.mxu0 0.0
    %3010 = vmatprep.subr.mxu0 0.0
    %3011 = vmatpush1.msra.mxu0 0.0
    %3012 = vmatprep.subr.mxu0 0.0
    %3013 = vmatpush1.msra.mxu0 0.0
    %3014 = vmatprep.subr.mxu0 0.0
    %3015 = vmatpush1.msra.mxu0 0.0
    %3016 = vmatprep.subr.mxu0 0.0
    %3017 = vmatpush1.msra.mxu0 0.0
    %3018 = vmatprep.subr.mxu0 0.0
    %3019 = vmatpush1.msra.mxu0 0.0
    %3020 = vmatprep.subr.mxu0 0.0
    %3021 = vmatpush1.msra.mxu0 0.0
    %3022 = vmatprep.mubr.f32.mxu0 0.0
    %3023 = vmatmul.mubr.f32.gmra.mrb[0].mxu0 %v2938
    %v3024 = vpop.f32.mrb[0].mxu0
    %v3025 = vadd.f32 0.0, %v3024
    %v3026 = vpop.f32.mrb[0].mxu0
    %v3027 = vadd.f32 0.0, %v3026
    %3028 = vdwg.mxu0
    %3029 = vmatprep.subr.mxu0 %v2323
    %3030 = vmatpush1.msra.mxu0 %v2322
    %3031 = vmatprep.subr.mxu0 %v2327
    %3032 = vmatpush1.msra.mxu0 %v2326
    %3033 = vmatprep.subr.mxu0 %v2331
    %3034 = vmatpush1.msra.mxu0 %v2330
    %3035 = vmatprep.subr.mxu0 %v2335
    %3036 = vmatpush1.msra.mxu0 %v2334
    %3037 = vmatprep.subr.mxu0 %v2339
    %3038 = vmatpush1.msra.mxu0 %v2338
    %3039 = vmatprep.subr.mxu0 %v2343
    %3040 = vmatpush1.msra.mxu0 %v2342
    %3041 = vmatprep.subr.mxu0 %v2347
    %3042 = vmatpush1.msra.mxu0 %v2346
    %3043 = vmatprep.subr.mxu0 %v2351
    %3044 = vmatpush1.msra.mxu0 %v2350
    %3045 = vmatprep.subr.mxu0 %v2355
    %3046 = vmatpush1.msra.mxu0 %v2354
    %3047 = vmatprep.subr.mxu0 %v2359
    %3048 = vmatpush1.msra.mxu0 %v2358
    %3049 = vmatprep.subr.mxu0 %v2363
    %3050 = vmatpush1.msra.mxu0 %v2362
    %3051 = vmatprep.subr.mxu0 %v2367
    %3052 = vmatpush1.msra.mxu0 %v2366
    %3053 = vmatprep.subr.mxu0 %v2371
    %3054 = vmatpush1.msra.mxu0 %v2370
    %3055 = vmatprep.subr.mxu0 %v2375
    %3056 = vmatpush1.msra.mxu0 %v2374
    %3057 = vmatprep.subr.mxu0 %v2379
    %3058 = vmatpush1.msra.mxu0 %v2378
    %3059 = vmatprep.subr.mxu0 %v2383
    %3060 = vmatpush1.msra.mxu0 %v2382
    %3061 = vmatprep.subr.mxu0 0.0
    %3062 = vmatpush1.msra.mxu0 0.0
    %3063 = vmatprep.subr.mxu0 0.0
    %3064 = vmatpush1.msra.mxu0 0.0
    %3065 = vmatprep.subr.mxu0 0.0
    %3066 = vmatpush1.msra.mxu0 0.0
    %3067 = vmatprep.subr.mxu0 0.0
    %3068 = vmatpush1.msra.mxu0 0.0
    %3069 = vmatprep.subr.mxu0 0.0
    %3070 = vmatpush1.msra.mxu0 0.0
    %3071 = vmatprep.subr.mxu0 0.0
    %3072 = vmatpush1.msra.mxu0 0.0
    %3073 = vmatprep.subr.mxu0 0.0
    %3074 = vmatpush1.msra.mxu0 0.0
    %3075 = vmatprep.subr.mxu0 0.0
    %3076 = vmatpush1.msra.mxu0 0.0
    %3077 = vmatprep.subr.mxu0 0.0
    %3078 = vmatpush1.msra.mxu0 0.0
    %3079 = vmatprep.subr.mxu0 0.0
    %3080 = vmatpush1.msra.mxu0 0.0
    %3081 = vmatprep.subr.mxu0 0.0
    %3082 = vmatpush1.msra.mxu0 0.0
    %3083 = vmatprep.subr.mxu0 0.0
    %3084 = vmatpush1.msra.mxu0 0.0
    %3085 = vmatprep.subr.mxu0 0.0
    %3086 = vmatpush1.msra.mxu0 0.0
    %3087 = vmatprep.subr.mxu0 0.0
    %3088 = vmatpush1.msra.mxu0 0.0
    %3089 = vmatprep.subr.mxu0 0.0
    %3090 = vmatpush1.msra.mxu0 0.0
    %3091 = vmatprep.subr.mxu0 0.0
    %3092 = vmatpush1.msra.mxu0 0.0
    %3093 = vmatprep.mubr.f32.mxu0 0.0
    %3094 = vmatmul.mubr.f32.gmra.mrb[0].mxu0 %v2938
    %v3095 = vpop.f32.mrb[0].mxu0
    %v3096 = vadd.f32 0.0, %v3095
    %v3097 = vpop.f32.mrb[0].mxu0
    %v3098 = vadd.f32 0.0, %v3097
    %3099 = vdwg.mxu0
    %v3100 = vadd.f32 %v2954, %v3025
    %v3101 = vadd.f32 %v2955, %v3027
    %v3102 = vadd.f32 %v2956, %v3096
    %v3103 = vadd.f32 %v2957, %v3098
    %v3104 = vxor.u32 %v3100, 2147483648
    %v3105 = vmul.f32 %v3104, 1.442695
    %v3106 = vpow.pop %v3105
    %v3107 = vadd.f32 %v3106, 1.0
    %v3108 = vrcp.pop %v3107
    %v3109 = vmul.f32 1.0, %v3108
    %v3110 = vxor.u32 %v3101, 2147483648
    %v3111 = vmul.f32 %v3110, 1.442695
    %v3112 = vpow.pop %v3111
    %v3113 = vadd.f32 %v3112, 1.0
    %v3114 = vrcp.pop %v3113
    %v3115 = vmul.f32 1.0, %v3114
    %v3116 = vtanh.pop %v3102
    %v3117 = vxor.u32 %v3103, 2147483648
    %v3118 = vmul.f32 %v3117, 1.442695
    %v3119 = vpow.pop %v3118
    %v3120 = vadd.f32 %v3119, 1.0
    %v3121 = vrcp.pop %v3120
    %v3122 = vmul.f32 1.0, %v3121
    %v3123 = vmul.f32 %v3115, %v2936
    %v3124 = vmul.f32 %v3109, %v3116
    %v3125 = vadd.f32 %v3123, %v3124
    %v3126 = vtanh.pop %v3125
    %v3127 = vmul.f32 %v3122, %v3126
    %v3128 = vsel %vm133, %v3127, -1e+30
    %3129 = vmax.xlane.f32.xlu0 %v3128
    %v3130 = vpop.xlane.xlu0 %3129
    %v3131 = vsub.f32 %v3128, %v3130
    %v3132 = vmul.f32 %v3131, 1.442695
    %v3133 = vpow.pop %v3132
    %3134 = vadd.xlane.f32.xlu0 %v3133
    %v3135 = vpop.xlane.xlu0 %3134
    %v3136 = vrcp.pop %v3135
    %v3137 = vmul.f32 %v3135, %v3136
    %v3138 = vsub.f32 2.0, %v3137
    %v3139 = vmul.f32 %v3136, %v3138
    %v3140 = vmul.f32 %v3133, %v3139
    %s3141 = scalar_lea.vmem [#allocation17], 24
    %3142 = vst [vmem:[%s3141] sm:$0xff] %v3140
    %v3143 = vld [vmem:[%s1258] sm:$0xff]
    %v3144 = vld [vmem:[%s1258 + $0x8] sm:$0xff]
    %v3145 = vld [vmem:[%s1258 + $0x10] sm:$0xff]
    %v3146 = vld [vmem:[%s1258 + $0x18] sm:$0xff]
    %3147 = vmatprep.subr.mxu0 %v2321
    %3148 = vmatpush1.msra.mxu0 %v2320
    %3149 = vmatprep.subr.mxu0 %v2325
    %3150 = vmatpush1.msra.mxu0 %v2324
    %3151 = vmatprep.subr.mxu0 %v2329
    %3152 = vmatpush1.msra.mxu0 %v2328
    %3153 = vmatprep.subr.mxu0 %v2333
    %3154 = vmatpush1.msra.mxu0 %v2332
    %3155 = vmatprep.subr.mxu0 %v2337
    %3156 = vmatpush1.msra.mxu0 %v2336
    %3157 = vmatprep.subr.mxu0 %v2341
    %3158 = vmatpush1.msra.mxu0 %v2340
    %3159 = vmatprep.subr.mxu0 %v2345
    %3160 = vmatpush1.msra.mxu0 %v2344
    %3161 = vmatprep.subr.mxu0 %v2349
    %3162 = vmatpush1.msra.mxu0 %v2348
    %3163 = vmatprep.subr.mxu0 %v2353
    %3164 = vmatpush1.msra.mxu0 %v2352
    %3165 = vmatprep.subr.mxu0 %v2357
    %3166 = vmatpush1.msra.mxu0 %v2356
    %3167 = vmatprep.subr.mxu0 %v2361
    %3168 = vmatpush1.msra.mxu0 %v2360
    %3169 = vmatprep.subr.mxu0 %v2365
    %3170 = vmatpush1.msra.mxu0 %v2364
    %3171 = vmatprep.subr.mxu0 %v2369
    %3172 = vmatpush1.msra.mxu0 %v2368
    %3173 = vmatprep.subr.mxu0 %v2373
    %3174 = vmatpush1.msra.mxu0 %v2372
    %3175 = vmatprep.subr.mxu0 %v2377
    %3176 = vmatpush1.msra.mxu0 %v2376
    %3177 = vmatprep.subr.mxu0 %v2381
    %3178 = vmatpush1.msra.mxu0 %v2380
    %3179 = vmatprep.subr.mxu0 0.0
    %3180 = vmatpush1.msra.mxu0 0.0
    %3181 = vmatprep.subr.mxu0 0.0
    %3182 = vmatpush1.msra.mxu0 0.0
    %3183 = vmatprep.subr.mxu0 0.0
    %3184 = vmatpush1.msra.mxu0 0.0
    %3185 = vmatprep.subr.mxu0 0.0
    %3186 = vmatpush1.msra.mxu0 0.0
    %3187 = vmatprep.subr.mxu0 0.0
    %3188 = vmatpush1.msra.mxu0 0.0
    %3189 = vmatprep.subr.mxu0 0.0
    %3190 = vmatpush1.msra.mxu0 0.0
    %3191 = vmatprep.subr.mxu0 0.0
    %3192 = vmatpush1.msra.mxu0 0.0
    %3193 = vmatprep.subr.mxu0 0.0
    %3194 = vmatpush1.msra.mxu0 0.0
    %3195 = vmatprep.subr.mxu0 0.0
    %3196 = vmatpush1.msra.mxu0 0.0
    %3197 = vmatprep.subr.mxu0 0.0
    %3198 = vmatpush1.msra.mxu0 0.0
    %3199 = vmatprep.subr.mxu0 0.0
    %3200 = vmatpush1.msra.mxu0 0.0
    %3201 = vmatprep.subr.mxu0 0.0
    %3202 = vmatpush1.msra.mxu0 0.0
    %3203 = vmatprep.subr.mxu0 0.0
    %3204 = vmatpush1.msra.mxu0 0.0
    %3205 = vmatprep.subr.mxu0 0.0
    %3206 = vmatpush1.msra.mxu0 0.0
    %3207 = vmatprep.subr.mxu0 0.0
    %3208 = vmatpush1.msra.mxu0 0.0
    %3209 = vmatprep.subr.mxu0 0.0
    %3210 = vmatpush1.msra.mxu0 0.0
    %3211 = vmatprep.mubr.f32.mxu0 0.0
    %3212 = vmatmul.mubr.f32.gmra.mrb[0].mxu0 %v3127
    %v3213 = vpop.f32.mrb[0].mxu0
    %v3214 = vadd.f32 0.0, %v3213
    %v3215 = vpop.f32.mrb[0].mxu0
    %v3216 = vadd.f32 0.0, %v3215
    %3217 = vdwg.mxu0
    %3218 = vmatprep.subr.mxu0 %v2323
    %3219 = vmatpush1.msra.mxu0 %v2322
    %3220 = vmatprep.subr.mxu0 %v2327
    %3221 = vmatpush1.msra.mxu0 %v2326
    %3222 = vmatprep.subr.mxu0 %v2331
    %3223 = vmatpush1.msra.mxu0 %v2330
    %3224 = vmatprep.subr.mxu0 %v2335
    %3225 = vmatpush1.msra.mxu0 %v2334
    %3226 = vmatprep.subr.mxu0 %v2339
    %3227 = vmatpush1.msra.mxu0 %v2338
    %3228 = vmatprep.subr.mxu0 %v2343
    %3229 = vmatpush1.msra.mxu0 %v2342
    %3230 = vmatprep.subr.mxu0 %v2347
    %3231 = vmatpush1.msra.mxu0 %v2346
    %3232 = vmatprep.subr.mxu0 %v2351
    %3233 = vmatpush1.msra.mxu0 %v2350
    %3234 = vmatprep.subr.mxu0 %v2355
    %3235 = vmatpush1.msra.mxu0 %v2354
    %3236 = vmatprep.subr.mxu0 %v2359
    %3237 = vmatpush1.msra.mxu0 %v2358
    %3238 = vmatprep.subr.mxu0 %v2363
    %3239 = vmatpush1.msra.mxu0 %v2362
    %3240 = vmatprep.subr.mxu0 %v2367
    %3241 = vmatpush1.msra.mxu0 %v2366
    %3242 = vmatprep.subr.mxu0 %v2371
    %3243 = vmatpush1.msra.mxu0 %v2370
    %3244 = vmatprep.subr.mxu0 %v2375
    %3245 = vmatpush1.msra.mxu0 %v2374
    %3246 = vmatprep.subr.mxu0 %v2379
    %3247 = vmatpush1.msra.mxu0 %v2378
    %3248 = vmatprep.subr.mxu0 %v2383
    %3249 = vmatpush1.msra.mxu0 %v2382
    %3250 = vmatprep.subr.mxu0 0.0
    %3251 = vmatpush1.msra.mxu0 0.0
    %3252 = vmatprep.subr.mxu0 0.0
    %3253 = vmatpush1.msra.mxu0 0.0
    %3254 = vmatprep.subr.mxu0 0.0
    %3255 = vmatpush1.msra.mxu0 0.0
    %3256 = vmatprep.subr.mxu0 0.0
    %3257 = vmatpush1.msra.mxu0 0.0
    %3258 = vmatprep.subr.mxu0 0.0
    %3259 = vmatpush1.msra.mxu0 0.0
    %3260 = vmatprep.subr.mxu0 0.0
    %3261 = vmatpush1.msra.mxu0 0.0
    %3262 = vmatprep.subr.mxu0 0.0
    %3263 = vmatpush1.msra.mxu0 0.0
    %3264 = vmatprep.subr.mxu0 0.0
    %3265 = vmatpush1.msra.mxu0 0.0
    %3266 = vmatprep.subr.mxu0 0.0
    %3267 = vmatpush1.msra.mxu0 0.0
    %3268 = vmatprep.subr.mxu0 0.0
    %3269 = vmatpush1.msra.mxu0 0.0
    %3270 = vmatprep.subr.mxu0 0.0
    %3271 = vmatpush1.msra.mxu0 0.0
    %3272 = vmatprep.subr.mxu0 0.0
    %3273 = vmatpush1.msra.mxu0 0.0
    %3274 = vmatprep.subr.mxu0 0.0
    %3275 = vmatpush1.msra.mxu0 0.0
    %3276 = vmatprep.subr.mxu0 0.0
    %3277 = vmatpush1.msra.mxu0 0.0
    %3278 = vmatprep.subr.mxu0 0.0
    %3279 = vmatpush1.msra.mxu0 0.0
    %3280 = vmatprep.subr.mxu0 0.0
    %3281 = vmatpush1.msra.mxu0 0.0
    %3282 = vmatprep.mubr.f32.mxu0 0.0
    %3283 = vmatmul.mubr.f32.gmra.mrb[0].mxu0 %v3127
    %v3284 = vpop.f32.mrb[0].mxu0
    %v3285 = vadd.f32 0.0, %v3284
    %v3286 = vpop.f32.mrb[0].mxu0
    %v3287 = vadd.f32 0.0, %v3286
    %3288 = vdwg.mxu0
    %v3289 = vadd.f32 %v3143, %v3214
    %v3290 = vadd.f32 %v3144, %v3216
    %v3291 = vadd.f32 %v3145, %v3285
    %v3292 = vadd.f32 %v3146, %v3287
    %v3293 = vxor.u32 %v3289, 2147483648
    %v3294 = vmul.f32 %v3293, 1.442695
    %v3295 = vpow.pop %v3294
    %v3296 = vadd.f32 %v3295, 1.0
    %v3297 = vrcp.pop %v3296
    %v3298 = vmul.f32 1.0, %v3297
    %v3299 = vxor.u32 %v3290, 2147483648
    %v3300 = vmul.f32 %v3299, 1.442695
    %v3301 = vpow.pop %v3300
    %v3302 = vadd.f32 %v3301, 1.0
    %v3303 = vrcp.pop %v3302
    %v3304 = vmul.f32 1.0, %v3303
    %v3305 = vtanh.pop %v3291
    %v3306 = vxor.u32 %v3292, 2147483648
    %v3307 = vmul.f32 %v3306, 1.442695
    %v3308 = vpow.pop %v3307
    %v3309 = vadd.f32 %v3308, 1.0
    %v3310 = vrcp.pop %v3309
    %v3311 = vmul.f32 1.0, %v3310
    %v3312 = vmul.f32 %v3304, %v3125
    %v3313 = vmul.f32 %v3298, %v3305
    %v3314 = vadd.f32 %v3312, %v3313
    %v3315 = vtanh.pop %v3314
    %v3316 = vmul.f32 %v3311, %v3315
    %v3317 = vsel %vm133, %v3316, -1e+30
    %3318 = vmax.xlane.f32.xlu0 %v3317
    %v3319 = vpop.xlane.xlu0 %3318
    %v3320 = vsub.f32 %v3317, %v3319
    %v3321 = vmul.f32 %v3320, 1.442695
    %v3322 = vpow.pop %v3321
    %3323 = vadd.xlane.f32.xlu0 %v3322
    %v3324 = vpop.xlane.xlu0 %3323
    %v3325 = vrcp.pop %v3324
    %v3326 = vmul.f32 %v3324, %v3325
    %v3327 = vsub.f32 2.0, %v3326
    %v3328 = vmul.f32 %v3325, %v3327
    %v3329 = vmul.f32 %v3322, %v3328
    %s3330 = scalar_lea.vmem [#allocation17], 32
    %3331 = vst [vmem:[%s3330] sm:$0xff] %v3329
    %v3332 = vld [vmem:[%s1435] sm:$0xff]
    %v3333 = vld [vmem:[%s1435 + $0x8] sm:$0xff]
    %v3334 = vld [vmem:[%s1435 + $0x10] sm:$0xff]
    %v3335 = vld [vmem:[%s1435 + $0x18] sm:$0xff]
    %3336 = vmatprep.subr.mxu0 %v2321
    %3337 = vmatpush1.msra.mxu0 %v2320
    %3338 = vmatprep.subr.mxu0 %v2325
    %3339 = vmatpush1.msra.mxu0 %v2324
    %3340 = vmatprep.subr.mxu0 %v2329
    %3341 = vmatpush1.msra.mxu0 %v2328
    %3342 = vmatprep.subr.mxu0 %v2333
    %3343 = vmatpush1.msra.mxu0 %v2332
    %3344 = vmatprep.subr.mxu0 %v2337
    %3345 = vmatpush1.msra.mxu0 %v2336
    %3346 = vmatprep.subr.mxu0 %v2341
    %3347 = vmatpush1.msra.mxu0 %v2340
    %3348 = vmatprep.subr.mxu0 %v2345
    %3349 = vmatpush1.msra.mxu0 %v2344
    %3350 = vmatprep.subr.mxu0 %v2349
    %3351 = vmatpush1.msra.mxu0 %v2348
    %3352 = vmatprep.subr.mxu0 %v2353
    %3353 = vmatpush1.msra.mxu0 %v2352
    %3354 = vmatprep.subr.mxu0 %v2357
    %3355 = vmatpush1.msra.mxu0 %v2356
    %3356 = vmatprep.subr.mxu0 %v2361
    %3357 = vmatpush1.msra.mxu0 %v2360
    %3358 = vmatprep.subr.mxu0 %v2365
    %3359 = vmatpush1.msra.mxu0 %v2364
    %3360 = vmatprep.subr.mxu0 %v2369
    %3361 = vmatpush1.msra.mxu0 %v2368
    %3362 = vmatprep.subr.mxu0 %v2373
    %3363 = vmatpush1.msra.mxu0 %v2372
    %3364 = vmatprep.subr.mxu0 %v2377
    %3365 = vmatpush1.msra.mxu0 %v2376
    %3366 = vmatprep.subr.mxu0 %v2381
    %3367 = vmatpush1.msra.mxu0 %v2380
    %3368 = vmatprep.subr.mxu0 0.0
    %3369 = vmatpush1.msra.mxu0 0.0
    %3370 = vmatprep.subr.mxu0 0.0
    %3371 = vmatpush1.msra.mxu0 0.0
    %3372 = vmatprep.subr.mxu0 0.0
    %3373 = vmatpush1.msra.mxu0 0.0
    %3374 = vmatprep.subr.mxu0 0.0
    %3375 = vmatpush1.msra.mxu0 0.0
    %3376 = vmatprep.subr.mxu0 0.0
    %3377 = vmatpush1.msra.mxu0 0.0
    %3378 = vmatprep.subr.mxu0 0.0
    %3379 = vmatpush1.msra.mxu0 0.0
    %3380 = vmatprep.subr.mxu0 0.0
    %3381 = vmatpush1.msra.mxu0 0.0
    %3382 = vmatprep.subr.mxu0 0.0
    %3383 = vmatpush1.msra.mxu0 0.0
    %3384 = vmatprep.subr.mxu0 0.0
    %3385 = vmatpush1.msra.mxu0 0.0
    %3386 = vmatprep.subr.mxu0 0.0
    %3387 = vmatpush1.msra.mxu0 0.0
    %3388 = vmatprep.subr.mxu0 0.0
    %3389 = vmatpush1.msra.mxu0 0.0
    %3390 = vmatprep.subr.mxu0 0.0
    %3391 = vmatpush1.msra.mxu0 0.0
    %3392 = vmatprep.subr.mxu0 0.0
    %3393 = vmatpush1.msra.mxu0 0.0
    %3394 = vmatprep.subr.mxu0 0.0
    %3395 = vmatpush1.msra.mxu0 0.0
    %3396 = vmatprep.subr.mxu0 0.0
    %3397 = vmatpush1.msra.mxu0 0.0
    %3398 = vmatprep.subr.mxu0 0.0
    %3399 = vmatpush1.msra.mxu0 0.0
    %3400 = vmatprep.mubr.f32.mxu0 0.0
    %3401 = vmatmul.mubr.f32.gmra.mrb[0].mxu0 %v3316
    %v3402 = vpop.f32.mrb[0].mxu0
    %v3403 = vadd.f32 0.0, %v3402
    %v3404 = vpop.f32.mrb[0].mxu0
    %v3405 = vadd.f32 0.0, %v3404
    %3406 = vdwg.mxu0
    %3407 = vmatprep.subr.mxu0 %v2323
    %3408 = vmatpush1.msra.mxu0 %v2322
    %3409 = vmatprep.subr.mxu0 %v2327
    %3410 = vmatpush1.msra.mxu0 %v2326
    %3411 = vmatprep.subr.mxu0 %v2331
    %3412 = vmatpush1.msra.mxu0 %v2330
    %3413 = vmatprep.subr.mxu0 %v2335
    %3414 = vmatpush1.msra.mxu0 %v2334
    %3415 = vmatprep.subr.mxu0 %v2339
    %3416 = vmatpush1.msra.mxu0 %v2338
    %3417 = vmatprep.subr.mxu0 %v2343
    %3418 = vmatpush1.msra.mxu0 %v2342
    %3419 = vmatprep.subr.mxu0 %v2347
    %3420 = vmatpush1.msra.mxu0 %v2346
    %3421 = vmatprep.subr.mxu0 %v2351
    %3422 = vmatpush1.msra.mxu0 %v2350
    %3423 = vmatprep.subr.mxu0 %v2355
    %3424 = vmatpush1.msra.mxu0 %v2354
    %3425 = vmatprep.subr.mxu0 %v2359
    %3426 = vmatpush1.msra.mxu0 %v2358
    %3427 = vmatprep.subr.mxu0 %v2363
    %3428 = vmatpush1.msra.mxu0 %v2362
    %3429 = vmatprep.subr.mxu0 %v2367
    %3430 = vmatpush1.msra.mxu0 %v2366
    %3431 = vmatprep.subr.mxu0 %v2371
    %3432 = vmatpush1.msra.mxu0 %v2370
    %3433 = vmatprep.subr.mxu0 %v2375
    %3434 = vmatpush1.msra.mxu0 %v2374
    %3435 = vmatprep.subr.mxu0 %v2379
    %3436 = vmatpush1.msra.mxu0 %v2378
    %3437 = vmatprep.subr.mxu0 %v2383
    %3438 = vmatpush1.msra.mxu0 %v2382
    %3439 = vmatprep.subr.mxu0 0.0
    %3440 = vmatpush1.msra.mxu0 0.0
    %3441 = vmatprep.subr.mxu0 0.0
    %3442 = vmatpush1.msra.mxu0 0.0
    %3443 = vmatprep.subr.mxu0 0.0
    %3444 = vmatpush1.msra.mxu0 0.0
    %3445 = vmatprep.subr.mxu0 0.0
    %3446 = vmatpush1.msra.mxu0 0.0
    %3447 = vmatprep.subr.mxu0 0.0
    %3448 = vmatpush1.msra.mxu0 0.0
    %3449 = vmatprep.subr.mxu0 0.0
    %3450 = vmatpush1.msra.mxu0 0.0
    %3451 = vmatprep.subr.mxu0 0.0
    %3452 = vmatpush1.msra.mxu0 0.0
    %3453 = vmatprep.subr.mxu0 0.0
    %3454 = vmatpush1.msra.mxu0 0.0
    %3455 = vmatprep.subr.mxu0 0.0
    %3456 = vmatpush1.msra.mxu0 0.0
    %3457 = vmatprep.subr.mxu0 0.0
    %3458 = vmatpush1.msra.mxu0 0.0
    %3459 = vmatprep.subr.mxu0 0.0
    %3460 = vmatpush1.msra.mxu0 0.0
    %3461 = vmatprep.subr.mxu0 0.0
    %3462 = vmatpush1.msra.mxu0 0.0
    %3463 = vmatprep.subr.mxu0 0.0
    %3464 = vmatpush1.msra.mxu0 0.0
    %3465 = vmatprep.subr.mxu0 0.0
    %3466 = vmatpush1.msra.mxu0 0.0
    %3467 = vmatprep.subr.mxu0 0.0
    %3468 = vmatpush1.msra.mxu0 0.0
    %3469 = vmatprep.subr.mxu0 0.0
    %3470 = vmatpush1.msra.mxu0 0.0
    %3471 = vmatprep.mubr.f32.mxu0 0.0
    %3472 = vmatmul.mubr.f32.gmra.mrb[0].mxu0 %v3316
    %v3473 = vpop.f32.mrb[0].mxu0
    %v3474 = vadd.f32 0.0, %v3473
    %v3475 = vpop.f32.mrb[0].mxu0
    %v3476 = vadd.f32 0.0, %v3475
    %3477 = vdwg.mxu0
    %v3478 = vadd.f32 %v3332, %v3403
    %v3479 = vadd.f32 %v3333, %v3405
    %v3480 = vadd.f32 %v3334, %v3474
    %v3481 = vadd.f32 %v3335, %v3476
    %v3482 = vxor.u32 %v3478, 2147483648
    %v3483 = vmul.f32 %v3482, 1.442695
    %v3484 = vpow.pop %v3483
    %v3485 = vadd.f32 %v3484, 1.0
    %v3486 = vrcp.pop %v3485
    %v3487 = vmul.f32 1.0, %v3486
    %v3488 = vxor.u32 %v3479, 2147483648
    %v3489 = vmul.f32 %v3488, 1.442695
    %v3490 = vpow.pop %v3489
    %v3491 = vadd.f32 %v3490, 1.0
    %v3492 = vrcp.pop %v3491
    %v3493 = vmul.f32 1.0, %v3492
    %v3494 = vtanh.pop %v3480
    %v3495 = vxor.u32 %v3481, 2147483648
    %v3496 = vmul.f32 %v3495, 1.442695
    %v3497 = vpow.pop %v3496
    %v3498 = vadd.f32 %v3497, 1.0
    %v3499 = vrcp.pop %v3498
    %v3500 = vmul.f32 1.0, %v3499
    %v3501 = vmul.f32 %v3493, %v3314
    %v3502 = vmul.f32 %v3487, %v3494
    %v3503 = vadd.f32 %v3501, %v3502
    %v3504 = vtanh.pop %v3503
    %v3505 = vmul.f32 %v3500, %v3504
    %v3506 = vsel %vm133, %v3505, -1e+30
    %3507 = vmax.xlane.f32.xlu0 %v3506
    %v3508 = vpop.xlane.xlu0 %3507
    %v3509 = vsub.f32 %v3506, %v3508
    %v3510 = vmul.f32 %v3509, 1.442695
    %v3511 = vpow.pop %v3510
    %3512 = vadd.xlane.f32.xlu0 %v3511
    %v3513 = vpop.xlane.xlu0 %3512
    %v3514 = vrcp.pop %v3513
    %v3515 = vmul.f32 %v3513, %v3514
    %v3516 = vsub.f32 2.0, %v3515
    %v3517 = vmul.f32 %v3514, %v3516
    %v3518 = vmul.f32 %v3511, %v3517
    %s3519 = scalar_lea.vmem [#allocation17], 40
    %3520 = vst [vmem:[%s3519] sm:$0xff] %v3518
    %v3521 = vld [vmem:[%s1612] sm:$0xff]
    %v3522 = vld [vmem:[%s1612 + $0x8] sm:$0xff]
    %v3523 = vld [vmem:[%s1612 + $0x10] sm:$0xff]
    %v3524 = vld [vmem:[%s1612 + $0x18] sm:$0xff]
    %3525 = vmatprep.subr.mxu0 %v2321
    %3526 = vmatpush1.msra.mxu0 %v2320
    %3527 = vmatprep.subr.mxu0 %v2325
    %3528 = vmatpush1.msra.mxu0 %v2324
    %3529 = vmatprep.subr.mxu0 %v2329
    %3530 = vmatpush1.msra.mxu0 %v2328
    %3531 = vmatprep.subr.mxu0 %v2333
    %3532 = vmatpush1.msra.mxu0 %v2332
    %3533 = vmatprep.subr.mxu0 %v2337
    %3534 = vmatpush1.msra.mxu0 %v2336
    %3535 = vmatprep.subr.mxu0 %v2341
    %3536 = vmatpush1.msra.mxu0 %v2340
    %3537 = vmatprep.subr.mxu0 %v2345
    %3538 = vmatpush1.msra.mxu0 %v2344
    %3539 = vmatprep.subr.mxu0 %v2349
    %3540 = vmatpush1.msra.mxu0 %v2348
    %3541 = vmatprep.subr.mxu0 %v2353
    %3542 = vmatpush1.msra.mxu0 %v2352
    %3543 = vmatprep.subr.mxu0 %v2357
    %3544 = vmatpush1.msra.mxu0 %v2356
    %3545 = vmatprep.subr.mxu0 %v2361
    %3546 = vmatpush1.msra.mxu0 %v2360
    %3547 = vmatprep.subr.mxu0 %v2365
    %3548 = vmatpush1.msra.mxu0 %v2364
    %3549 = vmatprep.subr.mxu0 %v2369
    %3550 = vmatpush1.msra.mxu0 %v2368
    %3551 = vmatprep.subr.mxu0 %v2373
    %3552 = vmatpush1.msra.mxu0 %v2372
    %3553 = vmatprep.subr.mxu0 %v2377
    %3554 = vmatpush1.msra.mxu0 %v2376
    %3555 = vmatprep.subr.mxu0 %v2381
    %3556 = vmatpush1.msra.mxu0 %v2380
    %3557 = vmatprep.subr.mxu0 0.0
    %3558 = vmatpush1.msra.mxu0 0.0
    %3559 = vmatprep.subr.mxu0 0.0
    %3560 = vmatpush1.msra.mxu0 0.0
    %3561 = vmatprep.subr.mxu0 0.0
    %3562 = vmatpush1.msra.mxu0 0.0
    %3563 = vmatprep.subr.mxu0 0.0
    %3564 = vmatpush1.msra.mxu0 0.0
    %3565 = vmatprep.subr.mxu0 0.0
    %3566 = vmatpush1.msra.mxu0 0.0
    %3567 = vmatprep.subr.mxu0 0.0
    %3568 = vmatpush1.msra.mxu0 0.0
    %3569 = vmatprep.subr.mxu0 0.0
    %3570 = vmatpush1.msra.mxu0 0.0
    %3571 = vmatprep.subr.mxu0 0.0
    %3572 = vmatpush1.msra.mxu0 0.0
    %3573 = vmatprep.subr.mxu0 0.0
    %3574 = vmatpush1.msra.mxu0 0.0
    %3575 = vmatprep.subr.mxu0 0.0
    %3576 = vmatpush1.msra.mxu0 0.0
    %3577 = vmatprep.subr.mxu0 0.0
    %3578 = vmatpush1.msra.mxu0 0.0
    %3579 = vmatprep.subr.mxu0 0.0
    %3580 = vmatpush1.msra.mxu0 0.0
    %3581 = vmatprep.subr.mxu0 0.0
    %3582 = vmatpush1.msra.mxu0 0.0
    %3583 = vmatprep.subr.mxu0 0.0
    %3584 = vmatpush1.msra.mxu0 0.0
    %3585 = vmatprep.subr.mxu0 0.0
    %3586 = vmatpush1.msra.mxu0 0.0
    %3587 = vmatprep.subr.mxu0 0.0
    %3588 = vmatpush1.msra.mxu0 0.0
    %3589 = vmatprep.mubr.f32.mxu0 0.0
    %3590 = vmatmul.mubr.f32.gmra.mrb[0].mxu0 %v3505
    %v3591 = vpop.f32.mrb[0].mxu0
    %v3592 = vadd.f32 0.0, %v3591
    %v3593 = vpop.f32.mrb[0].mxu0
    %v3594 = vadd.f32 0.0, %v3593
    %3595 = vdwg.mxu0
    %3596 = vmatprep.subr.mxu0 %v2323
    %3597 = vmatpush1.msra.mxu0 %v2322
    %3598 = vmatprep.subr.mxu0 %v2327
    %3599 = vmatpush1.msra.mxu0 %v2326
    %3600 = vmatprep.subr.mxu0 %v2331
    %3601 = vmatpush1.msra.mxu0 %v2330
    %3602 = vmatprep.subr.mxu0 %v2335
    %3603 = vmatpush1.msra.mxu0 %v2334
    %3604 = vmatprep.subr.mxu0 %v2339
    %3605 = vmatpush1.msra.mxu0 %v2338
    %3606 = vmatprep.subr.mxu0 %v2343
    %3607 = vmatpush1.msra.mxu0 %v2342
    %3608 = vmatprep.subr.mxu0 %v2347
    %3609 = vmatpush1.msra.mxu0 %v2346
    %3610 = vmatprep.subr.mxu0 %v2351
    %3611 = vmatpush1.msra.mxu0 %v2350
    %3612 = vmatprep.subr.mxu0 %v2355
    %3613 = vmatpush1.msra.mxu0 %v2354
    %3614 = vmatprep.subr.mxu0 %v2359
    %3615 = vmatpush1.msra.mxu0 %v2358
    %3616 = vmatprep.subr.mxu0 %v2363
    %3617 = vmatpush1.msra.mxu0 %v2362
    %3618 = vmatprep.subr.mxu0 %v2367
    %3619 = vmatpush1.msra.mxu0 %v2366
    %3620 = vmatprep.subr.mxu0 %v2371
    %3621 = vmatpush1.msra.mxu0 %v2370
    %3622 = vmatprep.subr.mxu0 %v2375
    %3623 = vmatpush1.msra.mxu0 %v2374
    %3624 = vmatprep.subr.mxu0 %v2379
    %3625 = vmatpush1.msra.mxu0 %v2378
    %3626 = vmatprep.subr.mxu0 %v2383
    %3627 = vmatpush1.msra.mxu0 %v2382
    %3628 = vmatprep.subr.mxu0 0.0
    %3629 = vmatpush1.msra.mxu0 0.0
    %3630 = vmatprep.subr.mxu0 0.0
    %3631 = vmatpush1.msra.mxu0 0.0
    %3632 = vmatprep.subr.mxu0 0.0
    %3633 = vmatpush1.msra.mxu0 0.0
    %3634 = vmatprep.subr.mxu0 0.0
    %3635 = vmatpush1.msra.mxu0 0.0
    %3636 = vmatprep.subr.mxu0 0.0
    %3637 = vmatpush1.msra.mxu0 0.0
    %3638 = vmatprep.subr.mxu0 0.0
    %3639 = vmatpush1.msra.mxu0 0.0
    %3640 = vmatprep.subr.mxu0 0.0
    %3641 = vmatpush1.msra.mxu0 0.0
    %3642 = vmatprep.subr.mxu0 0.0
    %3643 = vmatpush1.msra.mxu0 0.0
    %3644 = vmatprep.subr.mxu0 0.0
    %3645 = vmatpush1.msra.mxu0 0.0
    %3646 = vmatprep.subr.mxu0 0.0
    %3647 = vmatpush1.msra.mxu0 0.0
    %3648 = vmatprep.subr.mxu0 0.0
    %3649 = vmatpush1.msra.mxu0 0.0
    %3650 = vmatprep.subr.mxu0 0.0
    %3651 = vmatpush1.msra.mxu0 0.0
    %3652 = vmatprep.subr.mxu0 0.0
    %3653 = vmatpush1.msra.mxu0 0.0
    %3654 = vmatprep.subr.mxu0 0.0
    %3655 = vmatpush1.msra.mxu0 0.0
    %3656 = vmatprep.subr.mxu0 0.0
    %3657 = vmatpush1.msra.mxu0 0.0
    %3658 = vmatprep.subr.mxu0 0.0
    %3659 = vmatpush1.msra.mxu0 0.0
    %3660 = vmatprep.mubr.f32.mxu0 0.0
    %3661 = vmatmul.mubr.f32.gmra.mrb[0].mxu0 %v3505
    %v3662 = vpop.f32.mrb[0].mxu0
    %v3663 = vadd.f32 0.0, %v3662
    %v3664 = vpop.f32.mrb[0].mxu0
    %v3665 = vadd.f32 0.0, %v3664
    %3666 = vdwg.mxu0
    %v3667 = vadd.f32 %v3521, %v3592
    %v3668 = vadd.f32 %v3522, %v3594
    %v3669 = vadd.f32 %v3523, %v3663
    %v3670 = vadd.f32 %v3524, %v3665
    %v3671 = vxor.u32 %v3667, 2147483648
    %v3672 = vmul.f32 %v3671, 1.442695
    %v3673 = vpow.pop %v3672
    %v3674 = vadd.f32 %v3673, 1.0
    %v3675 = vrcp.pop %v3674
    %v3676 = vmul.f32 1.0, %v3675
    %v3677 = vxor.u32 %v3668, 2147483648
    %v3678 = vmul.f32 %v3677, 1.442695
    %v3679 = vpow.pop %v3678
    %v3680 = vadd.f32 %v3679, 1.0
    %v3681 = vrcp.pop %v3680
    %v3682 = vmul.f32 1.0, %v3681
    %v3683 = vtanh.pop %v3669
    %v3684 = vxor.u32 %v3670, 2147483648
    %v3685 = vmul.f32 %v3684, 1.442695
    %v3686 = vpow.pop %v3685
    %v3687 = vadd.f32 %v3686, 1.0
    %v3688 = vrcp.pop %v3687
    %v3689 = vmul.f32 1.0, %v3688
    %v3690 = vmul.f32 %v3682, %v3503
    %v3691 = vmul.f32 %v3676, %v3683
    %v3692 = vadd.f32 %v3690, %v3691
    %v3693 = vtanh.pop %v3692
    %v3694 = vmul.f32 %v3689, %v3693
    %v3695 = vsel %vm133, %v3694, -1e+30
    %3696 = vmax.xlane.f32.xlu0 %v3695
    %v3697 = vpop.xlane.xlu0 %3696
    %v3698 = vsub.f32 %v3695, %v3697
    %v3699 = vmul.f32 %v3698, 1.442695
    %v3700 = vpow.pop %v3699
    %3701 = vadd.xlane.f32.xlu0 %v3700
    %v3702 = vpop.xlane.xlu0 %3701
    %v3703 = vrcp.pop %v3702
    %v3704 = vmul.f32 %v3702, %v3703
    %v3705 = vsub.f32 2.0, %v3704
    %v3706 = vmul.f32 %v3703, %v3705
    %v3707 = vmul.f32 %v3700, %v3706
    %s3708 = scalar_lea.vmem [#allocation17], 48
    %3709 = vst [vmem:[%s3708] sm:$0xff] %v3707
    %v3710 = vld [vmem:[%s1789] sm:$0xff]
    %v3711 = vld [vmem:[%s1789 + $0x8] sm:$0xff]
    %v3712 = vld [vmem:[%s1789 + $0x10] sm:$0xff]
    %v3713 = vld [vmem:[%s1789 + $0x18] sm:$0xff]
    %3714 = vmatprep.subr.mxu0 %v2321
    %3715 = vmatpush1.msra.mxu0 %v2320
    %3716 = vmatprep.subr.mxu0 %v2325
    %3717 = vmatpush1.msra.mxu0 %v2324
    %3718 = vmatprep.subr.mxu0 %v2329
    %3719 = vmatpush1.msra.mxu0 %v2328
    %3720 = vmatprep.subr.mxu0 %v2333
    %3721 = vmatpush1.msra.mxu0 %v2332
    %3722 = vmatprep.subr.mxu0 %v2337
    %3723 = vmatpush1.msra.mxu0 %v2336
    %3724 = vmatprep.subr.mxu0 %v2341
    %3725 = vmatpush1.msra.mxu0 %v2340
    %3726 = vmatprep.subr.mxu0 %v2345
    %3727 = vmatpush1.msra.mxu0 %v2344
    %3728 = vmatprep.subr.mxu0 %v2349
    %3729 = vmatpush1.msra.mxu0 %v2348
    %3730 = vmatprep.subr.mxu0 %v2353
    %3731 = vmatpush1.msra.mxu0 %v2352
    %3732 = vmatprep.subr.mxu0 %v2357
    %3733 = vmatpush1.msra.mxu0 %v2356
    %3734 = vmatprep.subr.mxu0 %v2361
    %3735 = vmatpush1.msra.mxu0 %v2360
    %3736 = vmatprep.subr.mxu0 %v2365
    %3737 = vmatpush1.msra.mxu0 %v2364
    %3738 = vmatprep.subr.mxu0 %v2369
    %3739 = vmatpush1.msra.mxu0 %v2368
    %3740 = vmatprep.subr.mxu0 %v2373
    %3741 = vmatpush1.msra.mxu0 %v2372
    %3742 = vmatprep.subr.mxu0 %v2377
    %3743 = vmatpush1.msra.mxu0 %v2376
    %3744 = vmatprep.subr.mxu0 %v2381
    %3745 = vmatpush1.msra.mxu0 %v2380
    %3746 = vmatprep.subr.mxu0 0.0
    %3747 = vmatpush1.msra.mxu0 0.0
    %3748 = vmatprep.subr.mxu0 0.0
    %3749 = vmatpush1.msra.mxu0 0.0
    %3750 = vmatprep.subr.mxu0 0.0
    %3751 = vmatpush1.msra.mxu0 0.0
    %3752 = vmatprep.subr.mxu0 0.0
    %3753 = vmatpush1.msra.mxu0 0.0
    %3754 = vmatprep.subr.mxu0 0.0
    %3755 = vmatpush1.msra.mxu0 0.0
    %3756 = vmatprep.subr.mxu0 0.0
    %3757 = vmatpush1.msra.mxu0 0.0
    %3758 = vmatprep.subr.mxu0 0.0
    %3759 = vmatpush1.msra.mxu0 0.0
    %3760 = vmatprep.subr.mxu0 0.0
    %3761 = vmatpush1.msra.mxu0 0.0
    %3762 = vmatprep.subr.mxu0 0.0
    %3763 = vmatpush1.msra.mxu0 0.0
    %3764 = vmatprep.subr.mxu0 0.0
    %3765 = vmatpush1.msra.mxu0 0.0
    %3766 = vmatprep.subr.mxu0 0.0
    %3767 = vmatpush1.msra.mxu0 0.0
    %3768 = vmatprep.subr.mxu0 0.0
    %3769 = vmatpush1.msra.mxu0 0.0
    %3770 = vmatprep.subr.mxu0 0.0
    %3771 = vmatpush1.msra.mxu0 0.0
    %3772 = vmatprep.subr.mxu0 0.0
    %3773 = vmatpush1.msra.mxu0 0.0
    %3774 = vmatprep.subr.mxu0 0.0
    %3775 = vmatpush1.msra.mxu0 0.0
    %3776 = vmatprep.subr.mxu0 0.0
    %3777 = vmatpush1.msra.mxu0 0.0
    %3778 = vmatprep.mubr.f32.mxu0 0.0
    %3779 = vmatmul.mubr.f32.gmra.mrb[0].mxu0 %v3694
    %v3780 = vpop.f32.mrb[0].mxu0
    %v3781 = vadd.f32 0.0, %v3780
    %v3782 = vpop.f32.mrb[0].mxu0
    %v3783 = vadd.f32 0.0, %v3782
    %3784 = vdwg.mxu0
    %3785 = vmatprep.subr.mxu0 %v2323
    %3786 = vmatpush1.msra.mxu0 %v2322
    %3787 = vmatprep.subr.mxu0 %v2327
    %3788 = vmatpush1.msra.mxu0 %v2326
    %3789 = vmatprep.subr.mxu0 %v2331
    %3790 = vmatpush1.msra.mxu0 %v2330
    %3791 = vmatprep.subr.mxu0 %v2335
    %3792 = vmatpush1.msra.mxu0 %v2334
    %3793 = vmatprep.subr.mxu0 %v2339
    %3794 = vmatpush1.msra.mxu0 %v2338
    %3795 = vmatprep.subr.mxu0 %v2343
    %3796 = vmatpush1.msra.mxu0 %v2342
    %3797 = vmatprep.subr.mxu0 %v2347
    %3798 = vmatpush1.msra.mxu0 %v2346
    %3799 = vmatprep.subr.mxu0 %v2351
    %3800 = vmatpush1.msra.mxu0 %v2350
    %3801 = vmatprep.subr.mxu0 %v2355
    %3802 = vmatpush1.msra.mxu0 %v2354
    %3803 = vmatprep.subr.mxu0 %v2359
    %3804 = vmatpush1.msra.mxu0 %v2358
    %3805 = vmatprep.subr.mxu0 %v2363
    %3806 = vmatpush1.msra.mxu0 %v2362
    %3807 = vmatprep.subr.mxu0 %v2367
    %3808 = vmatpush1.msra.mxu0 %v2366
    %3809 = vmatprep.subr.mxu0 %v2371
    %3810 = vmatpush1.msra.mxu0 %v2370
    %3811 = vmatprep.subr.mxu0 %v2375
    %3812 = vmatpush1.msra.mxu0 %v2374
    %3813 = vmatprep.subr.mxu0 %v2379
    %3814 = vmatpush1.msra.mxu0 %v2378
    %3815 = vmatprep.subr.mxu0 %v2383
    %3816 = vmatpush1.msra.mxu0 %v2382
    %3817 = vmatprep.subr.mxu0 0.0
    %3818 = vmatpush1.msra.mxu0 0.0
    %3819 = vmatprep.subr.mxu0 0.0
    %3820 = vmatpush1.msra.mxu0 0.0
    %3821 = vmatprep.subr.mxu0 0.0
    %3822 = vmatpush1.msra.mxu0 0.0
    %3823 = vmatprep.subr.mxu0 0.0
    %3824 = vmatpush1.msra.mxu0 0.0
    %3825 = vmatprep.subr.mxu0 0.0
    %3826 = vmatpush1.msra.mxu0 0.0
    %3827 = vmatprep.subr.mxu0 0.0
    %3828 = vmatpush1.msra.mxu0 0.0
    %3829 = vmatprep.subr.mxu0 0.0
    %3830 = vmatpush1.msra.mxu0 0.0
    %3831 = vmatprep.subr.mxu0 0.0
    %3832 = vmatpush1.msra.mxu0 0.0
    %3833 = vmatprep.subr.mxu0 0.0
    %3834 = vmatpush1.msra.mxu0 0.0
    %3835 = vmatprep.subr.mxu0 0.0
    %3836 = vmatpush1.msra.mxu0 0.0
    %3837 = vmatprep.subr.mxu0 0.0
    %3838 = vmatpush1.msra.mxu0 0.0
    %3839 = vmatprep.subr.mxu0 0.0
    %3840 = vmatpush1.msra.mxu0 0.0
    %3841 = vmatprep.subr.mxu0 0.0
    %3842 = vmatpush1.msra.mxu0 0.0
    %3843 = vmatprep.subr.mxu0 0.0
    %3844 = vmatpush1.msra.mxu0 0.0
    %3845 = vmatprep.subr.mxu0 0.0
    %3846 = vmatpush1.msra.mxu0 0.0
    %3847 = vmatprep.subr.mxu0 0.0
    %3848 = vmatpush1.msra.mxu0 0.0
    %3849 = vmatprep.mubr.f32.mxu0 0.0
    %3850 = vmatmul.mubr.f32.gmra.mrb[0].mxu0 %v3694
    %v3851 = vpop.f32.mrb[0].mxu0
    %v3852 = vadd.f32 0.0, %v3851
    %v3853 = vpop.f32.mrb[0].mxu0
    %v3854 = vadd.f32 0.0, %v3853
    %3855 = vdwg.mxu0
    %v3856 = vadd.f32 %v3710, %v3781
    %v3857 = vadd.f32 %v3711, %v3783
    %v3858 = vadd.f32 %v3712, %v3852
    %v3859 = vadd.f32 %v3713, %v3854
    %v3860 = vxor.u32 %v3856, 2147483648
    %v3861 = vmul.f32 %v3860, 1.442695
    %v3862 = vpow.pop %v3861
    %v3863 = vadd.f32 %v3862, 1.0
    %v3864 = vrcp.pop %v3863
    %v3865 = vmul.f32 1.0, %v3864
    %v3866 = vxor.u32 %v3857, 2147483648
    %v3867 = vmul.f32 %v3866, 1.442695
    %v3868 = vpow.pop %v3867
    %v3869 = vadd.f32 %v3868, 1.0
    %v3870 = vrcp.pop %v3869
    %v3871 = vmul.f32 1.0, %v3870
    %v3872 = vtanh.pop %v3858
    %v3873 = vxor.u32 %v3859, 2147483648
    %v3874 = vmul.f32 %v3873, 1.442695
    %v3875 = vpow.pop %v3874
    %v3876 = vadd.f32 %v3875, 1.0
    %v3877 = vrcp.pop %v3876
    %v3878 = vmul.f32 1.0, %v3877
    %v3879 = vmul.f32 %v3871, %v3692
    %v3880 = vmul.f32 %v3865, %v3872
    %v3881 = vadd.f32 %v3879, %v3880
    %v3882 = vtanh.pop %v3881
    %v3883 = vmul.f32 %v3878, %v3882
    %v3884 = vsel %vm133, %v3883, -1e+30
    %3885 = vmax.xlane.f32.xlu0 %v3884
    %v3886 = vpop.xlane.xlu0 %3885
    %v3887 = vsub.f32 %v3884, %v3886
    %v3888 = vmul.f32 %v3887, 1.442695
    %v3889 = vpow.pop %v3888
    %3890 = vadd.xlane.f32.xlu0 %v3889
    %v3891 = vpop.xlane.xlu0 %3890
    %v3892 = vrcp.pop %v3891
    %v3893 = vmul.f32 %v3891, %v3892
    %v3894 = vsub.f32 2.0, %v3893
    %v3895 = vmul.f32 %v3892, %v3894
    %v3896 = vmul.f32 %v3889, %v3895
    %s3897 = scalar_lea.vmem [#allocation17], 56
    %3898 = vst [vmem:[%s3897] sm:$0xff] %v3896
    %3899 = vst [vmem:[%s2384] sm:$0xff] %v3883
    %3900 = vst [vmem:[%s2386] sm:$0xff] %v3881
    // Predicated region
    $region66: #{tpu_custom_call.1} parent=1 // pred_check
      %p3901 = pneg %p119
    $region67: #{tpu_custom_call.1} parent=1 // pred_check_branch
      %3903 = sbr.rel (%p3901) target = $region69
    $region68: #{tpu_custom_call.1} parent=1 // pred_region
      %v3904 = vld [vmem:[#allocation4] sm:$0xff]
      %v3905 = vld [vmem:[#allocation4 + $0x8] sm:$0xff]
      %3906 = vst [vmem:[#allocation18] sm:$0xff] %v3904
      %3907 = vst [vmem:[#allocation18 + $0x8] sm:$0xff] %v3905
      %v3908 = vld [vmem:[#allocation5] sm:$0xff]
      %v3909 = vld [vmem:[#allocation5 + $0x8] sm:$0xff]
      %3910 = vst [vmem:[#allocation20] sm:$0xff] %v3908
      %3911 = vst [vmem:[#allocation20 + $0x8] sm:$0xff] %v3909
    $region69: #{tpu_custom_call.1} parent=1 // pred_fallthru
      _
    // Predicated region
    $region70: #{tpu_custom_call.1} parent=1 // pred_check
      _
    $region71: #{tpu_custom_call.1} parent=1 // pred_check_branch
      %3913 = sbr.rel (0) target = $region73
    $region72: #{tpu_custom_call.1} parent=1 // pred_region
      %s3915 = ssub.s32 1024, 1024
      %3916 = vsyncadd [#allocation8], %s3915
      %s3917 = sshll.u32 [#allocation17], 4
      %s3918 = int_to_ptr.vmem [resolvable:$true] %s3917
      %3923 = dma.vmem_to_hbm [thread:$0]  %s3918, 1024, %s9, [#allocation8], 128, 128, 8
    $region73: #{tpu_custom_call.1} parent=1 // pred_fallthru
      _
    // Predicated region
    $region74: #{tpu_custom_call.1} parent=1 // pred_check
      _
    $region75: #{tpu_custom_call.1} parent=1 // pred_check_branch
      %3925 = sbr.rel (0) target = $region77
    $region76: #{tpu_custom_call.1} parent=1 // pred_region
      %s3927 = ssub.s32 256, 256
      %3928 = vsyncadd [#allocation19], %s3927
      %s3929 = sshll.u32 [#allocation18], 4
      %s3930 = int_to_ptr.vmem [resolvable:$true] %s3929
      %3935 = dma.vmem_to_hbm [thread:$0]  %s3930, 256, %s10, [#allocation19], 128, 128, 8
    $region77: #{tpu_custom_call.1} parent=1 // pred_fallthru
      _
    // Predicated region
    $region78: #{tpu_custom_call.1} parent=1 // pred_check
      _
    $region79: #{tpu_custom_call.1} parent=1 // pred_check_branch
      %3937 = sbr.rel (0) target = $region81
    $region80: #{tpu_custom_call.1} parent=1 // pred_region
      %s3939 = ssub.s32 256, 256
      %3940 = vsyncadd [#allocation19], %s3939
      %s3941 = sshll.u32 [#allocation20], 4
      %s3942 = int_to_ptr.vmem [resolvable:$true] %s3941
      %3947 = dma.vmem_to_hbm [thread:$0]  %s3942, 256, %s11, [#allocation19], 128, 128, 8
    $region81: #{tpu_custom_call.1} parent=1 // pred_fallthru
      _
    // Predicated region
    $region82: #{tpu_custom_call.1} parent=1 // pred_check
      _
    $region83: #{tpu_custom_call.1} parent=1 // pred_check_branch
      %3949 = sbr.rel (0) target = $region85
    $region84: #{tpu_custom_call.1} parent=1 // pred_region
      %3950 = dma.done [#allocation8], 1024
    $region85: #{tpu_custom_call.1} parent=1 // pred_fallthru
      _
    // Predicated region
    $region86: #{tpu_custom_call.1} parent=1 // pred_check
      _
    $region87: #{tpu_custom_call.1} parent=1 // pred_check_branch
      %3952 = sbr.rel (0) target = $region89
    $region88: #{tpu_custom_call.1} parent=1 // pred_region
      %3953 = dma.done [#allocation19], 256
    $region89: #{tpu_custom_call.1} parent=1 // pred_fallthru
      _
    // Predicated region
    $region90: #{tpu_custom_call.1} parent=1 // pred_check
      _
    $region91: #{tpu_custom_call.1} parent=1 // pred_check_branch
      %3955 = sbr.rel (0) target = $region93
    $region92: #{tpu_custom_call.1} parent=1 // pred_region
      %3956 = dma.done [#allocation19], 256
    $region93: #{tpu_custom_call.1} parent=1 // pred_fallthru
      _
    %3957 = vsyncpa [#allocation7], 1
    %3958 = vsyncpa [#allocation10], 1
    %3959 = vsyncpa [#allocation13], 1
    %3960 = vsyncpa [#allocation16], 1
    %3961 = vsyncpa [#allocation8], 1
    %3962 = vsyncpa [#allocation19], 1

</llo_original>
